<compile_context>
chip_gen: v7x
topology: tpu7x:2x2x1
jax: 0.10.0
libtpu: 0.0.40
codegen_flags: <defaults>
</compile_context>

<pallas_src>
import functools
import math

import jax
import jax.numpy as jnp
from jax.experimental import pallas as pl
from jax.experimental.pallas import tpu as pltpu


# --------------------------- backend / tile config ---------------------------

_ON_TPU = jax.default_backend() == "tpu"
# bf16 MXU operands on real TPUs; f32 elsewhere (the CPU/interpret path has no
# BF16 x BF16 = F32 dot support).
_MXU_DTYPE = jnp.bfloat16 if _ON_TPU else jnp.float32


def _device_tiles():
    kind = ""
    try:
        kind = jax.devices()[0].device_kind.lower()
    except Exception:
        pass
    if "7" in kind:           # v7x: 64 MiB VMEM -> keep GEMM working set modest
        return dict(gemm_m=256, gemm_n=512, gemm_k=512)
    # v5e / v6e: 128 MiB VMEM -> bigger tiles, fewer grid steps, longer MXU runs
    return dict(gemm_m=512, gemm_n=1024, gemm_k=512)


_TILES = _device_tiles()


# ----------------------------- helpers --------------------------------------

def _gelu(x):
    # tanh-approx GELU in f32 (safe on v5e which lacks bf16 VPU/EUP).
    # TODO(synk): PyTorch nn.GELU defaults to exact erf; tanh approximation used.
    return 0.5 * x * (1.0 + jnp.tanh(0.7978845608028654 * (x + 0.044715 * x * x * x)))


def _pick_tile(n, target, align):
    """Largest divisor of n that is <= target and a multiple of `align`; falls
    back to any divisor, else n (full extent is always BlockSpec-legal).
    TODO(synk): for awkward (prime-ish) M a cdiv grid with a masked tail tile
    would avoid tiny tiles; real sequence lengths should be padded upstream."""
    if n <= target:
        return n
    t = min(target, n)
    for cand in range(t, align - 1, -1):
        if n % cand == 0 and cand % align == 0:
            return cand
    for cand in range(t, 0, -1):
        if n % cand == 0:
            return cand
    return n


# ---------------------------- LayerNorm (tiled) ------------------------------

def _layernorm_kernel(x_ref, g_ref, b_ref, o_ref, *, eps):
    x = x_ref[...]
    mu = jnp.mean(x, axis=-1, keepdims=True)
    xc = x - mu
    var = jnp.mean(xc * xc, axis=-1, keepdims=True)
    o_ref[...] = xc * jax.lax.rsqrt(var + eps) * g_ref[...] + b_ref[...]


def layernorm(x2d, gamma, beta, eps=1e-5):
    M, D = x2d.shape
    tm = _pick_tile(M, _TILES["gemm_m"], 8)
    return pl.pallas_call(
        functools.partial(_layernorm_kernel, eps=eps),
        out_shape=jax.ShapeDtypeStruct((M, D), jnp.float32),
        grid=(M // tm,),
        in_specs=[pl.BlockSpec((tm, D), lambda i: (i, 0)),
                  pl.BlockSpec((1, D), lambda i: (0, 0)),
                  pl.BlockSpec((1, D), lambda i: (0, 0))],
        out_specs=pl.BlockSpec((tm, D), lambda i: (i, 0)),
        compiler_params=pltpu.CompilerParams(dimension_semantics=("parallel",)),
    )(x2d, gamma.reshape(1, D), beta.reshape(1, D))


# ------------------- grouped positional conv (+GELU +residual) ---------------

def _posconv_kernel(xn_ref, w_ref, b_ref, o_ref, xp_ref, xc_ref, acc_ref,
                    *, R, KC, Tc, pad_l, pad_r, gt, Cg):
    T = xn_ref.shape[1]
    xn = xn_ref[0]                                    # (T, gt*Cg) f32
    xnb = xn.astype(xp_ref.dtype)

    # zero only the halo rows of the padded scratch (not the whole buffer)
    if pad_l > 0:
        xp_ref[:, :pad_l, :] = jnp.zeros((gt, pad_l, Cg), xp_ref.dtype)
    if pad_r > 0:
        xp_ref[:, pad_l + T:, :] = jnp.zeros((gt, pad_r, Cg), xp_ref.dtype)
    # group-major copy via static per-group stores (no lane concatenate)
    for g in range(gt):
        xp_ref[g, pad_l:pad_l + T, :] = xnb[:, g * Cg:(g + 1) * Cg]

    n_tc = T // Tc

    def t_step(it, carry):
        t0 = pl.multiple_of(it * Tc, Tc)
        acc_ref[...] = jnp.zeros_like(acc_ref)

        def c_step(c, inner):
            base = t0 + c * R
            # chunked im2col: R shifted taps concatenated along lanes so the
            # MXU contraction is R*Cg deep instead of Cg (much better MXU use)
            for r in range(R):                        # static unroll over taps
                xc_ref[:, :, r * Cg:(r + 1) * Cg] = xp_ref[:, pl.ds(base + r, Tc), :]
            acc_ref[...] += jax.lax.dot_general(
                xc_ref[...], w_ref[c],
                (((2,), (1,)), ((0,), (0,))),
                preferred_element_type=jnp.float32)
            return inner

        jax.lax.fori_loop(0, KC, c_step, 0, unroll=2 if KC % 2 == 0 else 1)

        # bias + GELU + residual; per-group lane-slice stores into the output
        for g in range(gt):
            sl = slice(g * Cg, (g + 1) * Cg)
            pe = acc_ref[g] + b_ref[:, sl]
            res = xn_ref[0, pl.ds(t0, Tc), sl]
            o_ref[0, pl.ds(t0, Tc), sl] = res + _gelu(pe)
        return carry

    jax.lax.fori_loop(0, n_tc, t_step, 0)


def pos_conv_block(xn, w_conv, b_conv, *, K, block_t=256, rcg_max=512):
    """xn: (B, T, D) pre-normalized input.  Returns xn + GELU(grouped_conv(xn)).
    Grid is (batch, group-tiles): parallel on both axes, small per-step VMEM."""
    B, T, D = xn.shape
    Kw, G, Cg, _ = w_conv.shape
    assert Kw == K and G * Cg == D

    # group tile: smallest divisor of G whose channel span is 128-lane aligned
    gt = G
    for cand in range(1, G + 1):
        if G % cand == 0 and (cand * Cg) % 128 == 0:
            gt = cand
            break
    Csl = gt * Cg
    # tap chunk: largest divisor of K keeping the im2col contraction <= rcg_max
    R = 1
    for cand in range(1, K + 1):
        if K % cand == 0 and cand * Cg <= rcg_max:
            R = cand
    KC = K // R
    Tc = _pick_tile(T, block_t, 8)
    pad_l = K // 2
    pad_r = K - 1 - pad_l

    # (K, G, Cg, Cg) -> (KC, G, R*Cg, Cg): taps folded into the contraction dim
    w_chunk = w_conv.reshape(KC, R, G, Cg, Cg).transpose(0, 2, 1, 3, 4)
    w_chunk = w_chunk.reshape(KC, G, R * Cg, Cg)

    kernel = functools.partial(_posconv_kernel, R=R, KC=KC, Tc=Tc,
                               pad_l=pad_l, pad_r=pad_r, gt=gt, Cg=Cg)
    return pl.pallas_call(
        kernel,
        out_shape=jax.ShapeDtypeStruct((B, T, D), jnp.float32),
        grid=(B, G // gt),
        in_specs=[
            pl.BlockSpec((1, T, Csl), lambda b, gi: (b, 0, gi)),
            pl.BlockSpec((KC, gt, R * Cg, Cg), lambda b, gi: (0, gi, 0, 0)),
            pl.BlockSpec((1, Csl), lambda b, gi: (0, gi)),
        ],
        out_specs=pl.BlockSpec((1, T, Csl), lambda b, gi: (b, 0, gi)),
        scratch_shapes=[
            pltpu.VMEM((gt, T + K - 1, Cg), _MXU_DTYPE),   # zero-haloed input
            pltpu.VMEM((gt, Tc, R * Cg), _MXU_DTYPE),      # im2col operand
            pltpu.VMEM((gt, Tc, Cg), jnp.float32),         # f32 accumulator
        ],
        compiler_params=pltpu.CompilerParams(
            dimension_semantics=("parallel", "parallel")),
    )(xn, w_chunk, b_conv.reshape(1, D))


# ----------------------- fused LN + Linear (+GELU) ---------------------------

def _ln_linear_kernel(x_ref, g_ref, bl_ref, w_ref, b_ref, o_ref, *, eps, act):
    x = x_ref[...]                                   # (tm, D) f32
    mu = jnp.mean(x, axis=-1, keepdims=True)
    xc = x - mu
    var = jnp.mean(xc * xc, axis=-1, keepdims=True)
    h = (xc * jax.lax.rsqrt(var + eps) * g_ref[...] + bl_ref[...]).astype(w_ref.dtype)
    y = jnp.dot(h, w_ref[...], preferred_element_type=jnp.float32) + b_ref[...]
    if act == "gelu":
        y = _gelu(y)
    o_ref[...] = y.astype(o_ref.dtype)               # bf16 out on TPU (halves HBM)


def ln_linear(x2d, gamma, beta, w, bias, act=None, eps=1e-5):
    """act(LN(x) @ W + b), tiled over (M, N).  LN is recomputed per N-tile
    (cheap) so its output never round-trips HBM; output in the MXU dtype."""
    M, D = x2d.shape
    N = w.shape[1]
    tm = _pick_tile(M, _TILES["gemm_m"], 8)
    tn = _pick_tile(N, _TILES["gemm_n"], 128)
    return pl.pallas_call(
        functools.partial(_ln_linear_kernel, eps=eps, act=act),
        out_shape=jax.ShapeDtypeStruct((M, N), _MXU_DTYPE),
        grid=(M // tm, N // tn),
        in_specs=[pl.BlockSpec((tm, D), lambda i, j: (i, 0)),
                  pl.BlockSpec((1, D), lambda i, j: (0, 0)),
                  pl.BlockSpec((1, D), lambda i, j: (0, 0)),
                  pl.BlockSpec((D, tn), lambda i, j: (0, j)),
                  pl.BlockSpec((1, tn), lambda i, j: (0, j))],
        out_specs=pl.BlockSpec((tm, tn), lambda i, j: (i, j)),
        compiler_params=pltpu.CompilerParams(
            dimension_semantics=("parallel", "parallel")),
    )(x2d, gamma.reshape(1, D), beta.reshape(1, D), w, bias.reshape(1, N))


# --------------------- Linear + bias + residual (K-tiled) --------------------

def _linear_res_kernel(x_ref, w_ref, b_ref, r_ref, o_ref, acc_ref):
    k = pl.program_id(2)

    @pl.when(k == 0)
    def _():
        acc_ref[...] = jnp.zeros_like(acc_ref)

    acc_ref[...] += jnp.dot(x_ref[...], w_ref[...],
                            preferred_element_type=jnp.float32)

    @pl.when(k == pl.num_programs(2) - 1)
    def _():
        o_ref[...] = acc_ref[...] + b_ref[...] + r_ref[...]


def linear_residual(x2d, w, bias, residual):
    """residual + x @ W + b, grid (M, N, K) with an f32 VMEM accumulator.
    x / W arrive in the MXU dtype (bf16 on TPU); residual stream stays f32."""
    M, Kd = x2d.shape
    N = w.shape[1]
    tm = _pick_tile(M, _TILES["gemm_m"], 8)
    tn = _pick_tile(N, _TILES["gemm_n"], 128)
    tk = _pick_tile(Kd, _TILES["gemm_k"], 128)
    return pl.pallas_call(
        _linear_res_kernel,
        out_shape=jax.ShapeDtypeStruct((M, N), jnp.float32),
        grid=(M // tm, N // tn, Kd // tk),
        in_specs=[pl.BlockSpec((tm, tk), lambda i, j, k: (i, k)),
                  # NOTE: if the weight-stream DMA shows up as exposed latency,
                  # add pipeline_mode=pl.Buffered(3) on this spec (sweep 2 vs 3).
                  pl.BlockSpec((tk, tn), lambda i, j, k: (k, j)),
                  pl.BlockSpec((1, tn), lambda i, j, k: (0, j)),
                  pl.BlockSpec((tm, tn), lambda i, j, k: (i, j))],
        out_specs=pl.BlockSpec((tm, tn), lambda i, j, k: (i, j)),
        scratch_shapes=[pltpu.VMEM((tm, tn), jnp.float32)],
        compiler_params=pltpu.CompilerParams(
            dimension_semantics=("parallel", "parallel", "arbitrary")),
    )(x2d, w, bias.reshape(1, N), residual)


# ------------------------- flash-style attention -----------------------------

def _flash_kernel(q_ref, k_ref, v_ref, o_ref, m_scr, l_scr, acc_scr, *, scale, heads):
    kv = pl.program_id(2)

    @pl.when(kv == 0)
    def _():
        m_scr[...] = jnp.full_like(m_scr, -jnp.inf)
        l_scr[...] = jnp.zeros_like(l_scr)
        acc_scr[...] = jnp.zeros_like(acc_scr)

    # 1/sqrt(dh) folded onto the (H,tq,dh) q tile (cheaper than scaling scores)
    q = q_ref[0, 0] * jnp.asarray(scale, q_ref.dtype)     # (H, tq, dh)
    k = k_ref[0, 0]                                       # (H, tkv, dh)
    v = v_ref[0, 0]
    # batched over heads with a leading batch dim: one dot_general, no per-head loop
    s = jax.lax.dot_general(q, k, (((2,), (2,)), ((0,), (0,))),
                            preferred_element_type=jnp.float32)       # (H,tq,tkv)
    m_prev = m_scr[...]
    m_new = jnp.maximum(m_prev, jnp.max(s, axis=-1, keepdims=True))
    alpha = jnp.exp(m_prev - m_new)
    p = jnp.exp(s - m_new)
    l_scr[...] = alpha * l_scr[...] + jnp.sum(p, axis=-1, keepdims=True)
    pv = jax.lax.dot_general(p.astype(v.dtype), v,
                             (((2,), (1,)), ((0,), (0,))),
                             preferred_element_type=jnp.float32)      # (H,tq,dh)
    acc_scr[...] = alpha * acc_scr[...] + pv
    m_scr[...] = m_new

    @pl.when(kv == pl.num_programs(2) - 1)
    def _():
        # TODO(synk): m is initialised to -inf; if masking is added later,
        # fully-masked rows need special handling to avoid NaNs.
        if _ON_TPU:
            inv = pl.reciprocal(l_scr[...], approx=True)  # EUP slot, nearly free
        else:
            inv = 1.0 / l_scr[...]
        ctx = acc_scr[...] * inv                          # (H, tq, dh) f32
        dh = ctx.shape[-1]
        # write the context directly in (tq, H*dh) layout via per-head lane-slice
        # stores -> lane-dense (B, T, D) bf16 output, no XLA-side transpose
        for h in range(heads):
            o_ref[0, :, h * dh:(h + 1) * dh] = ctx[h].astype(o_ref.dtype)


def flash_attention(qkv, *, block_q=256, block_kv=512):
    """qkv: (3, B, H, T, dh) in the MXU dtype.  Returns (B, T, H*dh) context."""
    _, B, H, T, dh = qkv.shape
    D = H * dh
    scale = 1.0 / math.sqrt(dh)
    tq = _pick_tile(T, block_q, 8)
    tkv = _pick_tile(T, block_kv, 8)
    kernel = functools.partial(_flash_kernel, scale=scale, heads=H)
    return pl.pallas_call(
        kernel,
        out_shape=jax.ShapeDtypeStruct((B, T, D), qkv.dtype),
        grid=(B, T // tq, T // tkv),
        in_specs=[pl.BlockSpec((1, 1, H, tq, dh), lambda b, qi, ki: (0, b, 0, qi, 0)),
                  pl.BlockSpec((1, 1, H, tkv, dh), lambda b, qi, ki: (1, b, 0, ki, 0)),
                  pl.BlockSpec((1, 1, H, tkv, dh), lambda b, qi, ki: (2, b, 0, ki, 0))],
        out_specs=pl.BlockSpec((1, tq, D), lambda b, qi, ki: (b, qi, 0)),
        scratch_shapes=[pltpu.VMEM((H, tq, 1), jnp.float32),
                        pltpu.VMEM((H, tq, 1), jnp.float32),
                        pltpu.VMEM((H, tq, dh), jnp.float32)],
        compiler_params=pltpu.CompilerParams(
            dimension_semantics=("parallel", "parallel", "arbitrary")),
    )(qkv, qkv, qkv)


# ----------------------------- Encoder forward -------------------------------

def encoder_forward(params, x, *, heads, conv_k, mask=None):
    if mask is not None:
        # TODO(synk): attention mask not implemented (module exercised with mask=None).
        raise NotImplementedError("mask is not supported")
    B, T, D = x.shape
    M = B * T
    dh = D // heads

    # dropout_rate == 0.0 -> identity (eval semantics)
    # pre-norm runs as its own tiled, parallel kernel so the conv kernel can be
    # tiled over channel-group blocks without needing full-row LN stats.
    xn = layernorm(x.reshape(M, D), params["pre_g"], params["pre_b"])
    x = pos_conv_block(xn.reshape(B, T, D), params["conv_w"], params["conv_b"], K=conv_k)

    x2 = x.reshape(M, D)
    for lp in params["layers"]:
        # LN1 fused into the stacked QKV projection, emitted in bf16.
        qkv = ln_linear(x2, lp["ln1_g"], lp["ln1_b"], lp["w_qkv"], lp["b_qkv"])
        # Single bf16 relayout to (3, B, H, T, dh) for the head-batched flash kernel.
        # TODO(synk): this last copy could be folded into the QKV kernel via
        # per-head output BlockSpecs if it ever dominates the profile.
        qkv5 = jnp.transpose(qkv.reshape(B, T, 3, heads, dh), (2, 0, 3, 1, 4))
        ctx = flash_attention(qkv5)                          # (B, T, D) bf16
        x2 = linear_residual(ctx.reshape(M, D), lp["wo"], lp["bo"], x2)
        # LN2 fused into FFN1 (+GELU, bf16 out); FFN2 fused with the residual add.
        h = ln_linear(x2, lp["ln2_g"], lp["ln2_b"], lp["w1"], lp["b1"], act="gelu")
        x2 = linear_residual(h, lp["w2"], lp["b2"], x2)
    out = layernorm(x2, params["post_g"], params["post_b"])
    return out.reshape(B, T, D)


# ----------------------------- params / reference ----------------------------

def grouped_conv_weight(weight, groups):
    # PyTorch Conv1d weight (C_out, C_in_per_group, K) -> (K, groups, C_in_g, C_out_g)
    C_out, C_in_g, K = weight.shape
    out_g = C_out // groups
    w = weight.reshape(groups, out_g, C_in_g, K)     # (g, out_g, in_g, K)
    return jnp.transpose(w, (3, 0, 2, 1))            # (K, g, in_g, out_g)


def init_params(key, n_layers, d_model, d_ff, conv_k, conv_groups):
    D = d_model
    keys = iter(jax.random.split(key, 16 + 16 * n_layers))
    nk = lambda: next(keys)
    dense = lambda i, o: jax.random.normal(nk(), (i, o), jnp.float32) / jnp.sqrt(i)
    vec = lambda n, s=0.05: s * jax.random.normal(nk(), (n,), jnp.float32)

    params = {
        "pre_g": 1.0 + vec(D), "pre_b": vec(D),
        "post_g": 1.0 + vec(D), "post_b": vec(D),
        "conv_b": vec(D),
    }
    # TODO(synk): weight_norm parametrization of the conv folded into a plain weight.
    conv_w = jax.random.normal(nk(), (D, D // conv_groups, conv_k), jnp.float32)
    conv_w = conv_w / jnp.sqrt(float((D // conv_groups) * conv_k))
    params["conv_w"] = grouped_conv_weight(conv_w, conv_groups).astype(_MXU_DTYPE)

    layers = []
    for _ in range(n_layers):
        ln1_g, ln1_b = 1.0 + vec(D), vec(D)
        wq, bq = dense(D, D), vec(D)
        wk, bk = dense(D, D), vec(D)
        wv, bv = dense(D, D), vec(D)
        wo, bo = dense(D, D), vec(D)
        ln2_g, ln2_b = 1.0 + vec(D), vec(D)
        w1, b1 = dense(D, d_ff), vec(d_ff)
        w2, b2 = dense(d_ff, D), vec(D)
        layers.append({
            "ln1_g": ln1_g, "ln1_b": ln1_b,
            "w_qkv": jnp.concatenate([wq, wk, wv], axis=1).astype(_MXU_DTYPE),
            "b_qkv": jnp.concatenate([bq, bk, bv]),
            "wo": wo.astype(_MXU_DTYPE), "bo": bo,
            "ln2_g": ln2_g, "ln2_b": ln2_b,
            "w1": w1.astype(_MXU_DTYPE), "b1": b1,
            "w2": w2.astype(_MXU_DTYPE), "b2": b2,
        })
    params["layers"] = layers
    return params


def ref_forward(params, x, *, heads, conv_k):
    # pure-JAX reference with matching math (MXU-dtype matmul inputs, f32 accumulate)
    def ln(y, g, b, eps=1e-5):
        mu = y.mean(-1, keepdims=True)
        v = ((y - mu) ** 2).mean(-1, keepdims=True)
        return (y - mu) * jax.lax.rsqrt(v + eps) * g + b

    B, T, D = x.shape
    dh = D // heads
    dt = _MXU_DTYPE
    scale = 1.0 / math.sqrt(dh)

    w_conv = params["conv_w"]                        # (K, groups, Cg, Cg)
    K, groups, Cg, _ = w_conv.shape
    xn = ln(x, params["pre_g"], params["pre_b"])
    pad_l = conv_k // 2
    pad_r = conv_k - 1 - pad_l
    xg = xn.reshape(B, T, groups, Cg).astype(dt)
    xp = jnp.pad(xg, ((0, 0), (pad_l, pad_r), (0, 0), (0, 0)))
    pe = jnp.zeros((B, T, groups, Cg), jnp.float32)
    for k in range(conv_k):
        pe = pe + jnp.einsum("btgc,gcd->btgd", xp[:, k:k + T], w_conv[k],
                             preferred_element_type=jnp.float32)
    pe = pe.reshape(B, T, D) + params["conv_b"]
    x = xn + _gelu(pe)

    for lp in params["layers"]:
        h = ln(x, lp["ln1_g"], lp["ln1_b"]).astype(dt)
        qkv = (jnp.einsum("btd,de->bte", h, lp["w_qkv"],
                          preferred_element_type=jnp.float32) + lp["b_qkv"]).astype(dt)
        qkv = qkv.reshape(B, T, 3, heads, dh)
        q = qkv[:, :, 0].transpose(0, 2, 1, 3)
        kk = qkv[:, :, 1].transpose(0, 2, 1, 3)
        v = qkv[:, :, 2].transpose(0, 2, 1, 3)
        s = jnp.einsum("bhqd,bhkd->bhqk", q, kk,
                       preferred_element_type=jnp.float32) * scale
        m = jnp.max(s, axis=-1, keepdims=True)
        p = jnp.exp(s - m)
        l = jnp.sum(p, axis=-1, keepdims=True)
        ctx = jnp.einsum("bhqk,bhkd->bhqd", p.astype(dt), v,
                         preferred_element_type=jnp.float32) / l
        ctx = ctx.transpose(0, 2, 1, 3).reshape(B, T, D).astype(dt)
        x = x + (jnp.einsum("btd,de->bte", ctx, lp["wo"],
                            preferred_element_type=jnp.float32) + lp["bo"])
        h2 = ln(x, lp["ln2_g"], lp["ln2_b"]).astype(dt)
        h2 = _gelu(jnp.einsum("btd,df->btf", h2, lp["w1"],
                              preferred_element_type=jnp.float32) + lp["b1"]).astype(dt)
        x = x + (jnp.einsum("btf,fd->btd", h2, lp["w2"],
                            preferred_element_type=jnp.float32) + lp["b2"])
    return ln(x, params["post_g"], params["post_b"])


# ----------------------------- main ------------------------------------------

if __name__ == "__main__":
    B, T, D = 2, 8, 32          # batch, sequence, d_model (toy; real D is a multiple of 128)
    HEADS, N_LAYERS = 4, 2
    D_FF = 4 * D
    CONV_K, CONV_GROUPS = 4, 4  # small stand-in for the usual (128, 16)

    root = jax.random.PRNGKey(0)
    k_par, k_x = jax.random.split(root)
    params = init_params(k_par, N_LAYERS, D, D_FF, CONV_K, CONV_GROUPS)
    x = jax.random.normal(k_x, (B, T, D), jnp.float32)

    fwd = jax.jit(functools.partial(encoder_forward, heads=HEADS, conv_k=CONV_K))
    out = jax.block_until_ready(fwd(params, x))
    assert out.shape == (B, T, D) and out.dtype == jnp.float32

    ref = jax.block_until_ready(ref_forward(params, x, heads=HEADS, conv_k=CONV_K))
    max_err = float(jnp.max(jnp.abs(out - ref)))
    assert bool(jnp.allclose(out, ref, atol=2e-2, rtol=2e-2)), (
        f"mismatch vs JAX reference (max abs err {max_err})")

    print("KERNEL_OK")
</pallas_src>

<mosaic_0001>
module attributes {stable_mosaic.version = 11 : i64} {
  func.func @_layernorm_kernel(%arg0: i32, %arg1: memref<16x32xf32, #tpu.memory_space<vmem>>, %arg2: memref<1x32xf32, #tpu.memory_space<vmem>>, %arg3: memref<1x32xf32, #tpu.memory_space<vmem>>, %arg4: memref<16x32xf32, #tpu.memory_space<vmem>>) attributes {dimension_semantics = [#tpu.dimension_semantics<parallel>], iteration_bounds = array<i64: 1>, scalar_prefetch = 0 : i64, scratch_operands = 0 : i64, tpu.core_type = #tpu.core_type<tc>, window_params = [{transform_indices = @transform_0, window_bounds = array<i64: 16, 32>}, {pipeline_mode = #tpu.pipeline_mode<synchronous>, transform_indices = @transform_1, window_bounds = array<i64: 1, 32>}, {pipeline_mode = #tpu.pipeline_mode<synchronous>, transform_indices = @transform_2, window_bounds = array<i64: 1, 32>}, {transform_indices = @transform_3, window_bounds = array<i64: 16, 32>}]} {
    %c0 = arith.constant 0 : index
    %c0_0 = arith.constant 0 : index
    %0 = vector.load %arg1[%c0, %c0_0] : memref<16x32xf32, #tpu.memory_space<vmem>>, vector<16x32xf32>
    %cst = arith.constant dense<0.000000e+00> : vector<16xf32>
    %1 = vector.multi_reduction <add>, %0, %cst [1] : vector<16x32xf32> to vector<16xf32>
    %2 = vector.shape_cast %1 : vector<16xf32> to vector<16x1xf32>
    %cst_1 = arith.constant 3.200000e+01 : f32
    %3 = vector.broadcast %cst_1 : f32 to vector<16x1xf32>
    %4 = arith.divf %2, %3 : vector<16x1xf32>
    %5 = vector.broadcast %4 : vector<16x1xf32> to vector<16x32xf32>
    %6 = arith.subf %0, %5 : vector<16x32xf32>
    %7 = arith.mulf %6, %6 : vector<16x32xf32>
    %cst_2 = arith.constant dense<0.000000e+00> : vector<16xf32>
    %8 = vector.multi_reduction <add>, %7, %cst_2 [1] : vector<16x32xf32> to vector<16xf32>
    %9 = vector.shape_cast %8 : vector<16xf32> to vector<16x1xf32>
    %cst_3 = arith.constant 3.200000e+01 : f32
    %10 = vector.broadcast %cst_3 : f32 to vector<16x1xf32>
    %11 = arith.divf %9, %10 : vector<16x1xf32>
    %cst_4 = arith.constant 9.99999974E-6 : f32
    %12 = vector.broadcast %cst_4 : f32 to vector<16x1xf32>
    %13 = arith.addf %11, %12 : vector<16x1xf32>
    %14 = math.rsqrt %13 : vector<16x1xf32>
    %15 = vector.broadcast %14 : vector<16x1xf32> to vector<16x32xf32>
    %16 = arith.mulf %6, %15 : vector<16x32xf32>
    %c0_5 = arith.constant 0 : index
    %c0_6 = arith.constant 0 : index
    %17 = vector.load %arg2[%c0_5, %c0_6] : memref<1x32xf32, #tpu.memory_space<vmem>>, vector<1x32xf32>
    %18 = vector.broadcast %17 : vector<1x32xf32> to vector<16x32xf32>
    %19 = arith.mulf %16, %18 : vector<16x32xf32>
    %c0_7 = arith.constant 0 : index
    %c0_8 = arith.constant 0 : index
    %20 = vector.load %arg3[%c0_7, %c0_8] : memref<1x32xf32, #tpu.memory_space<vmem>>, vector<1x32xf32>
    %21 = vector.broadcast %20 : vector<1x32xf32> to vector<16x32xf32>
    %22 = arith.addf %19, %21 : vector<16x32xf32>
    %c0_9 = arith.constant 0 : index
    %c0_10 = arith.constant 0 : index
    %23 = vector.load %arg4[%c0_9, %c0_10] : memref<16x32xf32, #tpu.memory_space<vmem>>, vector<16x32xf32>
    tpu.vector_store %arg4[%c0_9, %c0_10], %22 {strides = array<i32>} : memref<16x32xf32, #tpu.memory_space<vmem>>, vector<16x32xf32>,
    return
  }
  func.func @transform_0(%arg0: i32) -> (i32, i32) {
    %c0_i32 = arith.constant 0 : i32
    %c0_i32_0 = arith.constant 0 : i32
    return %arg0, %c0_i32 : i32, i32
  }
  func.func @transform_1(%arg0: i32) -> (i32, i32) {
    %c0_i32 = arith.constant 0 : i32
    %c0_i32_0 = arith.constant 0 : i32
    %c0_i32_1 = arith.constant 0 : i32
    return %c0_i32, %c0_i32_0 : i32, i32
  }
  func.func @transform_2(%arg0: i32) -> (i32, i32) {
    %c0_i32 = arith.constant 0 : i32
    %c0_i32_0 = arith.constant 0 : i32
    %c0_i32_1 = arith.constant 0 : i32
    return %c0_i32, %c0_i32_0 : i32, i32
  }
  func.func @transform_3(%arg0: i32) -> (i32, i32) {
    %c0_i32 = arith.constant 0 : i32
    %c0_i32_0 = arith.constant 0 : i32
    return %arg0, %c0_i32 : i32, i32
  }
}

module attributes {stable_mosaic.version = 11 : i64} {
  func.func @_ln_linear_kernel(%arg0: i32, %arg1: i32, %arg2: memref<16x32xf32, #tpu.memory_space<vmem>>, %arg3: memref<1x32xf32, #tpu.memory_space<vmem>>, %arg4: memref<1x32xf32, #tpu.memory_space<vmem>>, %arg5: memref<32x96xf32, #tpu.memory_space<vmem>>, %arg6: memref<1x96xf32, #tpu.memory_space<vmem>>, %arg7: memref<16x96xf32, #tpu.memory_space<vmem>>) attributes {dimension_semantics = [#tpu.dimension_semantics<parallel>, #tpu.dimension_semantics<parallel>], iteration_bounds = array<i64: 1, 1>, scalar_prefetch = 0 : i64, scratch_operands = 0 : i64, tpu.core_type = #tpu.core_type<tc>, window_params = [{transform_indices = @transform_0, window_bounds = array<i64: 16, 32>}, {pipeline_mode = #tpu.pipeline_mode<synchronous>, transform_indices = @transform_1, window_bounds = array<i64: 1, 32>}, {pipeline_mode = #tpu.pipeline_mode<synchronous>, transform_indices = @transform_2, window_bounds = array<i64: 1, 32>}, {transform_indices = @transform_3, window_bounds = array<i64: 32, 96>}, {transform_indices = @transform_4, window_bounds = array<i64: 1, 96>}, {transform_indices = @transform_5, window_bounds = array<i64: 16, 96>}]} {
    %c0 = arith.constant 0 : index
    %c0_0 = arith.constant 0 : index
    %0 = vector.load %arg2[%c0, %c0_0] : memref<16x32xf32, #tpu.memory_space<vmem>>, vector<16x32xf32>
    %cst = arith.constant dense<0.000000e+00> : vector<16xf32>
    %1 = vector.multi_reduction <add>, %0, %cst [1] : vector<16x32xf32> to vector<16xf32>
    %2 = vector.shape_cast %1 : vector<16xf32> to vector<16x1xf32>
    %cst_1 = arith.constant 3.200000e+01 : f32
    %3 = vector.broadcast %cst_1 : f32 to vector<16x1xf32>
    %4 = arith.divf %2, %3 : vector<16x1xf32>
    %5 = vector.broadcast %4 : vector<16x1xf32> to vector<16x32xf32>
    %6 = arith.subf %0, %5 : vector<16x32xf32>
    %7 = arith.mulf %6, %6 : vector<16x32xf32>
    %cst_2 = arith.constant dense<0.000000e+00> : vector<16xf32>
    %8 = vector.multi_reduction <add>, %7, %cst_2 [1] : vector<16x32xf32> to vector<16xf32>
    %9 = vector.shape_cast %8 : vector<16xf32> to vector<16x1xf32>
    %cst_3 = arith.constant 3.200000e+01 : f32
    %10 = vector.broadcast %cst_3 : f32 to vector<16x1xf32>
    %11 = arith.divf %9, %10 : vector<16x1xf32>
    %cst_4 = arith.constant 9.99999974E-6 : f32
    %12 = vector.broadcast %cst_4 : f32 to vector<16x1xf32>
    %13 = arith.addf %11, %12 : vector<16x1xf32>
    %14 = math.rsqrt %13 : vector<16x1xf32>
    %15 = vector.broadcast %14 : vector<16x1xf32> to vector<16x32xf32>
    %16 = arith.mulf %6, %15 : vector<16x32xf32>
    %c0_5 = arith.constant 0 : index
    %c0_6 = arith.constant 0 : index
    %17 = vector.load %arg3[%c0_5, %c0_6] : memref<1x32xf32, #tpu.memory_space<vmem>>, vector<1x32xf32>
    %18 = vector.broadcast %17 : vector<1x32xf32> to vector<16x32xf32>
    %19 = arith.mulf %16, %18 : vector<16x32xf32>
    %c0_7 = arith.constant 0 : index
    %c0_8 = arith.constant 0 : index
    %20 = vector.load %arg4[%c0_7, %c0_8] : memref<1x32xf32, #tpu.memory_space<vmem>>, vector<1x32xf32>
    %21 = vector.broadcast %20 : vector<1x32xf32> to vector<16x32xf32>
    %22 = arith.addf %19, %21 : vector<16x32xf32>
    %c0_9 = arith.constant 0 : index
    %c0_10 = arith.constant 0 : index
    %23 = vector.load %arg5[%c0_9, %c0_10] : memref<32x96xf32, #tpu.memory_space<vmem>>, vector<32x96xf32>
    %cst_11 = arith.constant dense<0.000000e+00> : vector<16x96xf32>
    %24 = tpu.matmul %22, %23, %cst_11 {dimension_numbers = #tpu.dot_dimension_numbers<[1], [0], [0], [1], [0, 0, 1, 1], [], []>} : vector<16x32xf32>, vector<32x96xf32>, vector<16x96xf32> -> vector<16x96xf32>
    %c0_12 = arith.constant 0 : index
    %c0_13 = arith.constant 0 : index
    %25 = vector.load %arg6[%c0_12, %c0_13] : memref<1x96xf32, #tpu.memory_space<vmem>>, vector<1x96xf32>
    %26 = vector.broadcast %25 : vector<1x96xf32> to vector<16x96xf32>
    %27 = arith.addf %24, %26 : vector<16x96xf32>
    %c0_14 = arith.constant 0 : index
    %c0_15 = arith.constant 0 : index
    %28 = vector.load %arg7[%c0_14, %c0_15] : memref<16x96xf32, #tpu.memory_space<vmem>>, vector<16x96xf32>
    tpu.vector_store %arg7[%c0_14, %c0_15], %27 {strides = array<i32>} : memref<16x96xf32, #tpu.memory_space<vmem>>, vector<16x96xf32>,
    return
  }
  func.func @transform_0(%arg0: i32, %arg1: i32) -> (i32, i32) {
    %c0_i32 = arith.constant 0 : i32
    %c0_i32_0 = arith.constant 0 : i32
    return %arg0, %c0_i32 : i32, i32
  }
  func.func @transform_1(%arg0: i32, %arg1: i32) -> (i32, i32) {
    %c0_i32 = arith.constant 0 : i32
    %c0_i32_0 = arith.constant 0 : i32
    %c0_i32_1 = arith.constant 0 : i32
    return %c0_i32, %c0_i32_0 : i32, i32
  }
  func.func @transform_2(%arg0: i32, %arg1: i32) -> (i32, i32) {
    %c0_i32 = arith.constant 0 : i32
    %c0_i32_0 = arith.constant 0 : i32
    %c0_i32_1 = arith.constant 0 : i32
    return %c0_i32, %c0_i32_0 : i32, i32
  }
  func.func @transform_3(%arg0: i32, %arg1: i32) -> (i32, i32) {
    %c0_i32 = arith.constant 0 : i32
    %c0_i32_0 = arith.constant 0 : i32
    return %c0_i32, %arg1 : i32, i32
  }
  func.func @transform_4(%arg0: i32, %arg1: i32) -> (i32, i32) {
    %c0_i32 = arith.constant 0 : i32
    %c0_i32_0 = arith.constant 0 : i32
    return %c0_i32, %arg1 : i32, i32
  }
  func.func @transform_5(%arg0: i32, %arg1: i32) -> (i32, i32) {
    %c0_i32 = arith.constant 0 : i32
    return %arg0, %arg1 : i32, i32
  }
}

module attributes {stable_mosaic.version = 11 : i64} {
  func.func @_posconv_kernel(%arg0: i32, %arg1: i32, %arg2: memref<1x8x32xf32, #tpu.memory_space<vmem>>, %arg3: memref<1x4x32x8xf32, #tpu.memory_space<vmem>>, %arg4: memref<1x32xf32, #tpu.memory_space<vmem>>, %arg5: memref<1x8x32xf32, #tpu.memory_space<vmem>>, %arg6: memref<4x11x8xf32, #tpu.memory_space<vmem>>, %arg7: memref<4x8x32xf32, #tpu.memory_space<vmem>>, %arg8: memref<4x8x8xf32, #tpu.memory_space<vmem>>) attributes {dimension_semantics = [#tpu.dimension_semantics<parallel>, #tpu.dimension_semantics<parallel>], iteration_bounds = array<i64: 2, 1>, scalar_prefetch = 0 : i64, scratch_operands = 3 : i64, tpu.core_type = #tpu.core_type<tc>, window_params = [{transform_indices = @transform_0, window_bounds = array<i64: 1, 8, 32>}, {transform_indices = @transform_1, window_bounds = array<i64: 1, 4, 32, 8>}, {transform_indices = @transform_2, window_bounds = array<i64: 1, 32>}, {transform_indices = @transform_3, window_bounds = array<i64: 1, 8, 32>}]} {
    %c0 = arith.constant 0 : index
    %c0_0 = arith.constant 0 : index
    %c0_1 = arith.constant 0 : index
    %0 = vector.load %arg2[%c0, %c0_0, %c0_1] : memref<1x8x32xf32, #tpu.memory_space<vmem>>, vector<1x8x32xf32>
    %1 = vector.shape_cast %0 : vector<1x8x32xf32> to vector<8x32xf32>
    %cst = arith.constant 0.000000e+00 : f32
    %2 = vector.broadcast %cst : f32 to vector<4x2x8xf32>
    %c0_2 = arith.constant 0 : index
    %c0_3 = arith.constant 0 : index
    %c0_4 = arith.constant 0 : index
    %3 = vector.load %arg6[%c0_2, %c0_3, %c0_4] : memref<4x11x8xf32, #tpu.memory_space<vmem>>, vector<4x2x8xf32>
    tpu.vector_store %arg6[%c0_2, %c0_3, %c0_4], %2 {strides = array<i32>} : memref<4x11x8xf32, #tpu.memory_space<vmem>>, vector<4x2x8xf32>,
    %cst_5 = arith.constant 0.000000e+00 : f32
    %4 = vector.broadcast %cst_5 : f32 to vector<4x1x8xf32>
    %c0_6 = arith.constant 0 : index
    %c10 = arith.constant 10 : index
    %c0_7 = arith.constant 0 : index
    %5 = vector.load %arg6[%c0_6, %c10, %c0_7] : memref<4x11x8xf32, #tpu.memory_space<vmem>>, vector<4x1x8xf32>
    tpu.vector_store %arg6[%c0_6, %c10, %c0_7], %4 {strides = array<i32>} : memref<4x11x8xf32, #tpu.memory_space<vmem>>, vector<4x1x8xf32>,
    %6 = vector.extract_strided_slice %1 {offsets = [0, 0], sizes = [8, 8], strides = [1, 1]} : vector<8x32xf32> to vector<8x8xf32>
    %c0_8 = arith.constant 0 : index
    %c2 = arith.constant 2 : index
    %c0_9 = arith.constant 0 : index
    %7 = vector.load %arg6[%c0_8, %c2, %c0_9] : memref<4x11x8xf32, #tpu.memory_space<vmem>>, vector<1x8x8xf32>
    %8 = vector.shape_cast %7 : vector<1x8x8xf32> to vector<8x8xf32>
    %9 = vector.shape_cast %6 : vector<8x8xf32> to vector<1x8x8xf32>
    tpu.vector_store %arg6[%c0_8, %c2, %c0_9], %9 {strides = array<i32>} : memref<4x11x8xf32, #tpu.memory_space<vmem>>, vector<1x8x8xf32>,
    %10 = vector.extract_strided_slice %1 {offsets = [0, 8], sizes = [8, 8], strides = [1, 1]} : vector<8x32xf32> to vector<8x8xf32>
    %c1 = arith.constant 1 : index
    %c2_10 = arith.constant 2 : index
    %c0_11 = arith.constant 0 : index
    %11 = vector.load %arg6[%c1, %c2_10, %c0_11] : memref<4x11x8xf32, #tpu.memory_space<vmem>>, vector<1x8x8xf32>
    %12 = vector.shape_cast %11 : vector<1x8x8xf32> to vector<8x8xf32>
    %13 = vector.shape_cast %10 : vector<8x8xf32> to vector<1x8x8xf32>
    tpu.vector_store %arg6[%c1, %c2_10, %c0_11], %13 {strides = array<i32>} : memref<4x11x8xf32, #tpu.memory_space<vmem>>, vector<1x8x8xf32>,
    %14 = vector.extract_strided_slice %1 {offsets = [0, 16], sizes = [8, 8], strides = [1, 1]} : vector<8x32xf32> to vector<8x8xf32>
    %c2_12 = arith.constant 2 : index
    %c2_13 = arith.constant 2 : index
    %c0_14 = arith.constant 0 : index
    %15 = vector.load %arg6[%c2_12, %c2_13, %c0_14] : memref<4x11x8xf32, #tpu.memory_space<vmem>>, vector<1x8x8xf32>
    %16 = vector.shape_cast %15 : vector<1x8x8xf32> to vector<8x8xf32>
    %17 = vector.shape_cast %14 : vector<8x8xf32> to vector<1x8x8xf32>
    tpu.vector_store %arg6[%c2_12, %c2_13, %c0_14], %17 {strides = array<i32>} : memref<4x11x8xf32, #tpu.memory_space<vmem>>, vector<1x8x8xf32>,
    %18 = vector.extract_strided_slice %1 {offsets = [0, 24], sizes = [8, 8], strides = [1, 1]} : vector<8x32xf32> to vector<8x8xf32>
    %c3 = arith.constant 3 : index
    %c2_15 = arith.constant 2 : index
    %c0_16 = arith.constant 0 : index
    %19 = vector.load %arg6[%c3, %c2_15, %c0_16] : memref<4x11x8xf32, #tpu.memory_space<vmem>>, vector<1x8x8xf32>
    %20 = vector.shape_cast %19 : vector<1x8x8xf32> to vector<8x8xf32>
    %21 = vector.shape_cast %18 : vector<8x8xf32> to vector<1x8x8xf32>
    tpu.vector_store %arg6[%c3, %c2_15, %c0_16], %21 {strides = array<i32>} : memref<4x11x8xf32, #tpu.memory_space<vmem>>, vector<1x8x8xf32>,
    %c0_i32 = arith.constant 0 : i32
    %c8_i32 = arith.constant 8 : i32
    %22 = arith.muli %c0_i32, %c8_i32 : i32
    %23 = tpu.assume_multiple %22, 8 : i32
    %cst_17 = arith.constant 0.000000e+00 : f32
    %24 = vector.broadcast %cst_17 : f32 to vector<4x8x8xf32>
    %c0_18 = arith.constant 0 : index
    %c0_19 = arith.constant 0 : index
    %c0_20 = arith.constant 0 : index
    %25 = vector.load %arg8[%c0_18, %c0_19, %c0_20] : memref<4x8x8xf32, #tpu.memory_space<vmem>>, vector<4x8x8xf32>
    tpu.vector_store %arg8[%c0_18, %c0_19, %c0_20], %24 {strides = array<i32>} : memref<4x8x8xf32, #tpu.memory_space<vmem>>, vector<4x8x8xf32>,
    %c0_i32_21 = arith.constant 0 : i32
    %c4_i32 = arith.constant 4 : i32
    %26 = arith.muli %c0_i32_21, %c4_i32 : i32
    %27 = arith.addi %23, %26 : i32
    %c0_i32_22 = arith.constant 0 : i32
    %28 = arith.addi %27, %c0_i32_22 : i32
    %c0_23 = arith.constant 0 : index
    %29 = arith.index_cast %28 : i32 to index
    %c0_24 = arith.constant 0 : index
    %30 = vector.load %arg6[%c0_23, %29, %c0_24] : memref<4x11x8xf32, #tpu.memory_space<vmem>>, vector<4x8x8xf32>
    %c0_25 = arith.constant 0 : index
    %c0_26 = arith.constant 0 : index
    %c0_27 = arith.constant 0 : index
    %31 = vector.load %arg7[%c0_25, %c0_26, %c0_27] : memref<4x8x32xf32, #tpu.memory_space<vmem>>, vector<4x8x8xf32>
    tpu.vector_store %arg7[%c0_25, %c0_26, %c0_27], %30 {strides = array<i32>} : memref<4x8x32xf32, #tpu.memory_space<vmem>>, vector<4x8x8xf32>,
    %c1_i32 = arith.constant 1 : i32
    %32 = arith.addi %27, %c1_i32 : i32
    %c0_28 = arith.constant 0 : index
    %33 = arith.index_cast %32 : i32 to index
    %c0_29 = arith.constant 0 : index
    %34 = vector.load %arg6[%c0_28, %33, %c0_29] : memref<4x11x8xf32, #tpu.memory_space<vmem>>, vector<4x8x8xf32>
    %c0_30 = arith.constant 0 : index
    %c0_31 = arith.constant 0 : index
    %c8 = arith.constant 8 : index
    %35 = vector.load %arg7[%c0_30, %c0_31, %c8] : memref<4x8x32xf32, #tpu.memory_space<vmem>>, vector<4x8x8xf32>
    tpu.vector_store %arg7[%c0_30, %c0_31, %c8], %34 {strides = array<i32>} : memref<4x8x32xf32, #tpu.memory_space<vmem>>, vector<4x8x8xf32>,
    %c2_i32 = arith.constant 2 : i32
    %36 = arith.addi %27, %c2_i32 : i32
    %c0_32 = arith.constant 0 : index
    %37 = arith.index_cast %36 : i32 to index
    %c0_33 = arith.constant 0 : index
    %38 = vector.load %arg6[%c0_32, %37, %c0_33] : memref<4x11x8xf32, #tpu.memory_space<vmem>>, vector<4x8x8xf32>
    %c0_34 = arith.constant 0 : index
    %c0_35 = arith.constant 0 : index
    %c16 = arith.constant 16 : index
    %39 = vector.load %arg7[%c0_34, %c0_35, %c16] : memref<4x8x32xf32, #tpu.memory_space<vmem>>, vector<4x8x8xf32>
    tpu.vector_store %arg7[%c0_34, %c0_35, %c16], %38 {strides = array<i32>} : memref<4x8x32xf32, #tpu.memory_space<vmem>>, vector<4x8x8xf32>,
    %c3_i32 = arith.constant 3 : i32
    %40 = arith.addi %27, %c3_i32 : i32
    %c0_36 = arith.constant 0 : index
    %41 = arith.index_cast %40 : i32 to index
    %c0_37 = arith.constant 0 : index
    %42 = vector.load %arg6[%c0_36, %41, %c0_37] : memref<4x11x8xf32, #tpu.memory_space<vmem>>, vector<4x8x8xf32>
    %c0_38 = arith.constant 0 : index
    %c0_39 = arith.constant 0 : index
    %c24 = arith.constant 24 : index
    %43 = vector.load %arg7[%c0_38, %c0_39, %c24] : memref<4x8x32xf32, #tpu.memory_space<vmem>>, vector<4x8x8xf32>
    tpu.vector_store %arg7[%c0_38, %c0_39, %c24], %42 {strides = array<i32>} : memref<4x8x32xf32, #tpu.memory_space<vmem>>, vector<4x8x8xf32>,
    %c0_40 = arith.constant 0 : index
    %c0_41 = arith.constant 0 : index
    %c0_42 = arith.constant 0 : index
    %44 = vector.load %arg8[%c0_40, %c0_41, %c0_42] : memref<4x8x8xf32, #tpu.memory_space<vmem>>, vector<4x8x8xf32>
    %c0_43 = arith.constant 0 : index
    %c0_44 = arith.constant 0 : index
    %c0_45 = arith.constant 0 : index
    %45 = vector.load %arg7[%c0_43, %c0_44, %c0_45] : memref<4x8x32xf32, #tpu.memory_space<vmem>>, vector<4x8x32xf32>
    %46 = arith.index_cast %c0_i32_21 : i32 to index
    %c0_46 = arith.constant 0 : index
    %c0_47 = arith.constant 0 : index
    %c0_48 = arith.constant 0 : index
    %47 = vector.load %arg3[%46, %c0_46, %c0_47, %c0_48] : memref<1x4x32x8xf32, #tpu.memory_space<vmem>>, vector<1x4x32x8xf32>
    %48 = vector.shape_cast %47 : vector<1x4x32x8xf32> to vector<4x32x8xf32>
    %cst_49 = arith.constant dense<0.000000e+00> : vector<4x8x8xf32>
    %49 = tpu.matmul %45, %48, %cst_49 {dimension_numbers = #tpu.dot_dimension_numbers<[2], [1], [1], [2], [0, 0, 0, 1, 1, 2], [0], [0]>} : vector<4x8x32xf32>, vector<4x32x8xf32>, vector<4x8x8xf32> -> vector<4x8x8xf32>
    %50 = arith.addf %44, %49 : vector<4x8x8xf32>
    %c0_50 = arith.constant 0 : index
    %c0_51 = arith.constant 0 : index
    %c0_52 = arith.constant 0 : index
    %51 = vector.load %arg8[%c0_50, %c0_51, %c0_52] : memref<4x8x8xf32, #tpu.memory_space<vmem>>, vector<4x8x8xf32>
    tpu.vector_store %arg8[%c0_50, %c0_51, %c0_52], %50 {strides = array<i32>} : memref<4x8x8xf32, #tpu.memory_space<vmem>>, vector<4x8x8xf32>,
    %c1_i32_53 = arith.constant 1 : i32
    %c0_54 = arith.constant 0 : index
    %c0_55 = arith.constant 0 : index
    %c0_56 = arith.constant 0 : index
    %52 = vector.load %arg8[%c0_54, %c0_55, %c0_56] : memref<4x8x8xf32, #tpu.memory_space<vmem>>, vector<1x8x8xf32>
    %53 = vector.shape_cast %52 : vector<1x8x8xf32> to vector<8x8xf32>
    %c0_57 = arith.constant 0 : index
    %c0_58 = arith.constant 0 : index
    %54 = vector.load %arg4[%c0_57, %c0_58] : memref<1x32xf32, #tpu.memory_space<vmem>>, vector<1x8xf32>
    %55 = vector.broadcast %54 : vector<1x8xf32> to vector<8x8xf32>
    %56 = arith.addf %53, %55 : vector<8x8xf32>
    %c0_59 = arith.constant 0 : index
    %57 = arith.index_cast %23 : i32 to index
    %c0_60 = arith.constant 0 : index
    %58 = vector.load %arg2[%c0_59, %57, %c0_60] : memref<1x8x32xf32, #tpu.memory_space<vmem>>, vector<1x8x8xf32>
    %59 = vector.shape_cast %58 : vector<1x8x8xf32> to vector<8x8xf32>
    %cst_61 = arith.constant 5.000000e-01 : f32
    %60 = vector.broadcast %cst_61 : f32 to vector<8x8xf32>
    %61 = arith.mulf %60, %56 : vector<8x8xf32>
    %cst_62 = arith.constant 4.471500e-02 : f32
    %62 = vector.broadcast %cst_62 : f32 to vector<8x8xf32>
    %63 = arith.mulf %62, %56 : vector<8x8xf32>
    %64 = arith.mulf %63, %56 : vector<8x8xf32>
    %65 = arith.mulf %64, %56 : vector<8x8xf32>
    %66 = arith.addf %56, %65 : vector<8x8xf32>
    %cst_63 = arith.constant 0.797884583 : f32
    %67 = vector.broadcast %cst_63 : f32 to vector<8x8xf32>
    %68 = arith.mulf %67, %66 : vector<8x8xf32>
    %69 = math.tanh %68 : vector<8x8xf32>
    %cst_64 = arith.constant 1.000000e+00 : f32
    %70 = vector.broadcast %cst_64 : f32 to vector<8x8xf32>
    %71 = arith.addf %70, %69 : vector<8x8xf32>
    %72 = arith.mulf %61, %71 : vector<8x8xf32>
    %73 = arith.addf %59, %72 : vector<8x8xf32>
    %c0_65 = arith.constant 0 : index
    %74 = arith.index_cast %23 : i32 to index
    %c0_66 = arith.constant 0 : index
    %75 = vector.load %arg5[%c0_65, %74, %c0_66] : memref<1x8x32xf32, #tpu.memory_space<vmem>>, vector<1x8x8xf32>
    %76 = vector.shape_cast %75 : vector<1x8x8xf32> to vector<8x8xf32>
    %77 = vector.shape_cast %73 : vector<8x8xf32> to vector<1x8x8xf32>
    tpu.vector_store %arg5[%c0_65, %74, %c0_66], %77 {strides = array<i32>} : memref<1x8x32xf32, #tpu.memory_space<vmem>>, vector<1x8x8xf32>,
    %c1_67 = arith.constant 1 : index
    %c0_68 = arith.constant 0 : index
    %c0_69 = arith.constant 0 : index
    %78 = vector.load %arg8[%c1_67, %c0_68, %c0_69] : memref<4x8x8xf32, #tpu.memory_space<vmem>>, vector<1x8x8xf32>
    %79 = vector.shape_cast %78 : vector<1x8x8xf32> to vector<8x8xf32>
    %c0_70 = arith.constant 0 : index
    %c8_71 = arith.constant 8 : index
    %80 = vector.load %arg4[%c0_70, %c8_71] : memref<1x32xf32, #tpu.memory_space<vmem>>, vector<1x8xf32>
    %81 = vector.broadcast %80 : vector<1x8xf32> to vector<8x8xf32>
    %82 = arith.addf %79, %81 : vector<8x8xf32>
    %c0_72 = arith.constant 0 : index
    %83 = arith.index_cast %23 : i32 to index
    %c8_73 = arith.constant 8 : index
    %84 = vector.load %arg2[%c0_72, %83, %c8_73] : memref<1x8x32xf32, #tpu.memory_space<vmem>>, vector<1x8x8xf32>
    %85 = vector.shape_cast %84 : vector<1x8x8xf32> to vector<8x8xf32>
    %cst_74 = arith.constant 5.000000e-01 : f32
    %86 = vector.broadcast %cst_74 : f32 to vector<8x8xf32>
    %87 = arith.mulf %86, %82 : vector<8x8xf32>
    %cst_75 = arith.constant 4.471500e-02 : f32
    %88 = vector.broadcast %cst_75 : f32 to vector<8x8xf32>
    %89 = arith.mulf %88, %82 : vector<8x8xf32>
    %90 = arith.mulf %89, %82 : vector<8x8xf32>
    %91 = arith.mulf %90, %82 : vector<8x8xf32>
    %92 = arith.addf %82, %91 : vector<8x8xf32>
    %cst_76 = arith.constant 0.797884583 : f32
    %93 = vector.broadcast %cst_76 : f32 to vector<8x8xf32>
    %94 = arith.mulf %93, %92 : vector<8x8xf32>
    %95 = math.tanh %94 : vector<8x8xf32>
    %cst_77 = arith.constant 1.000000e+00 : f32
    %96 = vector.broadcast %cst_77 : f32 to vector<8x8xf32>
    %97 = arith.addf %96, %95 : vector<8x8xf32>
    %98 = arith.mulf %87, %97 : vector<8x8xf32>
    %99 = arith.addf %85, %98 : vector<8x8xf32>
    %c0_78 = arith.constant 0 : index
    %100 = arith.index_cast %23 : i32 to index
    %c8_79 = arith.constant 8 : index
    %101 = vector.load %arg5[%c0_78, %100, %c8_79] : memref<1x8x32xf32, #tpu.memory_space<vmem>>, vector<1x8x8xf32>
    %102 = vector.shape_cast %101 : vector<1x8x8xf32> to vector<8x8xf32>
    %103 = vector.shape_cast %99 : vector<8x8xf32> to vector<1x8x8xf32>
    tpu.vector_store %arg5[%c0_78, %100, %c8_79], %103 {strides = array<i32>} : memref<1x8x32xf32, #tpu.memory_space<vmem>>, vector<1x8x8xf32>,
    %c2_80 = arith.constant 2 : index
    %c0_81 = arith.constant 0 : index
    %c0_82 = arith.constant 0 : index
    %104 = vector.load %arg8[%c2_80, %c0_81, %c0_82] : memref<4x8x8xf32, #tpu.memory_space<vmem>>, vector<1x8x8xf32>
    %105 = vector.shape_cast %104 : vector<1x8x8xf32> to vector<8x8xf32>
    %c0_83 = arith.constant 0 : index
    %c16_84 = arith.constant 16 : index
    %106 = vector.load %arg4[%c0_83, %c16_84] : memref<1x32xf32, #tpu.memory_space<vmem>>, vector<1x8xf32>
    %107 = vector.broadcast %106 : vector<1x8xf32> to vector<8x8xf32>
    %108 = arith.addf %105, %107 : vector<8x8xf32>
    %c0_85 = arith.constant 0 : index
    %109 = arith.index_cast %23 : i32 to index
    %c16_86 = arith.constant 16 : index
    %110 = vector.load %arg2[%c0_85, %109, %c16_86] : memref<1x8x32xf32, #tpu.memory_space<vmem>>, vector<1x8x8xf32>
    %111 = vector.shape_cast %110 : vector<1x8x8xf32> to vector<8x8xf32>
    %cst_87 = arith.constant 5.000000e-01 : f32
    %112 = vector.broadcast %cst_87 : f32 to vector<8x8xf32>
    %113 = arith.mulf %112, %108 : vector<8x8xf32>
    %cst_88 = arith.constant 4.471500e-02 : f32
    %114 = vector.broadcast %cst_88 : f32 to vector<8x8xf32>
    %115 = arith.mulf %114, %108 : vector<8x8xf32>
    %116 = arith.mulf %115, %108 : vector<8x8xf32>
    %117 = arith.mulf %116, %108 : vector<8x8xf32>
    %118 = arith.addf %108, %117 : vector<8x8xf32>
    %cst_89 = arith.constant 0.797884583 : f32
    %119 = vector.broadcast %cst_89 : f32 to vector<8x8xf32>
    %120 = arith.mulf %119, %118 : vector<8x8xf32>
    %121 = math.tanh %120 : vector<8x8xf32>
    %cst_90 = arith.constant 1.000000e+00 : f32
    %122 = vector.broadcast %cst_90 : f32 to vector<8x8xf32>
    %123 = arith.addf %122, %121 : vector<8x8xf32>
    %124 = arith.mulf %113, %123 : vector<8x8xf32>
    %125 = arith.addf %111, %124 : vector<8x8xf32>
    %c0_91 = arith.constant 0 : index
    %126 = arith.index_cast %23 : i32 to index
    %c16_92 = arith.constant 16 : index
    %127 = vector.load %arg5[%c0_91, %126, %c16_92] : memref<1x8x32xf32, #tpu.memory_space<vmem>>, vector<1x8x8xf32>
    %128 = vector.shape_cast %127 : vector<1x8x8xf32> to vector<8x8xf32>
    %129 = vector.shape_cast %125 : vector<8x8xf32> to vector<1x8x8xf32>
    tpu.vector_store %arg5[%c0_91, %126, %c16_92], %129 {strides = array<i32>} : memref<1x8x32xf32, #tpu.memory_space<vmem>>, vector<1x8x8xf32>,
    %c3_93 = arith.constant 3 : index
    %c0_94 = arith.constant 0 : index
    %c0_95 = arith.constant 0 : index
    %130 = vector.load %arg8[%c3_93, %c0_94, %c0_95] : memref<4x8x8xf32, #tpu.memory_space<vmem>>, vector<1x8x8xf32>
    %131 = vector.shape_cast %130 : vector<1x8x8xf32> to vector<8x8xf32>
    %c0_96 = arith.constant 0 : index
    %c24_97 = arith.constant 24 : index
    %132 = vector.load %arg4[%c0_96, %c24_97] : memref<1x32xf32, #tpu.memory_space<vmem>>, vector<1x8xf32>
    %133 = vector.broadcast %132 : vector<1x8xf32> to vector<8x8xf32>
    %134 = arith.addf %131, %133 : vector<8x8xf32>
    %c0_98 = arith.constant 0 : index
    %135 = arith.index_cast %23 : i32 to index
    %c24_99 = arith.constant 24 : index
    %136 = vector.load %arg2[%c0_98, %135, %c24_99] : memref<1x8x32xf32, #tpu.memory_space<vmem>>, vector<1x8x8xf32>
    %137 = vector.shape_cast %136 : vector<1x8x8xf32> to vector<8x8xf32>
    %cst_100 = arith.constant 5.000000e-01 : f32
    %138 = vector.broadcast %cst_100 : f32 to vector<8x8xf32>
    %139 = arith.mulf %138, %134 : vector<8x8xf32>
    %cst_101 = arith.constant 4.471500e-02 : f32
    %140 = vector.broadcast %cst_101 : f32 to vector<8x8xf32>
    %141 = arith.mulf %140, %134 : vector<8x8xf32>
    %142 = arith.mulf %141, %134 : vector<8x8xf32>
    %143 = arith.mulf %142, %134 : vector<8x8xf32>
    %144 = arith.addf %134, %143 : vector<8x8xf32>
    %cst_102 = arith.constant 0.797884583 : f32
    %145 = vector.broadcast %cst_102 : f32 to vector<8x8xf32>
    %146 = arith.mulf %145, %144 : vector<8x8xf32>
    %147 = math.tanh %146 : vector<8x8xf32>
    %cst_103 = arith.constant 1.000000e+00 : f32
    %148 = vector.broadcast %cst_103 : f32 to vector<8x8xf32>
    %149 = arith.addf %148, %147 : vector<8x8xf32>
    %150 = arith.mulf %139, %149 : vector<8x8xf32>
    %151 = arith.addf %137, %150 : vector<8x8xf32>
    %c0_104 = arith.constant 0 : index
    %152 = arith.index_cast %23 : i32 to index
    %c24_105 = arith.constant 24 : index
    %153 = vector.load %arg5[%c0_104, %152, %c24_105] : memref<1x8x32xf32, #tpu.memory_space<vmem>>, vector<1x8x8xf32>
    %154 = vector.shape_cast %153 : vector<1x8x8xf32> to vector<8x8xf32>
    %155 = vector.shape_cast %151 : vector<8x8xf32> to vector<1x8x8xf32>
    tpu.vector_store %arg5[%c0_104, %152, %c24_105], %155 {strides = array<i32>} : memref<1x8x32xf32, #tpu.memory_space<vmem>>, vector<1x8x8xf32>,
    %c1_i32_106 = arith.constant 1 : i32
    return
  }
  func.func @transform_0(%arg0: i32, %arg1: i32) -> (i32, i32, i32) {
    %c0_i32 = arith.constant 0 : i32
    %c0_i32_0 = arith.constant 0 : i32
    return %arg0, %c0_i32, %arg1 : i32, i32, i32
  }
  func.func @transform_1(%arg0: i32, %arg1: i32) -> (i32, i32, i32, i32) {
    %c0_i32 = arith.constant 0 : i32
    %c0_i32_0 = arith.constant 0 : i32
    %c0_i32_1 = arith.constant 0 : i32
    %c0_i32_2 = arith.constant 0 : i32
    return %c0_i32, %arg1, %c0_i32_0, %c0_i32_1 : i32, i32, i32, i32
  }
  func.func @transform_2(%arg0: i32, %arg1: i32) -> (i32, i32) {
    %c0_i32 = arith.constant 0 : i32
    %c0_i32_0 = arith.constant 0 : i32
    return %c0_i32, %arg1 : i32, i32
  }
  func.func @transform_3(%arg0: i32, %arg1: i32) -> (i32, i32, i32) {
    %c0_i32 = arith.constant 0 : i32
    %c0_i32_0 = arith.constant 0 : i32
    return %arg0, %c0_i32, %arg1 : i32, i32, i32
  }
}

module attributes {stable_mosaic.version = 11 : i64} {
  func.func @_ln_linear_kernel(%arg0: i32, %arg1: i32, %arg2: memref<16x32xf32, #tpu.memory_space<vmem>>, %arg3: memref<1x32xf32, #tpu.memory_space<vmem>>, %arg4: memref<1x32xf32, #tpu.memory_space<vmem>>, %arg5: memref<32x128xf32, #tpu.memory_space<vmem>>, %arg6: memref<1x128xf32, #tpu.memory_space<vmem>>, %arg7: memref<16x128xf32, #tpu.memory_space<vmem>>) attributes {dimension_semantics = [#tpu.dimension_semantics<parallel>, #tpu.dimension_semantics<parallel>], iteration_bounds = array<i64: 1, 1>, scalar_prefetch = 0 : i64, scratch_operands = 0 : i64, tpu.core_type = #tpu.core_type<tc>, window_params = [{transform_indices = @transform_0, window_bounds = array<i64: 16, 32>}, {pipeline_mode = #tpu.pipeline_mode<synchronous>, transform_indices = @transform_1, window_bounds = array<i64: 1, 32>}, {pipeline_mode = #tpu.pipeline_mode<synchronous>, transform_indices = @transform_2, window_bounds = array<i64: 1, 32>}, {transform_indices = @transform_3, window_bounds = array<i64: 32, 128>}, {transform_indices = @transform_4, window_bounds = array<i64: 1, 128>}, {transform_indices = @transform_5, window_bounds = array<i64: 16, 128>}]} {
    %c0 = arith.constant 0 : index
    %c0_0 = arith.constant 0 : index
    %0 = vector.load %arg2[%c0, %c0_0] : memref<16x32xf32, #tpu.memory_space<vmem>>, vector<16x32xf32>
    %cst = arith.constant dense<0.000000e+00> : vector<16xf32>
    %1 = vector.multi_reduction <add>, %0, %cst [1] : vector<16x32xf32> to vector<16xf32>
    %2 = vector.shape_cast %1 : vector<16xf32> to vector<16x1xf32>
    %cst_1 = arith.constant 3.200000e+01 : f32
    %3 = vector.broadcast %cst_1 : f32 to vector<16x1xf32>
    %4 = arith.divf %2, %3 : vector<16x1xf32>
    %5 = vector.broadcast %4 : vector<16x1xf32> to vector<16x32xf32>
    %6 = arith.subf %0, %5 : vector<16x32xf32>
    %7 = arith.mulf %6, %6 : vector<16x32xf32>
    %cst_2 = arith.constant dense<0.000000e+00> : vector<16xf32>
    %8 = vector.multi_reduction <add>, %7, %cst_2 [1] : vector<16x32xf32> to vector<16xf32>
    %9 = vector.shape_cast %8 : vector<16xf32> to vector<16x1xf32>
    %cst_3 = arith.constant 3.200000e+01 : f32
    %10 = vector.broadcast %cst_3 : f32 to vector<16x1xf32>
    %11 = arith.divf %9, %10 : vector<16x1xf32>
    %cst_4 = arith.constant 9.99999974E-6 : f32
    %12 = vector.broadcast %cst_4 : f32 to vector<16x1xf32>
    %13 = arith.addf %11, %12 : vector<16x1xf32>
    %14 = math.rsqrt %13 : vector<16x1xf32>
    %15 = vector.broadcast %14 : vector<16x1xf32> to vector<16x32xf32>
    %16 = arith.mulf %6, %15 : vector<16x32xf32>
    %c0_5 = arith.constant 0 : index
    %c0_6 = arith.constant 0 : index
    %17 = vector.load %arg3[%c0_5, %c0_6] : memref<1x32xf32, #tpu.memory_space<vmem>>, vector<1x32xf32>
    %18 = vector.broadcast %17 : vector<1x32xf32> to vector<16x32xf32>
    %19 = arith.mulf %16, %18 : vector<16x32xf32>
    %c0_7 = arith.constant 0 : index
    %c0_8 = arith.constant 0 : index
    %20 = vector.load %arg4[%c0_7, %c0_8] : memref<1x32xf32, #tpu.memory_space<vmem>>, vector<1x32xf32>
    %21 = vector.broadcast %20 : vector<1x32xf32> to vector<16x32xf32>
    %22 = arith.addf %19, %21 : vector<16x32xf32>
    %c0_9 = arith.constant 0 : index
    %c0_10 = arith.constant 0 : index
    %23 = vector.load %arg5[%c0_9, %c0_10] : memref<32x128xf32, #tpu.memory_space<vmem>>, vector<32x128xf32>
    %cst_11 = arith.constant dense<0.000000e+00> : vector<16x128xf32>
    %24 = tpu.matmul %22, %23, %cst_11 {dimension_numbers = #tpu.dot_dimension_numbers<[1], [0], [0], [1], [0, 0, 1, 1], [], []>} : vector<16x32xf32>, vector<32x128xf32>, vector<16x128xf32> -> vector<16x128xf32>
    %c0_12 = arith.constant 0 : index
    %c0_13 = arith.constant 0 : index
    %25 = vector.load %arg6[%c0_12, %c0_13] : memref<1x128xf32, #tpu.memory_space<vmem>>, vector<1x128xf32>
    %26 = vector.broadcast %25 : vector<1x128xf32> to vector<16x128xf32>
    %27 = arith.addf %24, %26 : vector<16x128xf32>
    %cst_14 = arith.constant 5.000000e-01 : f32
    %28 = vector.broadcast %cst_14 : f32 to vector<16x128xf32>
    %29 = arith.mulf %28, %27 : vector<16x128xf32>
    %cst_15 = arith.constant 4.471500e-02 : f32
    %30 = vector.broadcast %cst_15 : f32 to vector<16x128xf32>
    %31 = arith.mulf %30, %27 : vector<16x128xf32>
    %32 = arith.mulf %31, %27 : vector<16x128xf32>
    %33 = arith.mulf %32, %27 : vector<16x128xf32>
    %34 = arith.addf %27, %33 : vector<16x128xf32>
    %cst_16 = arith.constant 0.797884583 : f32
    %35 = vector.broadcast %cst_16 : f32 to vector<16x128xf32>
    %36 = arith.mulf %35, %34 : vector<16x128xf32>
    %37 = math.tanh %36 : vector<16x128xf32>
    %cst_17 = arith.constant 1.000000e+00 : f32
    %38 = vector.broadcast %cst_17 : f32 to vector<16x128xf32>
    %39 = arith.addf %38, %37 : vector<16x128xf32>
    %40 = arith.mulf %29, %39 : vector<16x128xf32>
    %c0_18 = arith.constant 0 : index
    %c0_19 = arith.constant 0 : index
    %41 = vector.load %arg7[%c0_18, %c0_19] : memref<16x128xf32, #tpu.memory_space<vmem>>, vector<16x128xf32>
    tpu.vector_store %arg7[%c0_18, %c0_19], %40 {strides = array<i32>} : memref<16x128xf32, #tpu.memory_space<vmem>>, vector<16x128xf32>,
    return
  }
  func.func @transform_0(%arg0: i32, %arg1: i32) -> (i32, i32) {
    %c0_i32 = arith.constant 0 : i32
    %c0_i32_0 = arith.constant 0 : i32
    return %arg0, %c0_i32 : i32, i32
  }
  func.func @transform_1(%arg0: i32, %arg1: i32) -> (i32, i32) {
    %c0_i32 = arith.constant 0 : i32
    %c0_i32_0 = arith.constant 0 : i32
    %c0_i32_1 = arith.constant 0 : i32
    return %c0_i32, %c0_i32_0 : i32, i32
  }
  func.func @transform_2(%arg0: i32, %arg1: i32) -> (i32, i32) {
    %c0_i32 = arith.constant 0 : i32
    %c0_i32_0 = arith.constant 0 : i32
    %c0_i32_1 = arith.constant 0 : i32
    return %c0_i32, %c0_i32_0 : i32, i32
  }
  func.func @transform_3(%arg0: i32, %arg1: i32) -> (i32, i32) {
    %c0_i32 = arith.constant 0 : i32
    %c0_i32_0 = arith.constant 0 : i32
    return %c0_i32, %arg1 : i32, i32
  }
  func.func @transform_4(%arg0: i32, %arg1: i32) -> (i32, i32) {
    %c0_i32 = arith.constant 0 : i32
    %c0_i32_0 = arith.constant 0 : i32
    return %c0_i32, %arg1 : i32, i32
  }
  func.func @transform_5(%arg0: i32, %arg1: i32) -> (i32, i32) {
    %c0_i32 = arith.constant 0 : i32
    return %arg0, %arg1 : i32, i32
  }
}

module attributes {stable_mosaic.version = 11 : i64} {
  func.func @_flash_kernel(%arg0: i32, %arg1: i32, %arg2: i32, %arg3: memref<1x1x4x8x8xf32, #tpu.memory_space<vmem>>, %arg4: memref<1x1x4x8x8xf32, #tpu.memory_space<vmem>>, %arg5: memref<1x1x4x8x8xf32, #tpu.memory_space<vmem>>, %arg6: memref<1x8x32xf32, #tpu.memory_space<vmem>>, %arg7: memref<4x8x1xf32, #tpu.memory_space<vmem>>, %arg8: memref<4x8x1xf32, #tpu.memory_space<vmem>>, %arg9: memref<4x8x8xf32, #tpu.memory_space<vmem>>) attributes {dimension_semantics = [#tpu.dimension_semantics<parallel>, #tpu.dimension_semantics<parallel>, #tpu.dimension_semantics<arbitrary>], iteration_bounds = array<i64: 2, 1, 1>, scalar_prefetch = 0 : i64, scratch_operands = 3 : i64, tpu.core_type = #tpu.core_type<tc>, window_params = [{transform_indices = @transform_0, window_bounds = array<i64: 1, 1, 4, 8, 8>}, {transform_indices = @transform_1, window_bounds = array<i64: 1, 1, 4, 8, 8>}, {transform_indices = @transform_2, window_bounds = array<i64: 1, 1, 4, 8, 8>}, {transform_indices = @transform_3, window_bounds = array<i64: 1, 8, 32>}]} {
    %c0_i32 = arith.constant 0 : i32
    %0 = arith.cmpi eq, %arg2, %c0_i32 : i32
    %1 = arith.extui %0 : i1 to i32
    %c0_i32_0 = arith.constant 0 : i32
    %2 = arith.cmpi ne, %1, %c0_i32_0 : i32
    scf.if %2 {
      %cst_39 = arith.constant 0xFF800000 : f32
      %37 = vector.broadcast %cst_39 : f32 to vector<4x8x1xf32>
      %c0_40 = arith.constant 0 : index
      %c0_41 = arith.constant 0 : index
      %c0_42 = arith.constant 0 : index
      %38 = vector.load %arg7[%c0_40, %c0_41, %c0_42] : memref<4x8x1xf32, #tpu.memory_space<vmem>>, vector<4x8x1xf32>
      tpu.vector_store %arg7[%c0_40, %c0_41, %c0_42], %37 {strides = array<i32>} : memref<4x8x1xf32, #tpu.memory_space<vmem>>, vector<4x8x1xf32>,
      %cst_43 = arith.constant 0.000000e+00 : f32
      %39 = vector.broadcast %cst_43 : f32 to vector<4x8x1xf32>
      %c0_44 = arith.constant 0 : index
      %c0_45 = arith.constant 0 : index
      %c0_46 = arith.constant 0 : index
      %40 = vector.load %arg8[%c0_44, %c0_45, %c0_46] : memref<4x8x1xf32, #tpu.memory_space<vmem>>, vector<4x8x1xf32>
      tpu.vector_store %arg8[%c0_44, %c0_45, %c0_46], %39 {strides = array<i32>} : memref<4x8x1xf32, #tpu.memory_space<vmem>>, vector<4x8x1xf32>,
      %cst_47 = arith.constant 0.000000e+00 : f32
      %41 = vector.broadcast %cst_47 : f32 to vector<4x8x8xf32>
      %c0_48 = arith.constant 0 : index
      %c0_49 = arith.constant 0 : index
      %c0_50 = arith.constant 0 : index
      %42 = vector.load %arg9[%c0_48, %c0_49, %c0_50] : memref<4x8x8xf32, #tpu.memory_space<vmem>>, vector<4x8x8xf32>
      tpu.vector_store %arg9[%c0_48, %c0_49, %c0_50], %41 {strides = array<i32>} : memref<4x8x8xf32, #tpu.memory_space<vmem>>, vector<4x8x8xf32>,
    } else {
    }
    %c0 = arith.constant 0 : index
    %c0_1 = arith.constant 0 : index
    %c0_2 = arith.constant 0 : index
    %c0_3 = arith.constant 0 : index
    %c0_4 = arith.constant 0 : index
    %3 = vector.load %arg3[%c0, %c0_1, %c0_2, %c0_3, %c0_4] : memref<1x1x4x8x8xf32, #tpu.memory_space<vmem>>, vector<1x1x4x8x8xf32>
    %4 = vector.shape_cast %3 : vector<1x1x4x8x8xf32> to vector<4x8x8xf32>
    %cst = arith.constant 0.353553385 : f32
    %5 = vector.broadcast %cst : f32 to vector<4x8x8xf32>
    %6 = arith.mulf %4, %5 : vector<4x8x8xf32>
    %c0_5 = arith.constant 0 : index
    %c0_6 = arith.constant 0 : index
    %c0_7 = arith.constant 0 : index
    %c0_8 = arith.constant 0 : index
    %c0_9 = arith.constant 0 : index
    %7 = vector.load %arg4[%c0_5, %c0_6, %c0_7, %c0_8, %c0_9] : memref<1x1x4x8x8xf32, #tpu.memory_space<vmem>>, vector<1x1x4x8x8xf32>
    %8 = vector.shape_cast %7 : vector<1x1x4x8x8xf32> to vector<4x8x8xf32>
    %c0_10 = arith.constant 0 : index
    %c0_11 = arith.constant 0 : index
    %c0_12 = arith.constant 0 : index
    %c0_13 = arith.constant 0 : index
    %c0_14 = arith.constant 0 : index
    %9 = vector.load %arg5[%c0_10, %c0_11, %c0_12, %c0_13, %c0_14] : memref<1x1x4x8x8xf32, #tpu.memory_space<vmem>>, vector<1x1x4x8x8xf32>
    %10 = vector.shape_cast %9 : vector<1x1x4x8x8xf32> to vector<4x8x8xf32>
    %cst_15 = arith.constant dense<0.000000e+00> : vector<4x8x8xf32>
    %11 = tpu.matmul %6, %8, %cst_15 {dimension_numbers = #tpu.dot_dimension_numbers<[2], [2], [1], [1], [0, 0, 0, 1, 1, 1], [0], [0]>} : vector<4x8x8xf32>, vector<4x8x8xf32>, vector<4x8x8xf32> -> vector<4x8x8xf32>
    %c0_16 = arith.constant 0 : index
    %c0_17 = arith.constant 0 : index
    %c0_18 = arith.constant 0 : index
    %12 = vector.load %arg7[%c0_16, %c0_17, %c0_18] : memref<4x8x1xf32, #tpu.memory_space<vmem>>, vector<4x8x1xf32>
    %cst_19 = arith.constant dense<0xFF800000> : vector<4x8xf32>
    %13 = vector.multi_reduction <maximumf>, %11, %cst_19 [2] : vector<4x8x8xf32> to vector<4x8xf32>
    %14 = vector.shape_cast %13 : vector<4x8xf32> to vector<4x8x1xf32>
    %15 = arith.maximumf %12, %14 : vector<4x8x1xf32>
    %16 = arith.subf %12, %15 : vector<4x8x1xf32>
    %17 = math.exp %16 : vector<4x8x1xf32>
    %18 = vector.broadcast %15 : vector<4x8x1xf32> to vector<4x8x8xf32>
    %19 = arith.subf %11, %18 : vector<4x8x8xf32>
    %20 = math.exp %19 : vector<4x8x8xf32>
    %c0_20 = arith.constant 0 : index
    %c0_21 = arith.constant 0 : index
    %c0_22 = arith.constant 0 : index
    %21 = vector.load %arg8[%c0_20, %c0_21, %c0_22] : memref<4x8x1xf32, #tpu.memory_space<vmem>>, vector<4x8x1xf32>
    %22 = arith.mulf %17, %21 : vector<4x8x1xf32>
    %cst_23 = arith.constant dense<0.000000e+00> : vector<4x8xf32>
    %23 = vector.multi_reduction <add>, %20, %cst_23 [2] : vector<4x8x8xf32> to vector<4x8xf32>
    %24 = vector.shape_cast %23 : vector<4x8xf32> to vector<4x8x1xf32>
    %25 = arith.addf %22, %24 : vector<4x8x1xf32>
    %c0_24 = arith.constant 0 : index
    %c0_25 = arith.constant 0 : index
    %c0_26 = arith.constant 0 : index
    %26 = vector.load %arg8[%c0_24, %c0_25, %c0_26] : memref<4x8x1xf32, #tpu.memory_space<vmem>>, vector<4x8x1xf32>
    tpu.vector_store %arg8[%c0_24, %c0_25, %c0_26], %25 {strides = array<i32>} : memref<4x8x1xf32, #tpu.memory_space<vmem>>, vector<4x8x1xf32>,
    %cst_27 = arith.constant dense<0.000000e+00> : vector<4x8x8xf32>
    %27 = tpu.matmul %20, %10, %cst_27 {dimension_numbers = #tpu.dot_dimension_numbers<[2], [1], [1], [2], [0, 0, 0, 1, 1, 2], [0], [0]>} : vector<4x8x8xf32>, vector<4x8x8xf32>, vector<4x8x8xf32> -> vector<4x8x8xf32>
    %c0_28 = arith.constant 0 : index
    %c0_29 = arith.constant 0 : index
    %c0_30 = arith.constant 0 : index
    %28 = vector.load %arg9[%c0_28, %c0_29, %c0_30] : memref<4x8x8xf32, #tpu.memory_space<vmem>>, vector<4x8x8xf32>
    %29 = vector.broadcast %17 : vector<4x8x1xf32> to vector<4x8x8xf32>
    %30 = arith.mulf %29, %28 : vector<4x8x8xf32>
    %31 = arith.addf %30, %27 : vector<4x8x8xf32>
    %c0_31 = arith.constant 0 : index
    %c0_32 = arith.constant 0 : index
    %c0_33 = arith.constant 0 : index
    %32 = vector.load %arg9[%c0_31, %c0_32, %c0_33] : memref<4x8x8xf32, #tpu.memory_space<vmem>>, vector<4x8x8xf32>
    tpu.vector_store %arg9[%c0_31, %c0_32, %c0_33], %31 {strides = array<i32>} : memref<4x8x8xf32, #tpu.memory_space<vmem>>, vector<4x8x8xf32>,
    %c0_34 = arith.constant 0 : index
    %c0_35 = arith.constant 0 : index
    %c0_36 = arith.constant 0 : index
    %33 = vector.load %arg7[%c0_34, %c0_35, %c0_36] : memref<4x8x1xf32, #tpu.memory_space<vmem>>, vector<4x8x1xf32>
    tpu.vector_store %arg7[%c0_34, %c0_35, %c0_36], %15 {strides = array<i32>} : memref<4x8x1xf32, #tpu.memory_space<vmem>>, vector<4x8x1xf32>,
    %c0_i32_37 = arith.constant 0 : i32
    %34 = arith.cmpi eq, %arg2, %c0_i32_37 : i32
    %35 = arith.extui %34 : i1 to i32
    %c0_i32_38 = arith.constant 0 : i32
    %36 = arith.cmpi ne, %35, %c0_i32_38 : i32
    scf.if %36 {
      %c0_39 = arith.constant 0 : index
      %c0_40 = arith.constant 0 : index
      %c0_41 = arith.constant 0 : index
      %37 = vector.load %arg8[%c0_39, %c0_40, %c0_41] : memref<4x8x1xf32, #tpu.memory_space<vmem>>, vector<4x8x1xf32>
      %cst_42 = arith.constant 1.000000e+00 : f32
      %38 = vector.broadcast %cst_42 : f32 to vector<4x8x1xf32>
      %39 = arith.divf %38, %37 : vector<4x8x1xf32>
      %c0_43 = arith.constant 0 : index
      %c0_44 = arith.constant 0 : index
      %c0_45 = arith.constant 0 : index
      %40 = vector.load %arg9[%c0_43, %c0_44, %c0_45] : memref<4x8x8xf32, #tpu.memory_space<vmem>>, vector<4x8x8xf32>
      %41 = vector.broadcast %39 : vector<4x8x1xf32> to vector<4x8x8xf32>
      %42 = arith.mulf %40, %41 : vector<4x8x8xf32>
      %43 = vector.extract_strided_slice %42 {offsets = [0, 0, 0], sizes = [1, 8, 8], strides = [1, 1, 1]} : vector<4x8x8xf32> to vector<1x8x8xf32>
      %44 = vector.shape_cast %43 : vector<1x8x8xf32> to vector<8x8xf32>
      %c0_46 = arith.constant 0 : index
      %c0_47 = arith.constant 0 : index
      %c0_48 = arith.constant 0 : index
      %45 = vector.load %arg6[%c0_46, %c0_47, %c0_48] : memref<1x8x32xf32, #tpu.memory_space<vmem>>, vector<1x8x8xf32>
      %46 = vector.shape_cast %45 : vector<1x8x8xf32> to vector<8x8xf32>
      %47 = vector.shape_cast %44 : vector<8x8xf32> to vector<1x8x8xf32>
      tpu.vector_store %arg6[%c0_46, %c0_47, %c0_48], %47 {strides = array<i32>} : memref<1x8x32xf32, #tpu.memory_space<vmem>>, vector<1x8x8xf32>,
      %48 = vector.extract_strided_slice %42 {offsets = [1, 0, 0], sizes = [1, 8, 8], strides = [1, 1, 1]} : vector<4x8x8xf32> to vector<1x8x8xf32>
      %49 = vector.shape_cast %48 : vector<1x8x8xf32> to vector<8x8xf32>
      %c0_49 = arith.constant 0 : index
      %c0_50 = arith.constant 0 : index
      %c8 = arith.constant 8 : index
      %50 = vector.load %arg6[%c0_49, %c0_50, %c8] : memref<1x8x32xf32, #tpu.memory_space<vmem>>, vector<1x8x8xf32>
      %51 = vector.shape_cast %50 : vector<1x8x8xf32> to vector<8x8xf32>
      %52 = vector.shape_cast %49 : vector<8x8xf32> to vector<1x8x8xf32>
      tpu.vector_store %arg6[%c0_49, %c0_50, %c8], %52 {strides = array<i32>} : memref<1x8x32xf32, #tpu.memory_space<vmem>>, vector<1x8x8xf32>,
      %53 = vector.extract_strided_slice %42 {offsets = [2, 0, 0], sizes = [1, 8, 8], strides = [1, 1, 1]} : vector<4x8x8xf32> to vector<1x8x8xf32>
      %54 = vector.shape_cast %53 : vector<1x8x8xf32> to vector<8x8xf32>
      %c0_51 = arith.constant 0 : index
      %c0_52 = arith.constant 0 : index
      %c16 = arith.constant 16 : index
      %55 = vector.load %arg6[%c0_51, %c0_52, %c16] : memref<1x8x32xf32, #tpu.memory_space<vmem>>, vector<1x8x8xf32>
      %56 = vector.shape_cast %55 : vector<1x8x8xf32> to vector<8x8xf32>
      %57 = vector.shape_cast %54 : vector<8x8xf32> to vector<1x8x8xf32>
      tpu.vector_store %arg6[%c0_51, %c0_52, %c16], %57 {strides = array<i32>} : memref<1x8x32xf32, #tpu.memory_space<vmem>>, vector<1x8x8xf32>,
      %58 = vector.extract_strided_slice %42 {offsets = [3, 0, 0], sizes = [1, 8, 8], strides = [1, 1, 1]} : vector<4x8x8xf32> to vector<1x8x8xf32>
      %59 = vector.shape_cast %58 : vector<1x8x8xf32> to vector<8x8xf32>
      %c0_53 = arith.constant 0 : index
      %c0_54 = arith.constant 0 : index
      %c24 = arith.constant 24 : index
      %60 = vector.load %arg6[%c0_53, %c0_54, %c24] : memref<1x8x32xf32, #tpu.memory_space<vmem>>, vector<1x8x8xf32>
      %61 = vector.shape_cast %60 : vector<1x8x8xf32> to vector<8x8xf32>
      %62 = vector.shape_cast %59 : vector<8x8xf32> to vector<1x8x8xf32>
      tpu.vector_store %arg6[%c0_53, %c0_54, %c24], %62 {strides = array<i32>} : memref<1x8x32xf32, #tpu.memory_space<vmem>>, vector<1x8x8xf32>,
    } else {
    }
    return
  }
  func.func @transform_0(%arg0: i32, %arg1: i32, %arg2: i32) -> (i32, i32, i32, i32, i32) {
    %c0_i32 = arith.constant 0 : i32
    %c0_i32_0 = arith.constant 0 : i32
    %c0_i32_1 = arith.constant 0 : i32
    %c0_i32_2 = arith.constant 0 : i32
    return %c0_i32, %arg0, %c0_i32_0, %arg1, %c0_i32_1 : i32, i32, i32, i32, i32
  }
  func.func @transform_1(%arg0: i32, %arg1: i32, %arg2: i32) -> (i32, i32, i32, i32, i32) {
    %c1_i32 = arith.constant 1 : i32
    %c0_i32 = arith.constant 0 : i32
    %c0_i32_0 = arith.constant 0 : i32
    %c0_i32_1 = arith.constant 0 : i32
    return %c1_i32, %arg0, %c0_i32, %arg2, %c0_i32_0 : i32, i32, i32, i32, i32
  }
  func.func @transform_2(%arg0: i32, %arg1: i32, %arg2: i32) -> (i32, i32, i32, i32, i32) {
    %c2_i32 = arith.constant 2 : i32
    %c0_i32 = arith.constant 0 : i32
    %c0_i32_0 = arith.constant 0 : i32
    %c0_i32_1 = arith.constant 0 : i32
    return %c2_i32, %arg0, %c0_i32, %arg2, %c0_i32_0 : i32, i32, i32, i32, i32
  }
  func.func @transform_3(%arg0: i32, %arg1: i32, %arg2: i32) -> (i32, i32, i32) {
    %c0_i32 = arith.constant 0 : i32
    %c0_i32_0 = arith.constant 0 : i32
    return %arg0, %arg1, %c0_i32 : i32, i32, i32
  }
}

module attributes {stable_mosaic.version = 11 : i64} {
  func.func @_linear_res_kernel(%arg0: i32, %arg1: i32, %arg2: i32, %arg3: memref<16x32xf32, #tpu.memory_space<vmem>>, %arg4: memref<32x32xf32, #tpu.memory_space<vmem>>, %arg5: memref<1x32xf32, #tpu.memory_space<vmem>>, %arg6: memref<16x32xf32, #tpu.memory_space<vmem>>, %arg7: memref<16x32xf32, #tpu.memory_space<vmem>>, %arg8: memref<16x32xf32, #tpu.memory_space<vmem>>) attributes {dimension_semantics = [#tpu.dimension_semantics<parallel>, #tpu.dimension_semantics<parallel>, #tpu.dimension_semantics<arbitrary>], iteration_bounds = array<i64: 1, 1, 1>, scalar_prefetch = 0 : i64, scratch_operands = 1 : i64, tpu.core_type = #tpu.core_type<tc>, window_params = [{transform_indices = @transform_0, window_bounds = array<i64: 16, 32>}, {transform_indices = @transform_1, window_bounds = array<i64: 32, 32>}, {transform_indices = @transform_2, window_bounds = array<i64: 1, 32>}, {transform_indices = @transform_3, window_bounds = array<i64: 16, 32>}, {transform_indices = @transform_4, window_bounds = array<i64: 16, 32>}]} {
    %c0_i32 = arith.constant 0 : i32
    %0 = arith.cmpi eq, %arg2, %c0_i32 : i32
    %1 = arith.extui %0 : i1 to i32
    %c0_i32_0 = arith.constant 0 : i32
    %2 = arith.cmpi ne, %1, %c0_i32_0 : i32
    scf.if %2 {
      %cst_10 = arith.constant 0.000000e+00 : f32
      %12 = vector.broadcast %cst_10 : f32 to vector<16x32xf32>
      %c0_11 = arith.constant 0 : index
      %c0_12 = arith.constant 0 : index
      %13 = vector.load %arg8[%c0_11, %c0_12] : memref<16x32xf32, #tpu.memory_space<vmem>>, vector<16x32xf32>
      tpu.vector_store %arg8[%c0_11, %c0_12], %12 {strides = array<i32>} : memref<16x32xf32, #tpu.memory_space<vmem>>, vector<16x32xf32>,
    } else {
    }
    %c0 = arith.constant 0 : index
    %c0_1 = arith.constant 0 : index
    %3 = vector.load %arg8[%c0, %c0_1] : memref<16x32xf32, #tpu.memory_space<vmem>>, vector<16x32xf32>
    %c0_2 = arith.constant 0 : index
    %c0_3 = arith.constant 0 : index
    %4 = vector.load %arg3[%c0_2, %c0_3] : memref<16x32xf32, #tpu.memory_space<vmem>>, vector<16x32xf32>
    %c0_4 = arith.constant 0 : index
    %c0_5 = arith.constant 0 : index
    %5 = vector.load %arg4[%c0_4, %c0_5] : memref<32x32xf32, #tpu.memory_space<vmem>>, vector<32x32xf32>
    %cst = arith.constant dense<0.000000e+00> : vector<16x32xf32>
    %6 = tpu.matmul %4, %5, %cst {dimension_numbers = #tpu.dot_dimension_numbers<[1], [0], [0], [1], [0, 0, 1, 1], [], []>} : vector<16x32xf32>, vector<32x32xf32>, vector<16x32xf32> -> vector<16x32xf32>
    %7 = arith.addf %3, %6 : vector<16x32xf32>
    %c0_6 = arith.constant 0 : index
    %c0_7 = arith.constant 0 : index
    %8 = vector.load %arg8[%c0_6, %c0_7] : memref<16x32xf32, #tpu.memory_space<vmem>>, vector<16x32xf32>
    tpu.vector_store %arg8[%c0_6, %c0_7], %7 {strides = array<i32>} : memref<16x32xf32, #tpu.memory_space<vmem>>, vector<16x32xf32>,
    %c0_i32_8 = arith.constant 0 : i32
    %9 = arith.cmpi eq, %arg2, %c0_i32_8 : i32
    %10 = arith.extui %9 : i1 to i32
    %c0_i32_9 = arith.constant 0 : i32
    %11 = arith.cmpi ne, %10, %c0_i32_9 : i32
    scf.if %11 {
      %c0_10 = arith.constant 0 : index
      %c0_11 = arith.constant 0 : index
      %12 = vector.load %arg8[%c0_10, %c0_11] : memref<16x32xf32, #tpu.memory_space<vmem>>, vector<16x32xf32>
      %c0_12 = arith.constant 0 : index
      %c0_13 = arith.constant 0 : index
      %13 = vector.load %arg5[%c0_12, %c0_13] : memref<1x32xf32, #tpu.memory_space<vmem>>, vector<1x32xf32>
      %14 = vector.broadcast %13 : vector<1x32xf32> to vector<16x32xf32>
      %15 = arith.addf %12, %14 : vector<16x32xf32>
      %c0_14 = arith.constant 0 : index
      %c0_15 = arith.constant 0 : index
      %16 = vector.load %arg6[%c0_14, %c0_15] : memref<16x32xf32, #tpu.memory_space<vmem>>, vector<16x32xf32>
      %17 = arith.addf %15, %16 : vector<16x32xf32>
      %c0_16 = arith.constant 0 : index
      %c0_17 = arith.constant 0 : index
      %18 = vector.load %arg7[%c0_16, %c0_17] : memref<16x32xf32, #tpu.memory_space<vmem>>, vector<16x32xf32>
      tpu.vector_store %arg7[%c0_16, %c0_17], %17 {strides = array<i32>} : memref<16x32xf32, #tpu.memory_space<vmem>>, vector<16x32xf32>,
    } else {
    }
    return
  }
  func.func @transform_0(%arg0: i32, %arg1: i32, %arg2: i32) -> (i32, i32) {
    %c0_i32 = arith.constant 0 : i32
    return %arg0, %arg2 : i32, i32
  }
  func.func @transform_1(%arg0: i32, %arg1: i32, %arg2: i32) -> (i32, i32) {
    %c0_i32 = arith.constant 0 : i32
    return %arg2, %arg1 : i32, i32
  }
  func.func @transform_2(%arg0: i32, %arg1: i32, %arg2: i32) -> (i32, i32) {
    %c0_i32 = arith.constant 0 : i32
    %c0_i32_0 = arith.constant 0 : i32
    return %c0_i32, %arg1 : i32, i32
  }
  func.func @transform_3(%arg0: i32, %arg1: i32, %arg2: i32) -> (i32, i32) {
    %c0_i32 = arith.constant 0 : i32
    return %arg0, %arg1 : i32, i32
  }
  func.func @transform_4(%arg0: i32, %arg1: i32, %arg2: i32) -> (i32, i32) {
    %c0_i32 = arith.constant 0 : i32
    return %arg0, %arg1 : i32, i32
  }
}

module attributes {stable_mosaic.version = 11 : i64} {
  func.func @_linear_res_kernel(%arg0: i32, %arg1: i32, %arg2: i32, %arg3: memref<16x128xf32, #tpu.memory_space<vmem>>, %arg4: memref<128x32xf32, #tpu.memory_space<vmem>>, %arg5: memref<1x32xf32, #tpu.memory_space<vmem>>, %arg6: memref<16x32xf32, #tpu.memory_space<vmem>>, %arg7: memref<16x32xf32, #tpu.memory_space<vmem>>, %arg8: memref<16x32xf32, #tpu.memory_space<vmem>>) attributes {dimension_semantics = [#tpu.dimension_semantics<parallel>, #tpu.dimension_semantics<parallel>, #tpu.dimension_semantics<arbitrary>], iteration_bounds = array<i64: 1, 1, 1>, scalar_prefetch = 0 : i64, scratch_operands = 1 : i64, tpu.core_type = #tpu.core_type<tc>, window_params = [{transform_indices = @transform_0, window_bounds = array<i64: 16, 128>}, {transform_indices = @transform_1, window_bounds = array<i64: 128, 32>}, {transform_indices = @transform_2, window_bounds = array<i64: 1, 32>}, {transform_indices = @transform_3, window_bounds = array<i64: 16, 32>}, {transform_indices = @transform_4, window_bounds = array<i64: 16, 32>}]} {
    %c0_i32 = arith.constant 0 : i32
    %0 = arith.cmpi eq, %arg2, %c0_i32 : i32
    %1 = arith.extui %0 : i1 to i32
    %c0_i32_0 = arith.constant 0 : i32
    %2 = arith.cmpi ne, %1, %c0_i32_0 : i32
    scf.if %2 {
      %cst_10 = arith.constant 0.000000e+00 : f32
      %12 = vector.broadcast %cst_10 : f32 to vector<16x32xf32>
      %c0_11 = arith.constant 0 : index
      %c0_12 = arith.constant 0 : index
      %13 = vector.load %arg8[%c0_11, %c0_12] : memref<16x32xf32, #tpu.memory_space<vmem>>, vector<16x32xf32>
      tpu.vector_store %arg8[%c0_11, %c0_12], %12 {strides = array<i32>} : memref<16x32xf32, #tpu.memory_space<vmem>>, vector<16x32xf32>,
    } else {
    }
    %c0 = arith.constant 0 : index
    %c0_1 = arith.constant 0 : index
    %3 = vector.load %arg8[%c0, %c0_1] : memref<16x32xf32, #tpu.memory_space<vmem>>, vector<16x32xf32>
    %c0_2 = arith.constant 0 : index
    %c0_3 = arith.constant 0 : index
    %4 = vector.load %arg3[%c0_2, %c0_3] : memref<16x128xf32, #tpu.memory_space<vmem>>, vector<16x128xf32>
    %c0_4 = arith.constant 0 : index
    %c0_5 = arith.constant 0 : index
    %5 = vector.load %arg4[%c0_4, %c0_5] : memref<128x32xf32, #tpu.memory_space<vmem>>, vector<128x32xf32>
    %cst = arith.constant dense<0.000000e+00> : vector<16x32xf32>
    %6 = tpu.matmul %4, %5, %cst {dimension_numbers = #tpu.dot_dimension_numbers<[1], [0], [0], [1], [0, 0, 1, 1], [], []>} : vector<16x128xf32>, vector<128x32xf32>, vector<16x32xf32> -> vector<16x32xf32>
    %7 = arith.addf %3, %6 : vector<16x32xf32>
    %c0_6 = arith.constant 0 : index
    %c0_7 = arith.constant 0 : index
    %8 = vector.load %arg8[%c0_6, %c0_7] : memref<16x32xf32, #tpu.memory_space<vmem>>, vector<16x32xf32>
    tpu.vector_store %arg8[%c0_6, %c0_7], %7 {strides = array<i32>} : memref<16x32xf32, #tpu.memory_space<vmem>>, vector<16x32xf32>,
    %c0_i32_8 = arith.constant 0 : i32
    %9 = arith.cmpi eq, %arg2, %c0_i32_8 : i32
    %10 = arith.extui %9 : i1 to i32
    %c0_i32_9 = arith.constant 0 : i32
    %11 = arith.cmpi ne, %10, %c0_i32_9 : i32
    scf.if %11 {
      %c0_10 = arith.constant 0 : index
      %c0_11 = arith.constant 0 : index
      %12 = vector.load %arg8[%c0_10, %c0_11] : memref<16x32xf32, #tpu.memory_space<vmem>>, vector<16x32xf32>
      %c0_12 = arith.constant 0 : index
      %c0_13 = arith.constant 0 : index
      %13 = vector.load %arg5[%c0_12, %c0_13] : memref<1x32xf32, #tpu.memory_space<vmem>>, vector<1x32xf32>
      %14 = vector.broadcast %13 : vector<1x32xf32> to vector<16x32xf32>
      %15 = arith.addf %12, %14 : vector<16x32xf32>
      %c0_14 = arith.constant 0 : index
      %c0_15 = arith.constant 0 : index
      %16 = vector.load %arg6[%c0_14, %c0_15] : memref<16x32xf32, #tpu.memory_space<vmem>>, vector<16x32xf32>
      %17 = arith.addf %15, %16 : vector<16x32xf32>
      %c0_16 = arith.constant 0 : index
      %c0_17 = arith.constant 0 : index
      %18 = vector.load %arg7[%c0_16, %c0_17] : memref<16x32xf32, #tpu.memory_space<vmem>>, vector<16x32xf32>
      tpu.vector_store %arg7[%c0_16, %c0_17], %17 {strides = array<i32>} : memref<16x32xf32, #tpu.memory_space<vmem>>, vector<16x32xf32>,
    } else {
    }
    return
  }
  func.func @transform_0(%arg0: i32, %arg1: i32, %arg2: i32) -> (i32, i32) {
    %c0_i32 = arith.constant 0 : i32
    return %arg0, %arg2 : i32, i32
  }
  func.func @transform_1(%arg0: i32, %arg1: i32, %arg2: i32) -> (i32, i32) {
    %c0_i32 = arith.constant 0 : i32
    return %arg2, %arg1 : i32, i32
  }
  func.func @transform_2(%arg0: i32, %arg1: i32, %arg2: i32) -> (i32, i32) {
    %c0_i32 = arith.constant 0 : i32
    %c0_i32_0 = arith.constant 0 : i32
    return %c0_i32, %arg1 : i32, i32
  }
  func.func @transform_3(%arg0: i32, %arg1: i32, %arg2: i32) -> (i32, i32) {
    %c0_i32 = arith.constant 0 : i32
    return %arg0, %arg1 : i32, i32
  }
  func.func @transform_4(%arg0: i32, %arg1: i32, %arg2: i32) -> (i32, i32) {
    %c0_i32 = arith.constant 0 : i32
    return %arg0, %arg1 : i32, i32
  }
}

module attributes {stable_mosaic.version = 11 : i64} {
  func.func @_layernorm_kernel(%arg0: i32, %arg1: memref<16x32xf32, #tpu.memory_space<vmem>>, %arg2: memref<1x32xf32, #tpu.memory_space<vmem>>, %arg3: memref<1x32xf32, #tpu.memory_space<vmem>>, %arg4: memref<16x32xf32, #tpu.memory_space<vmem>>) attributes {dimension_semantics = [#tpu.dimension_semantics<parallel>], iteration_bounds = array<i64: 1>, scalar_prefetch = 0 : i64, scratch_operands = 0 : i64, tpu.core_type = #tpu.core_type<tc>, window_params = [{transform_indices = @transform_0, window_bounds = array<i64: 16, 32>}, {pipeline_mode = #tpu.pipeline_mode<synchronous>, transform_indices = @transform_1, window_bounds = array<i64: 1, 32>}, {pipeline_mode = #tpu.pipeline_mode<synchronous>, transform_indices = @transform_2, window_bounds = array<i64: 1, 32>}, {transform_indices = @transform_3, window_bounds = array<i64: 16, 32>}]} {
    %c0 = arith.constant 0 : index
    %c0_0 = arith.constant 0 : index
    %0 = vector.load %arg1[%c0, %c0_0] : memref<16x32xf32, #tpu.memory_space<vmem>>, vector<16x32xf32>
    %cst = arith.constant dense<0.000000e+00> : vector<16xf32>
    %1 = vector.multi_reduction <add>, %0, %cst [1] : vector<16x32xf32> to vector<16xf32>
    %2 = vector.shape_cast %1 : vector<16xf32> to vector<16x1xf32>
    %cst_1 = arith.constant 3.200000e+01 : f32
    %3 = vector.broadcast %cst_1 : f32 to vector<16x1xf32>
    %4 = arith.divf %2, %3 : vector<16x1xf32>
    %5 = vector.broadcast %4 : vector<16x1xf32> to vector<16x32xf32>
    %6 = arith.subf %0, %5 : vector<16x32xf32>
    %7 = arith.mulf %6, %6 : vector<16x32xf32>
    %cst_2 = arith.constant dense<0.000000e+00> : vector<16xf32>
    %8 = vector.multi_reduction <add>, %7, %cst_2 [1] : vector<16x32xf32> to vector<16xf32>
    %9 = vector.shape_cast %8 : vector<16xf32> to vector<16x1xf32>
    %cst_3 = arith.constant 3.200000e+01 : f32
    %10 = vector.broadcast %cst_3 : f32 to vector<16x1xf32>
    %11 = arith.divf %9, %10 : vector<16x1xf32>
    %cst_4 = arith.constant 9.99999974E-6 : f32
    %12 = vector.broadcast %cst_4 : f32 to vector<16x1xf32>
    %13 = arith.addf %11, %12 : vector<16x1xf32>
    %14 = math.rsqrt %13 : vector<16x1xf32>
    %15 = vector.broadcast %14 : vector<16x1xf32> to vector<16x32xf32>
    %16 = arith.mulf %6, %15 : vector<16x32xf32>
    %c0_5 = arith.constant 0 : index
    %c0_6 = arith.constant 0 : index
    %17 = vector.load %arg2[%c0_5, %c0_6] : memref<1x32xf32, #tpu.memory_space<vmem>>, vector<1x32xf32>
    %18 = vector.broadcast %17 : vector<1x32xf32> to vector<16x32xf32>
    %19 = arith.mulf %16, %18 : vector<16x32xf32>
    %c0_7 = arith.constant 0 : index
    %c0_8 = arith.constant 0 : index
    %20 = vector.load %arg3[%c0_7, %c0_8] : memref<1x32xf32, #tpu.memory_space<vmem>>, vector<1x32xf32>
    %21 = vector.broadcast %20 : vector<1x32xf32> to vector<16x32xf32>
    %22 = arith.addf %19, %21 : vector<16x32xf32>
    %c0_9 = arith.constant 0 : index
    %c0_10 = arith.constant 0 : index
    %23 = vector.load %arg4[%c0_9, %c0_10] : memref<16x32xf32, #tpu.memory_space<vmem>>, vector<16x32xf32>
    tpu.vector_store %arg4[%c0_9, %c0_10], %22 {strides = array<i32>} : memref<16x32xf32, #tpu.memory_space<vmem>>, vector<16x32xf32>,
    return
  }
  func.func @transform_0(%arg0: i32) -> (i32, i32) {
    %c0_i32 = arith.constant 0 : i32
    %c0_i32_0 = arith.constant 0 : i32
    return %arg0, %c0_i32 : i32, i32
  }
  func.func @transform_1(%arg0: i32) -> (i32, i32) {
    %c0_i32 = arith.constant 0 : i32
    %c0_i32_0 = arith.constant 0 : i32
    %c0_i32_1 = arith.constant 0 : i32
    return %c0_i32, %c0_i32_0 : i32, i32
  }
  func.func @transform_2(%arg0: i32) -> (i32, i32) {
    %c0_i32 = arith.constant 0 : i32
    %c0_i32_0 = arith.constant 0 : i32
    %c0_i32_1 = arith.constant 0 : i32
    return %c0_i32, %c0_i32_0 : i32, i32
  }
  func.func @transform_3(%arg0: i32) -> (i32, i32) {
    %c0_i32 = arith.constant 0 : i32
    %c0_i32_0 = arith.constant 0 : i32
    return %arg0, %c0_i32 : i32, i32
  }
}

</mosaic_0001>

<llo_original>
// kernel: encoder_forward.15
$region0: #{encoder_forward.15}
  #allocation0 [shape = 'u32[]', space=smem, size = 0x4, offset = 0x4, fixed_abs, tag = 'smem constant byte address 0x4 - core index']
  #allocation1 [shape = 'u32[144,128]{1,0:T(1,128)}', space=vmem, size = 0x12000, scoped, tag = 'internal scratch']
  %s0 = inlined_call_operand.vmem [shape: f32[16,32], index: 0, kind: input, shape index: {}]
  %s1 = inlined_call_operand.vmem [shape: f32[1,32], index: 1, kind: input, shape index: {}]
  %s2 = inlined_call_operand.vmem [shape: f32[1,32], index: 2, kind: input, shape index: {}]
  %s3 = inlined_call_operand.vmem [shape: f32[32,96], index: 3, kind: input, shape index: {}]
  %s4 = inlined_call_operand.vmem [shape: f32[1,96], index: 4, kind: input, shape index: {}]
  %s5 = inlined_call_operand.vmem [shape: f32[16,96], index: 5, kind: output, shape index: {}]
  %s6 = sld [smem:[#allocation0]]
  $region30: #{encoder_forward.15} parent=0
    _
  %s8 = ssub.s32 1, %s6
  %s9 = scalar_select 0, %s8, %s6
  // Predicated region
  $region2: #{encoder_forward.15} parent=0 // pred_check
    _
  $region3: #{encoder_forward.15} parent=0 // pred_check_branch
    %11 = sbr.rel (0) target = $region5
  $region4: #{encoder_forward.15} parent=0 // pred_region
    _
  $region5: #{encoder_forward.15} parent=0 // pred_fallthru
    _
  // Predicated region
  $region6: #{encoder_forward.15} parent=0 // pred_check
    _
  $region7: #{encoder_forward.15} parent=0 // pred_check_branch
    %13 = sbr.rel (0) target = $region9
  $region8: #{encoder_forward.15} parent=0 // pred_region
    _
  $region9: #{encoder_forward.15} parent=0 // pred_fallthru
    _
  // Predicated region
  $region10: #{encoder_forward.15} parent=0 // pred_check
    _
  $region11: #{encoder_forward.15} parent=0 // pred_check_branch
    %15 = sbr.rel (0) target = $region13
  $region12: #{encoder_forward.15} parent=0 // pred_region
    _
  $region13: #{encoder_forward.15} parent=0 // pred_fallthru
    _
  // Predicated region
  $region14: #{encoder_forward.15} parent=0 // pred_check
    _
  $region15: #{encoder_forward.15} parent=0 // pred_check_branch
    %17 = sbr.rel (0) target = $region17
  $region16: #{encoder_forward.15} parent=0 // pred_region
    _
  $region17: #{encoder_forward.15} parent=0 // pred_fallthru
    _
  // Predicated region
  $region18: #{encoder_forward.15} parent=0 // pred_check
    _
  $region19: #{encoder_forward.15} parent=0 // pred_check_branch
    %19 = sbr.rel (0) target = $region21
  $region20: #{encoder_forward.15} parent=0 // pred_region
    _
  $region21: #{encoder_forward.15} parent=0 // pred_fallthru
    _
  %v20 = vld [vmem:[%s0] sm:$0xff]
  %v21 = vld [vmem:[%s0 + $0x8] sm:$0xff]
  %vm22 = vcmask 261120
  %v23 = vsel %vm22, %v20, 0.0
  %24 = vadd.xlane.f32.xlu0 %v23
  %v25 = vpop.xlane.xlu0 %24
  %v26 = vsel %vm22, %v21, 0.0
  %27 = vadd.xlane.f32.xlu0 %v26
  %v28 = vpop.xlane.xlu0 %27
  %v29 = vrcp.pop 32.0
  %v30 = vmul.f32 %v25, %v29
  %v31 = vmul.f32 %v28, %v29
  %v32 = vsub.f32 %v20, %v30
  %v33 = vsub.f32 %v21, %v31
  %v34 = vmul.f32 %v32, %v32
  %v35 = vmul.f32 %v33, %v33
  %v36 = vsel %vm22, %v34, 0.0
  %37 = vadd.xlane.f32.xlu0 %v36
  %v38 = vpop.xlane.xlu0 %37
  %v39 = vsel %vm22, %v35, 0.0
  %40 = vadd.xlane.f32.xlu0 %v39
  %v41 = vpop.xlane.xlu0 %40
  %v42 = vmul.f32 %v38, %v29
  %v43 = vmul.f32 %v41, %v29
  %v44 = vadd.f32 %v42, 1e-05
  %v45 = vadd.f32 %v43, 1e-05
  %v46 = vrsqrt.pop %v44
  %v47 = vrsqrt.pop %v45
  %v48 = vmul.f32 %v32, %v46
  %v49 = vmul.f32 %v33, %v47
  %v50 = vld [vmem:[%s1] sm:$0x1]
  %v52 = vlaneseq
  %v53 = vshrl.u32 %v52, 7
  %v54 = vsub.s32 0, %v53
  %v55 = vrot.slane %v50, %v54
  %v57 = vmul.f32 %v48, %v55
  %v58 = vmul.f32 %v49, %v55
  %v59 = vld [vmem:[%s2] sm:$0x1]
  %v61 = vlaneseq
  %v62 = vshrl.u32 %v61, 7
  %v63 = vsub.s32 0, %v62
  %v64 = vrot.slane %v59, %v63
  %v66 = vadd.f32 %v57, %v64
  %v67 = vadd.f32 %v58, %v64
  %v68 = vld [vmem:[%s3] sm:$0xff]
  %v69 = vld [vmem:[%s3 + $0x8] sm:$0xff]
  %v70 = vld [vmem:[%s3 + $0x10] sm:$0xff]
  %v71 = vld [vmem:[%s3 + $0x18] sm:$0xff]
  %v72 = vld [vmem:[%s4] sm:$0x1]
  %v74 = vlaneseq
  %v75 = vshrl.u32 %v74, 7
  %v76 = vsub.s32 0, %v75
  %v77 = vrot.slane %v72, %v76
  %v80 = vsel %vm22, %v66, 0
  %v83 = vsel %vm22, %v67, 0
  %85 = vmatprep.subr.mxu0 0.0
  %86 = vmatpush1.msra.mxu0 %v68
  %87 = vmatprep.subr.mxu0 0.0
  %88 = vmatpush1.msra.mxu0 %v69
  %89 = vmatprep.subr.mxu0 0.0
  %90 = vmatpush1.msra.mxu0 %v70
  %91 = vmatprep.subr.mxu0 0.0
  %92 = vmatpush1.msra.mxu0 %v71
  %93 = vmatprep.subr.mxu0 0.0
  %94 = vmatpush1.msra.mxu0 0.0
  %95 = vmatprep.subr.mxu0 0.0
  %96 = vmatpush1.msra.mxu0 0.0
  %97 = vmatprep.subr.mxu0 0.0
  %98 = vmatpush1.msra.mxu0 0.0
  %99 = vmatprep.subr.mxu0 0.0
  %100 = vmatpush1.msra.mxu0 0.0
  %101 = vmatprep.subr.mxu0 0.0
  %102 = vmatpush1.msra.mxu0 0.0
  %103 = vmatprep.subr.mxu0 0.0
  %104 = vmatpush1.msra.mxu0 0.0
  %105 = vmatprep.subr.mxu0 0.0
  %106 = vmatpush1.msra.mxu0 0.0
  %107 = vmatprep.subr.mxu0 0.0
  %108 = vmatpush1.msra.mxu0 0.0
  %109 = vmatprep.subr.mxu0 0.0
  %110 = vmatpush1.msra.mxu0 0.0
  %111 = vmatprep.subr.mxu0 0.0
  %112 = vmatpush1.msra.mxu0 0.0
  %113 = vmatprep.subr.mxu0 0.0
  %114 = vmatpush1.msra.mxu0 0.0
  %115 = vmatprep.subr.mxu0 0.0
  %116 = vmatpush1.msra.mxu0 0.0
  %117 = vmatprep.subr.mxu0 0.0
  %118 = vmatpush1.msra.mxu0 0.0
  %119 = vmatprep.subr.mxu0 0.0
  %120 = vmatpush1.msra.mxu0 0.0
  %121 = vmatprep.subr.mxu0 0.0
  %122 = vmatpush1.msra.mxu0 0.0
  %123 = vmatprep.subr.mxu0 0.0
  %124 = vmatpush1.msra.mxu0 0.0
  %125 = vmatprep.subr.mxu0 0.0
  %126 = vmatpush1.msra.mxu0 0.0
  %127 = vmatprep.subr.mxu0 0.0
  %128 = vmatpush1.msra.mxu0 0.0
  %129 = vmatprep.subr.mxu0 0.0
  %130 = vmatpush1.msra.mxu0 0.0
  %131 = vmatprep.subr.mxu0 0.0
  %132 = vmatpush1.msra.mxu0 0.0
  %133 = vmatprep.subr.mxu0 0.0
  %134 = vmatpush1.msra.mxu0 0.0
  %135 = vmatprep.subr.mxu0 0.0
  %136 = vmatpush1.msra.mxu0 0.0
  %137 = vmatprep.subr.mxu0 0.0
  %138 = vmatpush1.msra.mxu0 0.0
  %139 = vmatprep.subr.mxu0 0.0
  %140 = vmatpush1.msra.mxu0 0.0
  %141 = vmatprep.subr.mxu0 0.0
  %142 = vmatpush1.msra.mxu0 0.0
  %143 = vmatprep.subr.mxu0 0.0
  %144 = vmatpush1.msra.mxu0 0.0
  %145 = vmatprep.subr.mxu0 0.0
  %146 = vmatpush1.msra.mxu0 0.0
  %147 = vmatprep.subr.mxu0 0.0
  %148 = vmatpush1.msra.mxu0 0.0
  %149 = vmatprep.mubr.f32.mxu0 0.0
  %150 = vmatmul.mubr.f32.gmra.mrb[0].mxu0 %v80
  %v151 = vpop.f32.mrb[0].mxu0
  %v152 = vadd.f32 %v77, %v151
  %v153 = vpop.f32.mrb[0].mxu0
  %154 = vmatprep.mubr.f32.mxu0 0.0
  %155 = vmatmul.mubr.f32.gmra.mrb[0].mxu0 %v83
  %v156 = vpop.f32.mrb[0].mxu0
  %v157 = vadd.f32 %v77, %v156
  %v158 = vpop.f32.mrb[0].mxu0
  %159 = vdwg.mxu0
  %vm160 = vcmask 785408
  %161 = vst.msk [vmem:[%s5] sm:$0xff] %vm160, %v152
  %162 = vst.msk [vmem:[%s5 + $0x8] sm:$0xff] %vm160, %v157
  // Predicated region
  $region22: #{encoder_forward.15} parent=0 // pred_check
    _
  $region23: #{encoder_forward.15} parent=0 // pred_check_branch
    %164 = sbr.rel (0) target = $region25
  $region24: #{encoder_forward.15} parent=0 // pred_region
    _
  $region25: #{encoder_forward.15} parent=0 // pred_fallthru
    _
  // Predicated region
  $region26: #{encoder_forward.15} parent=0 // pred_check
    _
  $region27: #{encoder_forward.15} parent=0 // pred_check_branch
    %166 = sbr.rel (0) target = $region29
  $region28: #{encoder_forward.15} parent=0 // pred_region
    _
  $region29: #{encoder_forward.15} parent=0 // pred_fallthru
    _

// kernel: encoder_forward.13
$region0: #{encoder_forward.13}
  #allocation0 [shape = 'u32[]', space=smem, size = 0x4, offset = 0x4, fixed_abs, tag = 'smem constant byte address 0x4 - core index']
  #allocation1 [shape = 'u32[144,128]{1,0:T(1,128)}', space=vmem, size = 0x12000, scoped, tag = 'internal scratch']
  %s0 = inlined_call_operand.vmem [shape: f32[16,32], index: 0, kind: input, shape index: {}]
  %s1 = inlined_call_operand.vmem [shape: f32[1,32], index: 1, kind: input, shape index: {}]
  %s2 = inlined_call_operand.vmem [shape: f32[1,32], index: 2, kind: input, shape index: {}]
  %s3 = inlined_call_operand.vmem [shape: f32[16,32], index: 3, kind: output, shape index: {}]
  %s4 = sld [smem:[#allocation0]]
  $region22: #{encoder_forward.13} parent=0
    _
  %s6 = ssub.s32 1, %s4
  %s7 = scalar_select 0, %s6, %s4
  // Predicated region
  $region2: #{encoder_forward.13} parent=0 // pred_check
    _
  $region3: #{encoder_forward.13} parent=0 // pred_check_branch
    %9 = sbr.rel (0) target = $region5
  $region4: #{encoder_forward.13} parent=0 // pred_region
    _
  $region5: #{encoder_forward.13} parent=0 // pred_fallthru
    _
  // Predicated region
  $region6: #{encoder_forward.13} parent=0 // pred_check
    _
  $region7: #{encoder_forward.13} parent=0 // pred_check_branch
    %11 = sbr.rel (0) target = $region9
  $region8: #{encoder_forward.13} parent=0 // pred_region
    _
  $region9: #{encoder_forward.13} parent=0 // pred_fallthru
    _
  // Predicated region
  $region10: #{encoder_forward.13} parent=0 // pred_check
    _
  $region11: #{encoder_forward.13} parent=0 // pred_check_branch
    %13 = sbr.rel (0) target = $region13
  $region12: #{encoder_forward.13} parent=0 // pred_region
    _
  $region13: #{encoder_forward.13} parent=0 // pred_fallthru
    _
  %v14 = vld [vmem:[%s0] sm:$0xff]
  %v15 = vld [vmem:[%s0 + $0x8] sm:$0xff]
  %vm16 = vcmask 261120
  %v17 = vsel %vm16, %v14, 0.0
  %18 = vadd.xlane.f32.xlu0 %v17
  %v19 = vpop.xlane.xlu0 %18
  %v20 = vsel %vm16, %v15, 0.0
  %21 = vadd.xlane.f32.xlu0 %v20
  %v22 = vpop.xlane.xlu0 %21
  %v23 = vrcp.pop 32.0
  %v24 = vmul.f32 %v19, %v23
  %v25 = vmul.f32 %v22, %v23
  %v26 = vsub.f32 %v14, %v24
  %v27 = vsub.f32 %v15, %v25
  %v28 = vmul.f32 %v26, %v26
  %v29 = vmul.f32 %v27, %v27
  %v30 = vsel %vm16, %v28, 0.0
  %31 = vadd.xlane.f32.xlu0 %v30
  %v32 = vpop.xlane.xlu0 %31
  %v33 = vsel %vm16, %v29, 0.0
  %34 = vadd.xlane.f32.xlu0 %v33
  %v35 = vpop.xlane.xlu0 %34
  %v36 = vmul.f32 %v32, %v23
  %v37 = vmul.f32 %v35, %v23
  %v38 = vadd.f32 %v36, 1e-05
  %v39 = vadd.f32 %v37, 1e-05
  %v40 = vrsqrt.pop %v38
  %v41 = vrsqrt.pop %v39
  %v42 = vmul.f32 %v26, %v40
  %v43 = vmul.f32 %v27, %v41
  %v44 = vld [vmem:[%s1] sm:$0x1]
  %v46 = vlaneseq
  %v47 = vshrl.u32 %v46, 7
  %v48 = vsub.s32 0, %v47
  %v49 = vrot.slane %v44, %v48
  %v51 = vmul.f32 %v42, %v49
  %v52 = vmul.f32 %v43, %v49
  %v53 = vld [vmem:[%s2] sm:$0x1]
  %v55 = vlaneseq
  %v56 = vshrl.u32 %v55, 7
  %v57 = vsub.s32 0, %v56
  %v58 = vrot.slane %v53, %v57
  %v60 = vadd.f32 %v51, %v58
  %v61 = vadd.f32 %v52, %v58
  %62 = vst.msk [vmem:[%s3] sm:$0xff] %vm16, %v60
  %63 = vst.msk [vmem:[%s3 + $0x8] sm:$0xff] %vm16, %v61
  // Predicated region
  $region14: #{encoder_forward.13} parent=0 // pred_check
    _
  $region15: #{encoder_forward.13} parent=0 // pred_check_branch
    %65 = sbr.rel (0) target = $region17
  $region16: #{encoder_forward.13} parent=0 // pred_region
    _
  $region17: #{encoder_forward.13} parent=0 // pred_fallthru
    _
  // Predicated region
  $region18: #{encoder_forward.13} parent=0 // pred_check
    _
  $region19: #{encoder_forward.13} parent=0 // pred_check_branch
    %67 = sbr.rel (0) target = $region21
  $region20: #{encoder_forward.13} parent=0 // pred_region
    _
  $region21: #{encoder_forward.13} parent=0 // pred_fallthru
    _

// kernel: encoder_forward.14
$region0: #{encoder_forward.14}
  #allocation0 [shape = 'u32[]', space=smem, size = 0x4, offset = 0x4, fixed_abs, tag = 'smem constant byte address 0x4 - core index']
  #allocation1 [shape = 'u32[144,128]{1,0:T(1,128)}', space=vmem, size = 0x12000, scoped, tag = 'internal scratch']
  #allocation2 [shape = 'f32[4,11,8]{2,1,0:T(8,128)}', space=vmem, size = 0x8000, scoped, tag = 'scratch operand']
  #allocation3 [shape = 'f32[4,8,32]{2,1,0:T(8,128)}', space=vmem, size = 0x4000, scoped, tag = 'scratch operand']
  #allocation4 [shape = 'f32[4,8,8]{2,1,0:T(8,128)}', space=vmem, size = 0x4000, scoped, tag = 'scratch operand']
  %s0 = inlined_call_operand.vmem [shape: f32[2,8,32], index: 0, kind: input, shape index: {}]
  %s1 = inlined_call_operand.vmem [shape: f32[1,4,32,8], index: 1, kind: input, shape index: {}]
  %s2 = inlined_call_operand.vmem [shape: f32[1,32], index: 2, kind: input, shape index: {}]
  %s3 = inlined_call_operand.vmem [shape: f32[2,8,32], index: 3, kind: output, shape index: {}]
  %s4 = sld [smem:[#allocation0]]
  $region45: #{encoder_forward.14} parent=0
    _
  %s6 = ssub.s32 1, %s4
  %s7 = scalar_select 0, %s6, %s4
  loop: start=0, step=1, limit=4
  $region2: #{encoder_forward.14} parent=0 // loop_pre_header
    _
  $region3: #{encoder_forward.14} parent=0 // loop_header
    %s9 = sphi 0, %s13
    %p10 = scmp.ge.s32.totalorder %s9, 4
    %s16 = sphi 0, %s28
    %s17 = sphi 0, %s24
    %s18 = sphi 0, %s16
    %s19 = sphi 0, %s17
    %s20 = sphi 0, %s18
    %s21 = sphi 0, %s19
    %s33 = sphi 0, %s35
    %s36 = sphi 0, %s33
    %s37 = sphi 0, %s36
    %s53 = sphi 0, %s37
    %s59 = sphi 0, %s61
    %s62 = sphi 0, %s59
    %s63 = sphi 0, %s62
    %s79 = sphi 0, %s63
    %s85 = sphi 0, %s87
    %s88 = sphi 0, %s85
    %s89 = sphi 0, %s88
    %s105 = sphi 0, %s89
    %s113 = sphi 0, %s115
    %s116 = sphi 0, %s113
    %s117 = sphi 0, %s116
    %s133 = sphi 0, %s117
  $region4: #{encoder_forward.14} parent=0 // loop_header_branch
    %12 = sbr.rel (%p10) target = $region8
  $region5: #{encoder_forward.14} parent=0 // loop_body
    %s14 = ssub.s32 %s9, 1
    %s15 = ssub.s32 %s9, 2
    %s22 = sadd.s32 1, %s17
    %p23 = scmp.ge.s32.totalorder %s22, 1
    %s24 = scalar_select %p23, 0, %s22
    %s25 = sadd.s32 1, %s16
    %s26 = scalar_select %p23, %s25, %s16
    %p27 = scmp.ge.s32.totalorder %s26, 2
    %s28 = scalar_select %p27, 0, %s26
    %s29 = ssub.s32 %s16, %s28
    %s30 = ssub.s32 %s17, %s24
    %s31 = sor.u32 %s29, %s30
    %p32 = scmp.eq.s32.totalorder %s31, 0
    %s34 = sadd.s32 %s33, 1
    %s35 = scalar_select %p32, %s33, %s34
    %p38 = pneg %p32
    %p39 = scmp.eq.s32.totalorder %s9, 1
    %p40 = por %p38, %p39
    %p41 = scmp.ne.s32.totalorder %s33, %s36
    %p42 = scmp.eq.s32.totalorder %s9, 0
    %p43 = por %p41, %p42
    %p44 = scmp.ne.s32.totalorder %s33, %s36
    %p45 = scmp.eq.s32.totalorder %s14, 1
    %p46 = por %p44, %p45
    %p47 = scmp.ne.s32.totalorder %s36, %s37
    %p48 = scmp.eq.s32.totalorder %s14, 0
    %p49 = por %p47, %p48
    %p50 = scmp.ne.s32.totalorder %s36, %s37
    %p51 = scmp.eq.s32.totalorder %s15, 1
    %p52 = por %p50, %p51
    %p54 = scmp.ne.s32.totalorder %s37, %s53
    %p55 = scmp.eq.s32.totalorder %s15, 0
    %p56 = por %p54, %p55
    %s57 = ssub.s32 %s17, %s24
    %p58 = scmp.eq.s32.totalorder %s57, 0
    %s60 = sadd.s32 %s59, 1
    %s61 = scalar_select %p58, %s59, %s60
    %p64 = pneg %p58
    %p65 = scmp.eq.s32.totalorder %s9, 1
    %p66 = por %p64, %p65
    %p67 = scmp.ne.s32.totalorder %s59, %s62
    %p68 = scmp.eq.s32.totalorder %s9, 0
    %p69 = por %p67, %p68
    %p70 = scmp.ne.s32.totalorder %s59, %s62
    %p71 = scmp.eq.s32.totalorder %s14, 1
    %p72 = por %p70, %p71
    %p73 = scmp.ne.s32.totalorder %s62, %s63
    %p74 = scmp.eq.s32.totalorder %s14, 0
    %p75 = por %p73, %p74
    %p76 = scmp.ne.s32.totalorder %s62, %s63
    %p77 = scmp.eq.s32.totalorder %s15, 1
    %p78 = por %p76, %p77
    %p80 = scmp.ne.s32.totalorder %s63, %s79
    %p81 = scmp.eq.s32.totalorder %s15, 0
    %p82 = por %p80, %p81
    %s83 = ssub.s32 %s17, %s24
    %p84 = scmp.eq.s32.totalorder %s83, 0
    %s86 = sadd.s32 %s85, 1
    %s87 = scalar_select %p84, %s85, %s86
    %p90 = pneg %p84
    %p91 = scmp.eq.s32.totalorder %s9, 1
    %p92 = por %p90, %p91
    %p93 = scmp.ne.s32.totalorder %s85, %s88
    %p94 = scmp.eq.s32.totalorder %s9, 0
    %p95 = por %p93, %p94
    %p96 = scmp.ne.s32.totalorder %s85, %s88
    %p97 = scmp.eq.s32.totalorder %s14, 1
    %p98 = por %p96, %p97
    %p99 = scmp.ne.s32.totalorder %s88, %s89
    %p100 = scmp.eq.s32.totalorder %s14, 0
    %p101 = por %p99, %p100
    %p102 = scmp.ne.s32.totalorder %s88, %s89
    %p103 = scmp.eq.s32.totalorder %s15, 1
    %p104 = por %p102, %p103
    %p106 = scmp.ne.s32.totalorder %s89, %s105
    %p107 = scmp.eq.s32.totalorder %s15, 0
    %p108 = por %p106, %p107
    %s109 = ssub.s32 %s16, %s28
    %s110 = ssub.s32 %s17, %s24
    %s111 = sor.u32 %s109, %s110
    %p112 = scmp.eq.s32.totalorder %s111, 0
    %s114 = sadd.s32 %s113, 1
    %s115 = scalar_select %p112, %s113, %s114
    %p118 = pneg %p112
    %p119 = scmp.eq.s32.totalorder %s9, 1
    %p120 = por %p118, %p119
    %p121 = scmp.ne.s32.totalorder %s113, %s116
    %p122 = scmp.eq.s32.totalorder %s9, 0
    %p123 = por %p121, %p122
    %p124 = scmp.ne.s32.totalorder %s113, %s116
    %p125 = scmp.eq.s32.totalorder %s14, 1
    %p126 = por %p124, %p125
    %p127 = scmp.ne.s32.totalorder %s116, %s117
    %p128 = scmp.eq.s32.totalorder %s14, 0
    %p129 = por %p127, %p128
    %p130 = scmp.ne.s32.totalorder %s116, %s117
    %p131 = scmp.eq.s32.totalorder %s15, 1
    %p132 = por %p130, %p131
    %p134 = scmp.ne.s32.totalorder %s117, %s133
    %p135 = scmp.eq.s32.totalorder %s15, 0
    %p136 = por %p134, %p135
    %p137 = scmp.le.s32.totalorder 1, %s9
    %p138 = scmp.lt.s32.totalorder %s9, 3
    %p139 = pnand %p137, %p138
    %p140 = pneg %p139
    // Predicated region
    $region9: #{encoder_forward.14} parent=5 // pred_check
      _
    $region10: #{encoder_forward.14} parent=5 // pred_check_branch
      %142 = sbr.rel (%p139) target = $region12
    $region11: #{encoder_forward.14} parent=5 // pred_region
      %s143 = ssub.s32 %s9, 1
      // Predicated region
      $region13: #{encoder_forward.14} parent=11 // pred_check
        %p144 = pneg %p75
      $region14: #{encoder_forward.14} parent=11 // pred_check_branch
        %146 = sbr.rel (%p144) target = $region16
      $region15: #{encoder_forward.14} parent=11 // pred_region
        %s147 = smul.u32 4, %s19
        %p148 = scmp.lt.s32.totalorder %s147, 3
        %s149 = scalar_select %p148, %s147, 3
        %s150 = smul.addr %s149, 4
        %s151 = smul.addr %s150, 8
        %s152 = scalar_lea.vmem %s1, %s151
        %s153 = smul.u32 4, %s19
      $region16: #{encoder_forward.14} parent=11 // pred_fallthru
        _
      // Predicated region
      $region17: #{encoder_forward.14} parent=11 // pred_check
        %p154 = pneg %p101
      $region18: #{encoder_forward.14} parent=11 // pred_check_branch
        %156 = sbr.rel (%p154) target = $region20
      $region19: #{encoder_forward.14} parent=11 // pred_region
        %p157 = scmp.lt.s32.totalorder %s19, 0
        %s158 = scalar_select %p157, %s19, 0
        %s159 = scalar_lea.vmem %s2, %s158
      $region20: #{encoder_forward.14} parent=11 // pred_fallthru
        _
    $region12: #{encoder_forward.14} parent=5 // pred_fallthru
      _
    %p160 = scmp.lt.s32.totalorder %s9, 2
    // Predicated region
    $region21: #{encoder_forward.14} parent=5 // pred_check
      %p161 = pneg %p160
    $region22: #{encoder_forward.14} parent=5 // pred_check_branch
      %163 = sbr.rel (%p161) target = $region24
    $region23: #{encoder_forward.14} parent=5 // pred_region
      // Predicated region
      $region25: #{encoder_forward.14} parent=23 // pred_check
        %p164 = pneg %p43
      $region26: #{encoder_forward.14} parent=23 // pred_check_branch
        %166 = sbr.rel (%p164) target = $region28
      $region27: #{encoder_forward.14} parent=23 // pred_region
        %p167 = scmp.lt.s32.totalorder %s16, 1
        %s168 = scalar_select %p167, %s16, 1
        %p169 = scmp.lt.s32.totalorder %s17, 0
        %s170 = scalar_select %p169, %s17, 0
        %s171 = sadd.s32 %s170, %s168
        %s172 = smul.addr %s171, 8
        %s173 = scalar_lea.vmem %s0, %s172
      $region28: #{encoder_forward.14} parent=23 // pred_fallthru
        _
    $region24: #{encoder_forward.14} parent=5 // pred_fallthru
      _
    %p174 = scmp.le.s32.totalorder 1, %s9
    %p175 = scmp.lt.s32.totalorder %s9, 3
    %p176 = pnand %p174, %p175
    %p177 = pneg %p176
    // Predicated region
    $region29: #{encoder_forward.14} parent=5 // pred_check
      _
    $region30: #{encoder_forward.14} parent=5 // pred_check_branch
      %179 = sbr.rel (%p176) target = $region32
    $region31: #{encoder_forward.14} parent=5 // pred_region
      %s180 = ssub.s32 %s9, 1
      %p181 = scmp.lt.s32.totalorder %s18, 1
      %s182 = scalar_select %p181, %s18, 1
      %p183 = scmp.lt.s32.totalorder %s19, 0
      %s184 = scalar_select %p183, %s19, 0
      %s185 = sadd.s32 %s184, %s182
      %s186 = smul.addr %s185, 8
      %s187 = scalar_lea.vmem %s0, %s186
      %p188 = pneg %p49
      %p189 = pneg %p46
      %s190 = smul.u32 4, %s19
      %p191 = scmp.lt.s32.totalorder %s190, 3
      %s192 = scalar_select %p191, %s190, 3
      %s193 = smul.addr %s192, 4
      %s194 = smul.addr %s193, 8
      %s195 = scalar_lea.vmem %s1, %s194
      %p196 = pneg %p75
      %p197 = pneg %p72
      %p198 = scmp.lt.s32.totalorder %s19, 0
      %s199 = scalar_select %p198, %s19, 0
      %s200 = scalar_lea.vmem %s2, %s199
      %p201 = pneg %p101
      %p202 = pneg %p98
      %p203 = pneg %p129
      %p204 = pneg %p126
      %p205 = scmp.lt.s32.totalorder %s18, 1
      %s206 = scalar_select %p205, %s18, 1
      %p207 = scmp.lt.s32.totalorder %s19, 0
      %s208 = scalar_select %p207, %s19, 0
      %s209 = sadd.s32 %s208, %s206
      %s210 = smul.addr %s209, 8
      %s211 = scalar_lea.vmem %s3, %s210
      %p212 = scmp.lt.s32.totalorder %s18, 1
      %s213 = scalar_select %p212, %s18, 1
      %p214 = scmp.lt.s32.totalorder %s19, 0
      %s215 = scalar_select %p214, %s19, 0
      %s216 = sadd.s32 %s215, %s213
      %s217 = smul.addr %s216, 8
      %s218 = scalar_lea.vmem %s0, %s217
      %s219 = smul.u32 4, %s19
      %p220 = scmp.lt.s32.totalorder %s219, 3
      %s221 = scalar_select %p220, %s219, 3
      %s222 = smul.addr %s221, 4
      %s223 = smul.addr %s222, 8
      %s224 = scalar_lea.vmem %s1, %s223
      %s225 = smul.u32 4, %s19
      %p226 = scmp.lt.s32.totalorder %s19, 0
      %s227 = scalar_select %p226, %s19, 0
      %s228 = scalar_lea.vmem %s2, %s227
      %p229 = scmp.lt.s32.totalorder %s18, 1
      %s230 = scalar_select %p229, %s18, 1
      %p231 = scmp.lt.s32.totalorder %s19, 0
      %s232 = scalar_select %p231, %s19, 0
      %s233 = sadd.s32 %s232, %s230
      %s234 = smul.addr %s233, 8
      %s235 = scalar_lea.vmem %s3, %s234
      %v236 = vld [vmem:[%s218] sm:$0xff]
      %vm237 = vcmask 58368
      %238 = vst.msk [vmem:[#allocation2] sm:$0x3] %vm237, 0.0
      %239 = vst.msk [vmem:[#allocation2 + $0x10] sm:$0x3] %vm237, 0.0
      %240 = vst.msk [vmem:[#allocation2 + $0x20] sm:$0x3] %vm237, 0.0
      %241 = vst.msk [vmem:[#allocation2 + $0x30] sm:$0x3] %vm237, 0.0
      %vm242 = vcmask 57344
      %243 = vst.msk [vmem:[#allocation2 + $0xa] sm:$0x1] %vm242, 0.0
      %244 = vst.msk [vmem:[#allocation2 + $0x1a] sm:$0x1] %vm242, 0.0
      %245 = vst.msk [vmem:[#allocation2 + $0x2a] sm:$0x1] %vm242, 0.0
      %246 = vst.msk [vmem:[#allocation2 + $0x3a] sm:$0x1] %vm242, 0.0
      %vm247 = vcmask 64512
      %248 = vst.msk [vmem:[#allocation2 + $0x2] sm:$0xff] %vm247, %v236
      %250 = vrot.lane.b32.xlu0 %v236, 120
      %v251 = vpop.permute.xlu0 %250
      %s253 = scalar_lea.vmem [#allocation2], 16
      %254 = vst.msk [vmem:[%s253 + $0x2] sm:$0xff] %vm247, %v251
      %255 = vrot.lane.b32.xlu0 %v236, 112
      %v256 = vpop.permute.xlu0 %255
      %s258 = scalar_lea.vmem [#allocation2], 32
      %259 = vst.msk [vmem:[%s258 + $0x2] sm:$0xff] %vm247, %v256
      %260 = vrot.lane.b32.xlu0 %v236, 104
      %v261 = vpop.permute.xlu0 %260
      %s263 = scalar_lea.vmem [#allocation2], 48
      %264 = vst.msk [vmem:[%s263 + $0x2] sm:$0xff] %vm247, %v261
      %265 = vst.msk [vmem:[#allocation4] sm:$0xff] %vm247, 0.0
      %266 = vst.msk [vmem:[#allocation4 + $0x8] sm:$0xff] %vm247, 0.0
      %267 = vst.msk [vmem:[#allocation4 + $0x10] sm:$0xff] %vm247, 0.0
      %268 = vst.msk [vmem:[#allocation4 + $0x18] sm:$0xff] %vm247, 0.0
      %v269 = vld [vmem:[#allocation2] sm:$0xff]
      %v270 = vld [vmem:[#allocation2 + $0x10] sm:$0xff]
      %v271 = vld [vmem:[#allocation2 + $0x20] sm:$0xff]
      %v272 = vld [vmem:[#allocation2 + $0x30] sm:$0xff]
      %273 = vst.msk [vmem:[#allocation3] sm:$0xff] %vm247, %v269
      %274 = vst.msk [vmem:[#allocation3 + $0x8] sm:$0xff] %vm247, %v270
      %275 = vst.msk [vmem:[#allocation3 + $0x10] sm:$0xff] %vm247, %v271
      %276 = vst.msk [vmem:[#allocation3 + $0x18] sm:$0xff] %vm247, %v272
      %s277 = sadd.s32 0, 1
      %s278 = scalar_lea.vmem [#allocation2], %s277
      %v279 = vld [vmem:[%s278] sm:$0xff]
      %v280 = vld [vmem:[%s278 + $0x10] sm:$0xff]
      %v281 = vld [vmem:[%s278 + $0x20] sm:$0xff]
      %v282 = vld [vmem:[%s278 + $0x30] sm:$0xff]
      %287 = vrot.lane.b32.xlu0 %v279, 8
      %v288 = vpop.permute.xlu0 %287
      %289 = vrot.lane.b32.xlu0 %v280, 8
      %v290 = vpop.permute.xlu0 %289
      %291 = vrot.lane.b32.xlu0 %v281, 8
      %v292 = vpop.permute.xlu0 %291
      %293 = vrot.lane.b32.xlu0 %v282, 8
      %v294 = vpop.permute.xlu0 %293
      %vm299 = vcmask 130112
      %300 = vst.msk [vmem:[#allocation3] sm:$0xff] %vm299, %v288
      %301 = vst.msk [vmem:[#allocation3 + $0x8] sm:$0xff] %vm299, %v290
      %302 = vst.msk [vmem:[#allocation3 + $0x10] sm:$0xff] %vm299, %v292
      %303 = vst.msk [vmem:[#allocation3 + $0x18] sm:$0xff] %vm299, %v294
      %s304 = sadd.s32 0, 2
      %s305 = scalar_lea.vmem [#allocation2], %s304
      %v306 = vld [vmem:[%s305] sm:$0xff]
      %v307 = vld [vmem:[%s305 + $0x10] sm:$0xff]
      %v308 = vld [vmem:[%s305 + $0x20] sm:$0xff]
      %v309 = vld [vmem:[%s305 + $0x30] sm:$0xff]
      %314 = vrot.lane.b32.xlu0 %v306, 16
      %v315 = vpop.permute.xlu0 %314
      %316 = vrot.lane.b32.xlu0 %v307, 16
      %v317 = vpop.permute.xlu0 %316
      %318 = vrot.lane.b32.xlu0 %v308, 16
      %v319 = vpop.permute.xlu0 %318
      %320 = vrot.lane.b32.xlu0 %v309, 16
      %v321 = vpop.permute.xlu0 %320
      %vm326 = vcmask 195712
      %327 = vst.msk [vmem:[#allocation3] sm:$0xff] %vm326, %v315
      %328 = vst.msk [vmem:[#allocation3 + $0x8] sm:$0xff] %vm326, %v317
      %329 = vst.msk [vmem:[#allocation3 + $0x10] sm:$0xff] %vm326, %v319
      %330 = vst.msk [vmem:[#allocation3 + $0x18] sm:$0xff] %vm326, %v321
      %s331 = sadd.s32 0, 3
      %s332 = scalar_lea.vmem [#allocation2], %s331
      %v333 = vld [vmem:[%s332] sm:$0xff]
      %v334 = vld [vmem:[%s332 + $0x10] sm:$0xff]
      %v335 = vld [vmem:[%s332 + $0x20] sm:$0xff]
      %v336 = vld [vmem:[%s332 + $0x30] sm:$0xff]
      %341 = vrot.lane.b32.xlu0 %v333, 24
      %v342 = vpop.permute.xlu0 %341
      %343 = vrot.lane.b32.xlu0 %v334, 24
      %v344 = vpop.permute.xlu0 %343
      %345 = vrot.lane.b32.xlu0 %v335, 24
      %v346 = vpop.permute.xlu0 %345
      %347 = vrot.lane.b32.xlu0 %v336, 24
      %v348 = vpop.permute.xlu0 %347
      %vm353 = vcmask 261312
      %354 = vst.msk [vmem:[#allocation3] sm:$0xff] %vm353, %v342
      %355 = vst.msk [vmem:[#allocation3 + $0x8] sm:$0xff] %vm353, %v344
      %356 = vst.msk [vmem:[#allocation3 + $0x10] sm:$0xff] %vm353, %v346
      %357 = vst.msk [vmem:[#allocation3 + $0x18] sm:$0xff] %vm353, %v348
      %v358 = vld [vmem:[#allocation4] sm:$0xff]
      %v359 = vld [vmem:[#allocation4 + $0x8] sm:$0xff]
      %v360 = vld [vmem:[#allocation4 + $0x10] sm:$0xff]
      %v361 = vld [vmem:[#allocation4 + $0x18] sm:$0xff]
      %v362 = vld [vmem:[#allocation3] sm:$0xff]
      %v363 = vld [vmem:[#allocation3 + $0x8] sm:$0xff]
      %v364 = vld [vmem:[#allocation3 + $0x10] sm:$0xff]
      %v365 = vld [vmem:[#allocation3 + $0x18] sm:$0xff]
      %v366 = vld [vmem:[%s224] sm:$0xff]
      %v367 = vld [vmem:[%s224 + $0x8] sm:$0xff]
      %v368 = vld [vmem:[%s224 + $0x10] sm:$0xff]
      %v369 = vld [vmem:[%s224 + $0x18] sm:$0xff]
      %v370 = vld [vmem:[%s224 + $0x20] sm:$0xff]
      %v371 = vld [vmem:[%s224 + $0x28] sm:$0xff]
      %v372 = vld [vmem:[%s224 + $0x30] sm:$0xff]
      %v373 = vld [vmem:[%s224 + $0x38] sm:$0xff]
      %v374 = vld [vmem:[%s224 + $0x40] sm:$0xff]
      %v375 = vld [vmem:[%s224 + $0x48] sm:$0xff]
      %v376 = vld [vmem:[%s224 + $0x50] sm:$0xff]
      %v377 = vld [vmem:[%s224 + $0x58] sm:$0xff]
      %v378 = vld [vmem:[%s224 + $0x60] sm:$0xff]
      %v379 = vld [vmem:[%s224 + $0x68] sm:$0xff]
      %v380 = vld [vmem:[%s224 + $0x70] sm:$0xff]
      %v381 = vld [vmem:[%s224 + $0x78] sm:$0xff]
      %vm382 = vcmask 261120
      %v384 = vsel %vm382, %v362, 0
      %386 = vmatprep.subr.mxu0 0.0
      %387 = vmatpush1.msra.mxu0 %v366
      %388 = vmatprep.subr.mxu0 0.0
      %389 = vmatpush1.msra.mxu0 %v367
      %390 = vmatprep.subr.mxu0 0.0
      %391 = vmatpush1.msra.mxu0 %v368
      %392 = vmatprep.subr.mxu0 0.0
      %393 = vmatpush1.msra.mxu0 %v369
      %394 = vmatprep.subr.mxu0 0.0
      %395 = vmatpush1.msra.mxu0 0.0
      %396 = vmatprep.subr.mxu0 0.0
      %397 = vmatpush1.msra.mxu0 0.0
      %398 = vmatprep.subr.mxu0 0.0
      %399 = vmatpush1.msra.mxu0 0.0
      %400 = vmatprep.subr.mxu0 0.0
      %401 = vmatpush1.msra.mxu0 0.0
      %402 = vmatprep.subr.mxu0 0.0
      %403 = vmatpush1.msra.mxu0 0.0
      %404 = vmatprep.subr.mxu0 0.0
      %405 = vmatpush1.msra.mxu0 0.0
      %406 = vmatprep.subr.mxu0 0.0
      %407 = vmatpush1.msra.mxu0 0.0
      %408 = vmatprep.subr.mxu0 0.0
      %409 = vmatpush1.msra.mxu0 0.0
      %410 = vmatprep.subr.mxu0 0.0
      %411 = vmatpush1.msra.mxu0 0.0
      %412 = vmatprep.subr.mxu0 0.0
      %413 = vmatpush1.msra.mxu0 0.0
      %414 = vmatprep.subr.mxu0 0.0
      %415 = vmatpush1.msra.mxu0 0.0
      %416 = vmatprep.subr.mxu0 0.0
      %417 = vmatpush1.msra.mxu0 0.0
      %418 = vmatprep.subr.mxu0 0.0
      %419 = vmatpush1.msra.mxu0 0.0
      %420 = vmatprep.subr.mxu0 0.0
      %421 = vmatpush1.msra.mxu0 0.0
      %422 = vmatprep.subr.mxu0 0.0
      %423 = vmatpush1.msra.mxu0 0.0
      %424 = vmatprep.subr.mxu0 0.0
      %425 = vmatpush1.msra.mxu0 0.0
      %426 = vmatprep.subr.mxu0 0.0
      %427 = vmatpush1.msra.mxu0 0.0
      %428 = vmatprep.subr.mxu0 0.0
      %429 = vmatpush1.msra.mxu0 0.0
      %430 = vmatprep.subr.mxu0 0.0
      %431 = vmatpush1.msra.mxu0 0.0
      %432 = vmatprep.subr.mxu0 0.0
      %433 = vmatpush1.msra.mxu0 0.0
      %434 = vmatprep.subr.mxu0 0.0
      %435 = vmatpush1.msra.mxu0 0.0
      %436 = vmatprep.subr.mxu0 0.0
      %437 = vmatpush1.msra.mxu0 0.0
      %438 = vmatprep.subr.mxu0 0.0
      %439 = vmatpush1.msra.mxu0 0.0
      %440 = vmatprep.subr.mxu0 0.0
      %441 = vmatpush1.msra.mxu0 0.0
      %442 = vmatprep.subr.mxu0 0.0
      %443 = vmatpush1.msra.mxu0 0.0
      %444 = vmatprep.subr.mxu0 0.0
      %445 = vmatpush1.msra.mxu0 0.0
      %446 = vmatprep.subr.mxu0 0.0
      %447 = vmatpush1.msra.mxu0 0.0
      %448 = vmatprep.subr.mxu0 0.0
      %449 = vmatpush1.msra.mxu0 0.0
      %450 = vmatprep.mubr.f32.mxu0 0.0
      %451 = vmatmul.mubr.f32.gmra.mrb[0].mxu0 %v384
      %v452 = vpop.f32.mrb[0].mxu0
      %v453 = vadd.f32 0.0, %v452
      %v454 = vpop.f32.mrb[0].mxu0
      %455 = vdwg.mxu0
      %v457 = vsel %vm382, %v363, 0
      %459 = vmatprep.subr.mxu0 0.0
      %460 = vmatpush1.msra.mxu0 %v370
      %461 = vmatprep.subr.mxu0 0.0
      %462 = vmatpush1.msra.mxu0 %v371
      %463 = vmatprep.subr.mxu0 0.0
      %464 = vmatpush1.msra.mxu0 %v372
      %465 = vmatprep.subr.mxu0 0.0
      %466 = vmatpush1.msra.mxu0 %v373
      %467 = vmatprep.subr.mxu0 0.0
      %468 = vmatpush1.msra.mxu0 0.0
      %469 = vmatprep.subr.mxu0 0.0
      %470 = vmatpush1.msra.mxu0 0.0
      %471 = vmatprep.subr.mxu0 0.0
      %472 = vmatpush1.msra.mxu0 0.0
      %473 = vmatprep.subr.mxu0 0.0
      %474 = vmatpush1.msra.mxu0 0.0
      %475 = vmatprep.subr.mxu0 0.0
      %476 = vmatpush1.msra.mxu0 0.0
      %477 = vmatprep.subr.mxu0 0.0
      %478 = vmatpush1.msra.mxu0 0.0
      %479 = vmatprep.subr.mxu0 0.0
      %480 = vmatpush1.msra.mxu0 0.0
      %481 = vmatprep.subr.mxu0 0.0
      %482 = vmatpush1.msra.mxu0 0.0
      %483 = vmatprep.subr.mxu0 0.0
      %484 = vmatpush1.msra.mxu0 0.0
      %485 = vmatprep.subr.mxu0 0.0
      %486 = vmatpush1.msra.mxu0 0.0
      %487 = vmatprep.subr.mxu0 0.0
      %488 = vmatpush1.msra.mxu0 0.0
      %489 = vmatprep.subr.mxu0 0.0
      %490 = vmatpush1.msra.mxu0 0.0
      %491 = vmatprep.subr.mxu0 0.0
      %492 = vmatpush1.msra.mxu0 0.0
      %493 = vmatprep.subr.mxu0 0.0
      %494 = vmatpush1.msra.mxu0 0.0
      %495 = vmatprep.subr.mxu0 0.0
      %496 = vmatpush1.msra.mxu0 0.0
      %497 = vmatprep.subr.mxu0 0.0
      %498 = vmatpush1.msra.mxu0 0.0
      %499 = vmatprep.subr.mxu0 0.0
      %500 = vmatpush1.msra.mxu0 0.0
      %501 = vmatprep.subr.mxu0 0.0
      %502 = vmatpush1.msra.mxu0 0.0
      %503 = vmatprep.subr.mxu0 0.0
      %504 = vmatpush1.msra.mxu0 0.0
      %505 = vmatprep.subr.mxu0 0.0
      %506 = vmatpush1.msra.mxu0 0.0
      %507 = vmatprep.subr.mxu0 0.0
      %508 = vmatpush1.msra.mxu0 0.0
      %509 = vmatprep.subr.mxu0 0.0
      %510 = vmatpush1.msra.mxu0 0.0
      %511 = vmatprep.subr.mxu0 0.0
      %512 = vmatpush1.msra.mxu0 0.0
      %513 = vmatprep.subr.mxu0 0.0
      %514 = vmatpush1.msra.mxu0 0.0
      %515 = vmatprep.subr.mxu0 0.0
      %516 = vmatpush1.msra.mxu0 0.0
      %517 = vmatprep.subr.mxu0 0.0
      %518 = vmatpush1.msra.mxu0 0.0
      %519 = vmatprep.subr.mxu0 0.0
      %520 = vmatpush1.msra.mxu0 0.0
      %521 = vmatprep.subr.mxu0 0.0
      %522 = vmatpush1.msra.mxu0 0.0
      %523 = vmatprep.mubr.f32.mxu0 0.0
      %524 = vmatmul.mubr.f32.gmra.mrb[0].mxu0 %v457
      %v525 = vpop.f32.mrb[0].mxu0
      %v526 = vadd.f32 0.0, %v525
      %v527 = vpop.f32.mrb[0].mxu0
      %528 = vdwg.mxu0
      %v530 = vsel %vm382, %v364, 0
      %532 = vmatprep.subr.mxu0 0.0
      %533 = vmatpush1.msra.mxu0 %v374
      %534 = vmatprep.subr.mxu0 0.0
      %535 = vmatpush1.msra.mxu0 %v375
      %536 = vmatprep.subr.mxu0 0.0
      %537 = vmatpush1.msra.mxu0 %v376
      %538 = vmatprep.subr.mxu0 0.0
      %539 = vmatpush1.msra.mxu0 %v377
      %540 = vmatprep.subr.mxu0 0.0
      %541 = vmatpush1.msra.mxu0 0.0
      %542 = vmatprep.subr.mxu0 0.0
      %543 = vmatpush1.msra.mxu0 0.0
      %544 = vmatprep.subr.mxu0 0.0
      %545 = vmatpush1.msra.mxu0 0.0
      %546 = vmatprep.subr.mxu0 0.0
      %547 = vmatpush1.msra.mxu0 0.0
      %548 = vmatprep.subr.mxu0 0.0
      %549 = vmatpush1.msra.mxu0 0.0
      %550 = vmatprep.subr.mxu0 0.0
      %551 = vmatpush1.msra.mxu0 0.0
      %552 = vmatprep.subr.mxu0 0.0
      %553 = vmatpush1.msra.mxu0 0.0
      %554 = vmatprep.subr.mxu0 0.0
      %555 = vmatpush1.msra.mxu0 0.0
      %556 = vmatprep.subr.mxu0 0.0
      %557 = vmatpush1.msra.mxu0 0.0
      %558 = vmatprep.subr.mxu0 0.0
      %559 = vmatpush1.msra.mxu0 0.0
      %560 = vmatprep.subr.mxu0 0.0
      %561 = vmatpush1.msra.mxu0 0.0
      %562 = vmatprep.subr.mxu0 0.0
      %563 = vmatpush1.msra.mxu0 0.0
      %564 = vmatprep.subr.mxu0 0.0
      %565 = vmatpush1.msra.mxu0 0.0
      %566 = vmatprep.subr.mxu0 0.0
      %567 = vmatpush1.msra.mxu0 0.0
      %568 = vmatprep.subr.mxu0 0.0
      %569 = vmatpush1.msra.mxu0 0.0
      %570 = vmatprep.subr.mxu0 0.0
      %571 = vmatpush1.msra.mxu0 0.0
      %572 = vmatprep.subr.mxu0 0.0
      %573 = vmatpush1.msra.mxu0 0.0
      %574 = vmatprep.subr.mxu0 0.0
      %575 = vmatpush1.msra.mxu0 0.0
      %576 = vmatprep.subr.mxu0 0.0
      %577 = vmatpush1.msra.mxu0 0.0
      %578 = vmatprep.subr.mxu0 0.0
      %579 = vmatpush1.msra.mxu0 0.0
      %580 = vmatprep.subr.mxu0 0.0
      %581 = vmatpush1.msra.mxu0 0.0
      %582 = vmatprep.subr.mxu0 0.0
      %583 = vmatpush1.msra.mxu0 0.0
      %584 = vmatprep.subr.mxu0 0.0
      %585 = vmatpush1.msra.mxu0 0.0
      %586 = vmatprep.subr.mxu0 0.0
      %587 = vmatpush1.msra.mxu0 0.0
      %588 = vmatprep.subr.mxu0 0.0
      %589 = vmatpush1.msra.mxu0 0.0
      %590 = vmatprep.subr.mxu0 0.0
      %591 = vmatpush1.msra.mxu0 0.0
      %592 = vmatprep.subr.mxu0 0.0
      %593 = vmatpush1.msra.mxu0 0.0
      %594 = vmatprep.subr.mxu0 0.0
      %595 = vmatpush1.msra.mxu0 0.0
      %596 = vmatprep.mubr.f32.mxu0 0.0
      %597 = vmatmul.mubr.f32.gmra.mrb[0].mxu0 %v530
      %v598 = vpop.f32.mrb[0].mxu0
      %v599 = vadd.f32 0.0, %v598
      %v600 = vpop.f32.mrb[0].mxu0
      %601 = vdwg.mxu0
      %v603 = vsel %vm382, %v365, 0
      %605 = vmatprep.subr.mxu0 0.0
      %606 = vmatpush1.msra.mxu0 %v378
      %607 = vmatprep.subr.mxu0 0.0
      %608 = vmatpush1.msra.mxu0 %v379
      %609 = vmatprep.subr.mxu0 0.0
      %610 = vmatpush1.msra.mxu0 %v380
      %611 = vmatprep.subr.mxu0 0.0
      %612 = vmatpush1.msra.mxu0 %v381
      %613 = vmatprep.subr.mxu0 0.0
      %614 = vmatpush1.msra.mxu0 0.0
      %615 = vmatprep.subr.mxu0 0.0
      %616 = vmatpush1.msra.mxu0 0.0
      %617 = vmatprep.subr.mxu0 0.0
      %618 = vmatpush1.msra.mxu0 0.0
      %619 = vmatprep.subr.mxu0 0.0
      %620 = vmatpush1.msra.mxu0 0.0
      %621 = vmatprep.subr.mxu0 0.0
      %622 = vmatpush1.msra.mxu0 0.0
      %623 = vmatprep.subr.mxu0 0.0
      %624 = vmatpush1.msra.mxu0 0.0
      %625 = vmatprep.subr.mxu0 0.0
      %626 = vmatpush1.msra.mxu0 0.0
      %627 = vmatprep.subr.mxu0 0.0
      %628 = vmatpush1.msra.mxu0 0.0
      %629 = vmatprep.subr.mxu0 0.0
      %630 = vmatpush1.msra.mxu0 0.0
      %631 = vmatprep.subr.mxu0 0.0
      %632 = vmatpush1.msra.mxu0 0.0
      %633 = vmatprep.subr.mxu0 0.0
      %634 = vmatpush1.msra.mxu0 0.0
      %635 = vmatprep.subr.mxu0 0.0
      %636 = vmatpush1.msra.mxu0 0.0
      %637 = vmatprep.subr.mxu0 0.0
      %638 = vmatpush1.msra.mxu0 0.0
      %639 = vmatprep.subr.mxu0 0.0
      %640 = vmatpush1.msra.mxu0 0.0
      %641 = vmatprep.subr.mxu0 0.0
      %642 = vmatpush1.msra.mxu0 0.0
      %643 = vmatprep.subr.mxu0 0.0
      %644 = vmatpush1.msra.mxu0 0.0
      %645 = vmatprep.subr.mxu0 0.0
      %646 = vmatpush1.msra.mxu0 0.0
      %647 = vmatprep.subr.mxu0 0.0
      %648 = vmatpush1.msra.mxu0 0.0
      %649 = vmatprep.subr.mxu0 0.0
      %650 = vmatpush1.msra.mxu0 0.0
      %651 = vmatprep.subr.mxu0 0.0
      %652 = vmatpush1.msra.mxu0 0.0
      %653 = vmatprep.subr.mxu0 0.0
      %654 = vmatpush1.msra.mxu0 0.0
      %655 = vmatprep.subr.mxu0 0.0
      %656 = vmatpush1.msra.mxu0 0.0
      %657 = vmatprep.subr.mxu0 0.0
      %658 = vmatpush1.msra.mxu0 0.0
      %659 = vmatprep.subr.mxu0 0.0
      %660 = vmatpush1.msra.mxu0 0.0
      %661 = vmatprep.subr.mxu0 0.0
      %662 = vmatpush1.msra.mxu0 0.0
      %663 = vmatprep.subr.mxu0 0.0
      %664 = vmatpush1.msra.mxu0 0.0
      %665 = vmatprep.subr.mxu0 0.0
      %666 = vmatpush1.msra.mxu0 0.0
      %667 = vmatprep.subr.mxu0 0.0
      %668 = vmatpush1.msra.mxu0 0.0
      %669 = vmatprep.mubr.f32.mxu0 0.0
      %670 = vmatmul.mubr.f32.gmra.mrb[0].mxu0 %v603
      %v671 = vpop.f32.mrb[0].mxu0
      %v672 = vadd.f32 0.0, %v671
      %v673 = vpop.f32.mrb[0].mxu0
      %674 = vdwg.mxu0
      %v675 = vadd.f32 %v358, %v453
      %v676 = vadd.f32 %v359, %v526
      %v677 = vadd.f32 %v360, %v599
      %v678 = vadd.f32 %v361, %v672
      %679 = vst.msk [vmem:[#allocation4] sm:$0xff] %vm247, %v675
      %680 = vst.msk [vmem:[#allocation4 + $0x8] sm:$0xff] %vm247, %v676
      %681 = vst.msk [vmem:[#allocation4 + $0x10] sm:$0xff] %vm247, %v677
      %682 = vst.msk [vmem:[#allocation4 + $0x18] sm:$0xff] %vm247, %v678
      %v683 = vld [vmem:[#allocation4] sm:$0xff]
      %v684 = vld [vmem:[%s228] sm:$0x1]
      %v686 = vlaneseq
      %v687 = vshrl.u32 %v686, 7
      %v688 = vsub.s32 0, %v687
      %v689 = vrot.slane %v684, %v688
      %v691 = vadd.f32 %v683, %v689
      %v692 = vld [vmem:[%s218] sm:$0xff]
      %v693 = vmul.f32 %v691, 0.5
      %v694 = vmul.f32 %v691, 0.044715
      %v695 = vmul.f32 %v694, %v691
      %v696 = vmul.f32 %v695, %v691
      %v697 = vadd.f32 %v691, %v696
      %v698 = vmul.f32 %v697, 0.7978846
      %v699 = vtanh.pop %v698
      %v700 = vadd.f32 %v699, 1.0
      %v701 = vmul.f32 %v693, %v700
      %v702 = vadd.f32 %v692, %v701
      %703 = vst.msk [vmem:[%s235] sm:$0xff] %vm247, %v702
      %s704 = scalar_lea.vmem [#allocation4], 8
      %v705 = vld [vmem:[%s704] sm:$0xff]
      %v706 = vld [vmem:[%s228] sm:$0x1]
      %v708 = vlaneseq
      %v709 = vshrl.u32 %v708, 7
      %v710 = vsub.s32 0, %v709
      %v711 = vrot.slane %v706, %v710
      %712 = vrot.lane.b32.xlu0 %v711, 120
      %v713 = vpop.permute.xlu0 %712
      %v715 = vadd.f32 %v705, %v713
      %v716 = vld [vmem:[%s218] sm:$0xff]
      %v717 = vmul.f32 %v715, 0.5
      %v718 = vmul.f32 %v715, 0.044715
      %v719 = vmul.f32 %v718, %v715
      %v720 = vmul.f32 %v719, %v715
      %v721 = vadd.f32 %v715, %v720
      %v722 = vmul.f32 %v721, 0.7978846
      %v723 = vtanh.pop %v722
      %v724 = vadd.f32 %v723, 1.0
      %v725 = vmul.f32 %v717, %v724
      %727 = vrot.lane.b32.xlu0 %v725, 8
      %v728 = vpop.permute.xlu0 %727
      %v730 = vadd.f32 %v716, %v728
      %731 = vst.msk [vmem:[%s235] sm:$0xff] %vm299, %v730
      %s732 = scalar_lea.vmem [#allocation4], 16
      %v733 = vld [vmem:[%s732] sm:$0xff]
      %v734 = vld [vmem:[%s228] sm:$0x1]
      %v736 = vlaneseq
      %v737 = vshrl.u32 %v736, 7
      %v738 = vsub.s32 0, %v737
      %v739 = vrot.slane %v734, %v738
      %740 = vrot.lane.b32.xlu0 %v739, 112
      %v741 = vpop.permute.xlu0 %740
      %v743 = vadd.f32 %v733, %v741
      %v744 = vld [vmem:[%s218] sm:$0xff]
      %v745 = vmul.f32 %v743, 0.5
      %v746 = vmul.f32 %v743, 0.044715
      %v747 = vmul.f32 %v746, %v743
      %v748 = vmul.f32 %v747, %v743
      %v749 = vadd.f32 %v743, %v748
      %v750 = vmul.f32 %v749, 0.7978846
      %v751 = vtanh.pop %v750
      %v752 = vadd.f32 %v751, 1.0
      %v753 = vmul.f32 %v745, %v752
      %755 = vrot.lane.b32.xlu0 %v753, 16
      %v756 = vpop.permute.xlu0 %755
      %v758 = vadd.f32 %v744, %v756
      %759 = vst.msk [vmem:[%s235] sm:$0xff] %vm326, %v758
      %s760 = scalar_lea.vmem [#allocation4], 24
      %v761 = vld [vmem:[%s760] sm:$0xff]
      %v762 = vld [vmem:[%s228] sm:$0x1]
      %v764 = vlaneseq
      %v765 = vshrl.u32 %v764, 7
      %v766 = vsub.s32 0, %v765
      %v767 = vrot.slane %v762, %v766
      %768 = vrot.lane.b32.xlu0 %v767, 104
      %v769 = vpop.permute.xlu0 %768
      %v771 = vadd.f32 %v761, %v769
      %v772 = vld [vmem:[%s218] sm:$0xff]
      %v773 = vmul.f32 %v771, 0.5
      %v774 = vmul.f32 %v771, 0.044715
      %v775 = vmul.f32 %v774, %v771
      %v776 = vmul.f32 %v775, %v771
      %v777 = vadd.f32 %v771, %v776
      %v778 = vmul.f32 %v777, 0.7978846
      %v779 = vtanh.pop %v778
      %v780 = vadd.f32 %v779, 1.0
      %v781 = vmul.f32 %v773, %v780
      %783 = vrot.lane.b32.xlu0 %v781, 24
      %v784 = vpop.permute.xlu0 %783
      %v786 = vadd.f32 %v772, %v784
      %787 = vst.msk [vmem:[%s235] sm:$0xff] %vm353, %v786
      %p788 = scmp.lt.s32.totalorder %s18, 1
      %s789 = scalar_select %p788, %s18, 1
      %p790 = scmp.lt.s32.totalorder %s19, 0
      %s791 = scalar_select %p790, %s19, 0
      %s792 = sadd.s32 %s791, %s789
      %s793 = smul.addr %s792, 8
      %s794 = scalar_lea.vmem %s3, %s793
      // Predicated region
      $region33: #{encoder_forward.14} parent=31 // pred_check
        %p795 = pneg %p126
      $region34: #{encoder_forward.14} parent=31 // pred_check_branch
        %797 = sbr.rel (%p795) target = $region36
      $region35: #{encoder_forward.14} parent=31 // pred_region
        _
      $region36: #{encoder_forward.14} parent=31 // pred_fallthru
        _
    $region32: #{encoder_forward.14} parent=5 // pred_fallthru
      _
    %p798 = scmp.le.s32.totalorder 2, %s9
    // Predicated region
    $region37: #{encoder_forward.14} parent=5 // pred_check
      %p799 = pneg %p798
    $region38: #{encoder_forward.14} parent=5 // pred_check_branch
      %801 = sbr.rel (%p799) target = $region40
    $region39: #{encoder_forward.14} parent=5 // pred_region
      %s802 = ssub.s32 %s9, 2
      // Predicated region
      $region41: #{encoder_forward.14} parent=39 // pred_check
        %p803 = pneg %p132
      $region42: #{encoder_forward.14} parent=39 // pred_check_branch
        %805 = sbr.rel (%p803) target = $region44
      $region43: #{encoder_forward.14} parent=39 // pred_region
        %p806 = scmp.lt.s32.totalorder %s20, 1
        %s807 = scalar_select %p806, %s20, 1
        %p808 = scmp.lt.s32.totalorder %s21, 0
        %s809 = scalar_select %p808, %s21, 0
        %s810 = sadd.s32 %s809, %s807
        %s811 = smul.addr %s810, 8
        %s812 = scalar_lea.vmem %s3, %s811
      $region44: #{encoder_forward.14} parent=39 // pred_fallthru
        _
    $region40: #{encoder_forward.14} parent=5 // pred_fallthru
      _
  $region6: #{encoder_forward.14} parent=0 // loop_footer
    %s13 = sadd.s32 1, %s9
  $region7: #{encoder_forward.14} parent=0 // loop_footer_branch
    %8 = sbr.rel target = $region3
  $region8: #{encoder_forward.14} parent=0 // loop_exit
    _

// kernel: encoder_forward.18
$region0: #{encoder_forward.18}
  #allocation0 [shape = 'u32[]', space=smem, size = 0x4, offset = 0x4, fixed_abs, tag = 'smem constant byte address 0x4 - core index']
  #allocation1 [shape = 'u32[144,128]{1,0:T(1,128)}', space=vmem, size = 0x12000, scoped, tag = 'internal scratch']
  %s0 = inlined_call_operand.vmem [shape: f32[16,32], index: 0, kind: input, shape index: {}]
  %s1 = inlined_call_operand.vmem [shape: f32[1,32], index: 1, kind: input, shape index: {}]
  %s2 = inlined_call_operand.vmem [shape: f32[1,32], index: 2, kind: input, shape index: {}]
  %s3 = inlined_call_operand.vmem [shape: f32[32,128], index: 3, kind: input, shape index: {}]
  %s4 = inlined_call_operand.vmem [shape: f32[1,128], index: 4, kind: input, shape index: {}]
  %s5 = inlined_call_operand.vmem [shape: f32[16,128], index: 5, kind: output, shape index: {}]
  %s6 = sld [smem:[#allocation0]]
  $region30: #{encoder_forward.18} parent=0
    _
  %s8 = ssub.s32 1, %s6
  %s9 = scalar_select 0, %s8, %s6
  // Predicated region
  $region2: #{encoder_forward.18} parent=0 // pred_check
    _
  $region3: #{encoder_forward.18} parent=0 // pred_check_branch
    %11 = sbr.rel (0) target = $region5
  $region4: #{encoder_forward.18} parent=0 // pred_region
    _
  $region5: #{encoder_forward.18} parent=0 // pred_fallthru
    _
  // Predicated region
  $region6: #{encoder_forward.18} parent=0 // pred_check
    _
  $region7: #{encoder_forward.18} parent=0 // pred_check_branch
    %13 = sbr.rel (0) target = $region9
  $region8: #{encoder_forward.18} parent=0 // pred_region
    _
  $region9: #{encoder_forward.18} parent=0 // pred_fallthru
    _
  // Predicated region
  $region10: #{encoder_forward.18} parent=0 // pred_check
    _
  $region11: #{encoder_forward.18} parent=0 // pred_check_branch
    %15 = sbr.rel (0) target = $region13
  $region12: #{encoder_forward.18} parent=0 // pred_region
    _
  $region13: #{encoder_forward.18} parent=0 // pred_fallthru
    _
  // Predicated region
  $region14: #{encoder_forward.18} parent=0 // pred_check
    _
  $region15: #{encoder_forward.18} parent=0 // pred_check_branch
    %17 = sbr.rel (0) target = $region17
  $region16: #{encoder_forward.18} parent=0 // pred_region
    _
  $region17: #{encoder_forward.18} parent=0 // pred_fallthru
    _
  // Predicated region
  $region18: #{encoder_forward.18} parent=0 // pred_check
    _
  $region19: #{encoder_forward.18} parent=0 // pred_check_branch
    %19 = sbr.rel (0) target = $region21
  $region20: #{encoder_forward.18} parent=0 // pred_region
    _
  $region21: #{encoder_forward.18} parent=0 // pred_fallthru
    _
  %v20 = vld [vmem:[%s0] sm:$0xff]
  %v21 = vld [vmem:[%s0 + $0x8] sm:$0xff]
  %vm22 = vcmask 261120
  %v23 = vsel %vm22, %v20, 0.0
  %24 = vadd.xlane.f32.xlu0 %v23
  %v25 = vpop.xlane.xlu0 %24
  %v26 = vsel %vm22, %v21, 0.0
  %27 = vadd.xlane.f32.xlu0 %v26
  %v28 = vpop.xlane.xlu0 %27
  %v29 = vrcp.pop 32.0
  %v30 = vmul.f32 %v25, %v29
  %v31 = vmul.f32 %v28, %v29
  %v32 = vsub.f32 %v20, %v30
  %v33 = vsub.f32 %v21, %v31
  %v34 = vmul.f32 %v32, %v32
  %v35 = vmul.f32 %v33, %v33
  %v36 = vsel %vm22, %v34, 0.0
  %37 = vadd.xlane.f32.xlu0 %v36
  %v38 = vpop.xlane.xlu0 %37
  %v39 = vsel %vm22, %v35, 0.0
  %40 = vadd.xlane.f32.xlu0 %v39
  %v41 = vpop.xlane.xlu0 %40
  %v42 = vmul.f32 %v38, %v29
  %v43 = vmul.f32 %v41, %v29
  %v44 = vadd.f32 %v42, 1e-05
  %v45 = vadd.f32 %v43, 1e-05
  %v46 = vrsqrt.pop %v44
  %v47 = vrsqrt.pop %v45
  %v48 = vmul.f32 %v32, %v46
  %v49 = vmul.f32 %v33, %v47
  %v50 = vld [vmem:[%s1] sm:$0x1]
  %v52 = vlaneseq
  %v53 = vshrl.u32 %v52, 7
  %v54 = vsub.s32 0, %v53
  %v55 = vrot.slane %v50, %v54
  %v57 = vmul.f32 %v48, %v55
  %v58 = vmul.f32 %v49, %v55
  %v59 = vld [vmem:[%s2] sm:$0x1]
  %v61 = vlaneseq
  %v62 = vshrl.u32 %v61, 7
  %v63 = vsub.s32 0, %v62
  %v64 = vrot.slane %v59, %v63
  %v66 = vadd.f32 %v57, %v64
  %v67 = vadd.f32 %v58, %v64
  %v68 = vld [vmem:[%s3] sm:$0xff]
  %v69 = vld [vmem:[%s3 + $0x8] sm:$0xff]
  %v70 = vld [vmem:[%s3 + $0x10] sm:$0xff]
  %v71 = vld [vmem:[%s3 + $0x18] sm:$0xff]
  %v72 = vld [vmem:[%s4] sm:$0x1]
  %v74 = vlaneseq
  %v75 = vshrl.u32 %v74, 7
  %v76 = vsub.s32 0, %v75
  %v77 = vrot.slane %v72, %v76
  %v80 = vsel %vm22, %v66, 0
  %v83 = vsel %vm22, %v67, 0
  %85 = vmatprep.subr.mxu0 0.0
  %86 = vmatpush1.msra.mxu0 %v68
  %87 = vmatprep.subr.mxu0 0.0
  %88 = vmatpush1.msra.mxu0 %v69
  %89 = vmatprep.subr.mxu0 0.0
  %90 = vmatpush1.msra.mxu0 %v70
  %91 = vmatprep.subr.mxu0 0.0
  %92 = vmatpush1.msra.mxu0 %v71
  %93 = vmatprep.subr.mxu0 0.0
  %94 = vmatpush1.msra.mxu0 0.0
  %95 = vmatprep.subr.mxu0 0.0
  %96 = vmatpush1.msra.mxu0 0.0
  %97 = vmatprep.subr.mxu0 0.0
  %98 = vmatpush1.msra.mxu0 0.0
  %99 = vmatprep.subr.mxu0 0.0
  %100 = vmatpush1.msra.mxu0 0.0
  %101 = vmatprep.subr.mxu0 0.0
  %102 = vmatpush1.msra.mxu0 0.0
  %103 = vmatprep.subr.mxu0 0.0
  %104 = vmatpush1.msra.mxu0 0.0
  %105 = vmatprep.subr.mxu0 0.0
  %106 = vmatpush1.msra.mxu0 0.0
  %107 = vmatprep.subr.mxu0 0.0
  %108 = vmatpush1.msra.mxu0 0.0
  %109 = vmatprep.subr.mxu0 0.0
  %110 = vmatpush1.msra.mxu0 0.0
  %111 = vmatprep.subr.mxu0 0.0
  %112 = vmatpush1.msra.mxu0 0.0
  %113 = vmatprep.subr.mxu0 0.0
  %114 = vmatpush1.msra.mxu0 0.0
  %115 = vmatprep.subr.mxu0 0.0
  %116 = vmatpush1.msra.mxu0 0.0
  %117 = vmatprep.subr.mxu0 0.0
  %118 = vmatpush1.msra.mxu0 0.0
  %119 = vmatprep.subr.mxu0 0.0
  %120 = vmatpush1.msra.mxu0 0.0
  %121 = vmatprep.subr.mxu0 0.0
  %122 = vmatpush1.msra.mxu0 0.0
  %123 = vmatprep.subr.mxu0 0.0
  %124 = vmatpush1.msra.mxu0 0.0
  %125 = vmatprep.subr.mxu0 0.0
  %126 = vmatpush1.msra.mxu0 0.0
  %127 = vmatprep.subr.mxu0 0.0
  %128 = vmatpush1.msra.mxu0 0.0
  %129 = vmatprep.subr.mxu0 0.0
  %130 = vmatpush1.msra.mxu0 0.0
  %131 = vmatprep.subr.mxu0 0.0
  %132 = vmatpush1.msra.mxu0 0.0
  %133 = vmatprep.subr.mxu0 0.0
  %134 = vmatpush1.msra.mxu0 0.0
  %135 = vmatprep.subr.mxu0 0.0
  %136 = vmatpush1.msra.mxu0 0.0
  %137 = vmatprep.subr.mxu0 0.0
  %138 = vmatpush1.msra.mxu0 0.0
  %139 = vmatprep.subr.mxu0 0.0
  %140 = vmatpush1.msra.mxu0 0.0
  %141 = vmatprep.subr.mxu0 0.0
  %142 = vmatpush1.msra.mxu0 0.0
  %143 = vmatprep.subr.mxu0 0.0
  %144 = vmatpush1.msra.mxu0 0.0
  %145 = vmatprep.subr.mxu0 0.0
  %146 = vmatpush1.msra.mxu0 0.0
  %147 = vmatprep.subr.mxu0 0.0
  %148 = vmatpush1.msra.mxu0 0.0
  %149 = vmatprep.mubr.f32.mxu0 0.0
  %150 = vmatmul.mubr.f32.gmra.mrb[0].mxu0 %v80
  %v151 = vpop.f32.mrb[0].mxu0
  %v152 = vadd.f32 %v77, %v151
  %v153 = vpop.f32.mrb[0].mxu0
  %154 = vmatprep.mubr.f32.mxu0 0.0
  %155 = vmatmul.mubr.f32.gmra.mrb[0].mxu0 %v83
  %v156 = vpop.f32.mrb[0].mxu0
  %v157 = vadd.f32 %v77, %v156
  %v158 = vpop.f32.mrb[0].mxu0
  %159 = vdwg.mxu0
  %v160 = vmul.f32 %v152, 0.5
  %v161 = vmul.f32 %v157, 0.5
  %v162 = vmul.f32 %v152, 0.044715
  %v163 = vmul.f32 %v157, 0.044715
  %v164 = vmul.f32 %v162, %v152
  %v165 = vmul.f32 %v163, %v157
  %v166 = vmul.f32 %v164, %v152
  %v167 = vmul.f32 %v165, %v157
  %v168 = vadd.f32 %v152, %v166
  %v169 = vadd.f32 %v157, %v167
  %v170 = vmul.f32 %v168, 0.7978846
  %v171 = vmul.f32 %v169, 0.7978846
  %v172 = vtanh.pop %v170
  %v173 = vtanh.pop %v171
  %v174 = vadd.f32 %v172, 1.0
  %v175 = vadd.f32 %v173, 1.0
  %v176 = vmul.f32 %v160, %v174
  %v177 = vmul.f32 %v161, %v175
  %178 = vst [vmem:[%s5] sm:$0xff] %v176
  %179 = vst [vmem:[%s5 + $0x8] sm:$0xff] %v177
  // Predicated region
  $region22: #{encoder_forward.18} parent=0 // pred_check
    _
  $region23: #{encoder_forward.18} parent=0 // pred_check_branch
    %181 = sbr.rel (0) target = $region25
  $region24: #{encoder_forward.18} parent=0 // pred_region
    _
  $region25: #{encoder_forward.18} parent=0 // pred_fallthru
    _
  // Predicated region
  $region26: #{encoder_forward.18} parent=0 // pred_check
    _
  $region27: #{encoder_forward.18} parent=0 // pred_check_branch
    %183 = sbr.rel (0) target = $region29
  $region28: #{encoder_forward.18} parent=0 // pred_region
    _
  $region29: #{encoder_forward.18} parent=0 // pred_fallthru
    _

// kernel: encoder_forward.17
$region0: #{encoder_forward.17}
  #allocation0 [shape = 'u32[]', space=smem, size = 0x4, offset = 0x4, fixed_abs, tag = 'smem constant byte address 0x4 - core index']
  #allocation1 [shape = 'u32[144,128]{1,0:T(1,128)}', space=vmem, size = 0x12000, scoped, tag = 'internal scratch']
  #allocation2 [shape = 'f32[16,32]{1,0:T(8,128)}', space=vmem, size = 0x2000, scoped, tag = 'scratch operand']
  %s0 = inlined_call_operand.vmem [shape: f32[16,32], index: 0, kind: input, shape index: {}]
  %s1 = inlined_call_operand.vmem [shape: f32[32,32], index: 1, kind: input, shape index: {}]
  %s2 = inlined_call_operand.vmem [shape: f32[1,32], index: 2, kind: input, shape index: {}]
  %s3 = inlined_call_operand.vmem [shape: f32[16,32], index: 3, kind: input, shape index: {}]
  %s4 = inlined_call_operand.vmem [shape: f32[16,32], index: 4, kind: output, shape index: {}]
  %s5 = sld [smem:[#allocation0]]
  $region34: #{encoder_forward.17} parent=0
    _
  %s7 = ssub.s32 1, %s5
  %s8 = scalar_select 0, %s7, %s5
  // Predicated region
  $region2: #{encoder_forward.17} parent=0 // pred_check
    _
  $region3: #{encoder_forward.17} parent=0 // pred_check_branch
    %10 = sbr.rel (0) target = $region5
  $region4: #{encoder_forward.17} parent=0 // pred_region
    _
  $region5: #{encoder_forward.17} parent=0 // pred_fallthru
    _
  // Predicated region
  $region6: #{encoder_forward.17} parent=0 // pred_check
    _
  $region7: #{encoder_forward.17} parent=0 // pred_check_branch
    %12 = sbr.rel (0) target = $region9
  $region8: #{encoder_forward.17} parent=0 // pred_region
    _
  $region9: #{encoder_forward.17} parent=0 // pred_fallthru
    _
  // Predicated region
  $region10: #{encoder_forward.17} parent=0 // pred_check
    _
  $region11: #{encoder_forward.17} parent=0 // pred_check_branch
    %14 = sbr.rel (0) target = $region13
  $region12: #{encoder_forward.17} parent=0 // pred_region
    _
  $region13: #{encoder_forward.17} parent=0 // pred_fallthru
    _
  // Predicated region
  $region14: #{encoder_forward.17} parent=0 // pred_check
    _
  $region15: #{encoder_forward.17} parent=0 // pred_check_branch
    %16 = sbr.rel (0) target = $region17
  $region16: #{encoder_forward.17} parent=0 // pred_region
    _
  $region17: #{encoder_forward.17} parent=0 // pred_fallthru
    _
  %p17 = scmp.eq.s32.totalorder 0, 0
  // Predicated region
  $region18: #{encoder_forward.17} parent=0 // pred_check
    %p18 = pneg %p17
  $region19: #{encoder_forward.17} parent=0 // pred_check_branch
    %20 = sbr.rel (%p18) target = $region21
  $region20: #{encoder_forward.17} parent=0 // pred_region
    %vm21 = vcmask 261120
    %22 = vst.msk [vmem:[#allocation2] sm:$0xff] %vm21, 0.0
    %23 = vst.msk [vmem:[#allocation2 + $0x8] sm:$0xff] %vm21, 0.0
  $region21: #{encoder_forward.17} parent=0 // pred_fallthru
    _
  %v24 = vld [vmem:[#allocation2] sm:$0xff]
  %v25 = vld [vmem:[#allocation2 + $0x8] sm:$0xff]
  %v26 = vld [vmem:[%s0] sm:$0xff]
  %v27 = vld [vmem:[%s0 + $0x8] sm:$0xff]
  %v28 = vld [vmem:[%s1] sm:$0xff]
  %v29 = vld [vmem:[%s1 + $0x8] sm:$0xff]
  %v30 = vld [vmem:[%s1 + $0x10] sm:$0xff]
  %v31 = vld [vmem:[%s1 + $0x18] sm:$0xff]
  %vm32 = vcmask 261120
  %v34 = vsel %vm32, %v26, 0
  %v37 = vsel %vm32, %v27, 0
  %39 = vmatprep.subr.mxu0 0.0
  %40 = vmatpush1.msra.mxu0 %v28
  %41 = vmatprep.subr.mxu0 0.0
  %42 = vmatpush1.msra.mxu0 %v29
  %43 = vmatprep.subr.mxu0 0.0
  %44 = vmatpush1.msra.mxu0 %v30
  %45 = vmatprep.subr.mxu0 0.0
  %46 = vmatpush1.msra.mxu0 %v31
  %47 = vmatprep.subr.mxu0 0.0
  %48 = vmatpush1.msra.mxu0 0.0
  %49 = vmatprep.subr.mxu0 0.0
  %50 = vmatpush1.msra.mxu0 0.0
  %51 = vmatprep.subr.mxu0 0.0
  %52 = vmatpush1.msra.mxu0 0.0
  %53 = vmatprep.subr.mxu0 0.0
  %54 = vmatpush1.msra.mxu0 0.0
  %55 = vmatprep.subr.mxu0 0.0
  %56 = vmatpush1.msra.mxu0 0.0
  %57 = vmatprep.subr.mxu0 0.0
  %58 = vmatpush1.msra.mxu0 0.0
  %59 = vmatprep.subr.mxu0 0.0
  %60 = vmatpush1.msra.mxu0 0.0
  %61 = vmatprep.subr.mxu0 0.0
  %62 = vmatpush1.msra.mxu0 0.0
  %63 = vmatprep.subr.mxu0 0.0
  %64 = vmatpush1.msra.mxu0 0.0
  %65 = vmatprep.subr.mxu0 0.0
  %66 = vmatpush1.msra.mxu0 0.0
  %67 = vmatprep.subr.mxu0 0.0
  %68 = vmatpush1.msra.mxu0 0.0
  %69 = vmatprep.subr.mxu0 0.0
  %70 = vmatpush1.msra.mxu0 0.0
  %71 = vmatprep.subr.mxu0 0.0
  %72 = vmatpush1.msra.mxu0 0.0
  %73 = vmatprep.subr.mxu0 0.0
  %74 = vmatpush1.msra.mxu0 0.0
  %75 = vmatprep.subr.mxu0 0.0
  %76 = vmatpush1.msra.mxu0 0.0
  %77 = vmatprep.subr.mxu0 0.0
  %78 = vmatpush1.msra.mxu0 0.0
  %79 = vmatprep.subr.mxu0 0.0
  %80 = vmatpush1.msra.mxu0 0.0
  %81 = vmatprep.subr.mxu0 0.0
  %82 = vmatpush1.msra.mxu0 0.0
  %83 = vmatprep.subr.mxu0 0.0
  %84 = vmatpush1.msra.mxu0 0.0
  %85 = vmatprep.subr.mxu0 0.0
  %86 = vmatpush1.msra.mxu0 0.0
  %87 = vmatprep.subr.mxu0 0.0
  %88 = vmatpush1.msra.mxu0 0.0
  %89 = vmatprep.subr.mxu0 0.0
  %90 = vmatpush1.msra.mxu0 0.0
  %91 = vmatprep.subr.mxu0 0.0
  %92 = vmatpush1.msra.mxu0 0.0
  %93 = vmatprep.subr.mxu0 0.0
  %94 = vmatpush1.msra.mxu0 0.0
  %95 = vmatprep.subr.mxu0 0.0
  %96 = vmatpush1.msra.mxu0 0.0
  %97 = vmatprep.subr.mxu0 0.0
  %98 = vmatpush1.msra.mxu0 0.0
  %99 = vmatprep.subr.mxu0 0.0
  %100 = vmatpush1.msra.mxu0 0.0
  %101 = vmatprep.subr.mxu0 0.0
  %102 = vmatpush1.msra.mxu0 0.0
  %103 = vmatprep.mubr.f32.mxu0 0.0
  %104 = vmatmul.mubr.f32.gmra.mrb[0].mxu0 %v34
  %v105 = vpop.f32.mrb[0].mxu0
  %v106 = vadd.f32 0.0, %v105
  %v107 = vpop.f32.mrb[0].mxu0
  %108 = vmatprep.mubr.f32.mxu0 0.0
  %109 = vmatmul.mubr.f32.gmra.mrb[0].mxu0 %v37
  %v110 = vpop.f32.mrb[0].mxu0
  %v111 = vadd.f32 0.0, %v110
  %v112 = vpop.f32.mrb[0].mxu0
  %113 = vdwg.mxu0
  %v114 = vadd.f32 %v24, %v106
  %v115 = vadd.f32 %v25, %v111
  %116 = vst.msk [vmem:[#allocation2] sm:$0xff] %vm32, %v114
  %117 = vst.msk [vmem:[#allocation2 + $0x8] sm:$0xff] %vm32, %v115
  // Predicated region
  $region22: #{encoder_forward.17} parent=0 // pred_check
    %p118 = pneg %p17
  $region23: #{encoder_forward.17} parent=0 // pred_check_branch
    %120 = sbr.rel (%p118) target = $region25
  $region24: #{encoder_forward.17} parent=0 // pred_region
    %v121 = vld [vmem:[#allocation2] sm:$0xff]
    %v122 = vld [vmem:[#allocation2 + $0x8] sm:$0xff]
    %v123 = vld [vmem:[%s2] sm:$0x1]
    %v125 = vlaneseq
    %v126 = vshrl.u32 %v125, 7
    %v127 = vsub.s32 0, %v126
    %v128 = vrot.slane %v123, %v127
    %v130 = vadd.f32 %v121, %v128
    %v131 = vadd.f32 %v122, %v128
    %v132 = vld [vmem:[%s3] sm:$0xff]
    %v133 = vld [vmem:[%s3 + $0x8] sm:$0xff]
    %v134 = vadd.f32 %v130, %v132
    %v135 = vadd.f32 %v131, %v133
    %136 = vst.msk [vmem:[%s4] sm:$0xff] %vm32, %v134
    %137 = vst.msk [vmem:[%s4 + $0x8] sm:$0xff] %vm32, %v135
  $region25: #{encoder_forward.17} parent=0 // pred_fallthru
    _
  // Predicated region
  $region26: #{encoder_forward.17} parent=0 // pred_check
    _
  $region27: #{encoder_forward.17} parent=0 // pred_check_branch
    %139 = sbr.rel (0) target = $region29
  $region28: #{encoder_forward.17} parent=0 // pred_region
    _
  $region29: #{encoder_forward.17} parent=0 // pred_fallthru
    _
  // Predicated region
  $region30: #{encoder_forward.17} parent=0 // pred_check
    _
  $region31: #{encoder_forward.17} parent=0 // pred_check_branch
    %141 = sbr.rel (0) target = $region33
  $region32: #{encoder_forward.17} parent=0 // pred_region
    _
  $region33: #{encoder_forward.17} parent=0 // pred_fallthru
    _

// kernel: encoder_forward.19
$region0: #{encoder_forward.19}
  #allocation0 [shape = 'u32[]', space=smem, size = 0x4, offset = 0x4, fixed_abs, tag = 'smem constant byte address 0x4 - core index']
  #allocation1 [shape = 'u32[144,128]{1,0:T(1,128)}', space=vmem, size = 0x12000, scoped, tag = 'internal scratch']
  #allocation2 [shape = 'f32[16,32]{1,0:T(8,128)}', space=vmem, size = 0x2000, scoped, tag = 'scratch operand']
  %s0 = inlined_call_operand.vmem [shape: f32[16,128], index: 0, kind: input, shape index: {}]
  %s1 = inlined_call_operand.vmem [shape: f32[128,32], index: 1, kind: input, shape index: {}]
  %s2 = inlined_call_operand.vmem [shape: f32[1,32], index: 2, kind: input, shape index: {}]
  %s3 = inlined_call_operand.vmem [shape: f32[16,32], index: 3, kind: input, shape index: {}]
  %s4 = inlined_call_operand.vmem [shape: f32[16,32], index: 4, kind: output, shape index: {}]
  %s5 = sld [smem:[#allocation0]]
  $region34: #{encoder_forward.19} parent=0
    _
  %s7 = ssub.s32 1, %s5
  %s8 = scalar_select 0, %s7, %s5
  // Predicated region
  $region2: #{encoder_forward.19} parent=0 // pred_check
    _
  $region3: #{encoder_forward.19} parent=0 // pred_check_branch
    %10 = sbr.rel (0) target = $region5
  $region4: #{encoder_forward.19} parent=0 // pred_region
    _
  $region5: #{encoder_forward.19} parent=0 // pred_fallthru
    _
  // Predicated region
  $region6: #{encoder_forward.19} parent=0 // pred_check
    _
  $region7: #{encoder_forward.19} parent=0 // pred_check_branch
    %12 = sbr.rel (0) target = $region9
  $region8: #{encoder_forward.19} parent=0 // pred_region
    _
  $region9: #{encoder_forward.19} parent=0 // pred_fallthru
    _
  // Predicated region
  $region10: #{encoder_forward.19} parent=0 // pred_check
    _
  $region11: #{encoder_forward.19} parent=0 // pred_check_branch
    %14 = sbr.rel (0) target = $region13
  $region12: #{encoder_forward.19} parent=0 // pred_region
    _
  $region13: #{encoder_forward.19} parent=0 // pred_fallthru
    _
  // Predicated region
  $region14: #{encoder_forward.19} parent=0 // pred_check
    _
  $region15: #{encoder_forward.19} parent=0 // pred_check_branch
    %16 = sbr.rel (0) target = $region17
  $region16: #{encoder_forward.19} parent=0 // pred_region
    _
  $region17: #{encoder_forward.19} parent=0 // pred_fallthru
    _
  %p17 = scmp.eq.s32.totalorder 0, 0
  // Predicated region
  $region18: #{encoder_forward.19} parent=0 // pred_check
    %p18 = pneg %p17
  $region19: #{encoder_forward.19} parent=0 // pred_check_branch
    %20 = sbr.rel (%p18) target = $region21
  $region20: #{encoder_forward.19} parent=0 // pred_region
    %vm21 = vcmask 261120
    %22 = vst.msk [vmem:[#allocation2] sm:$0xff] %vm21, 0.0
    %23 = vst.msk [vmem:[#allocation2 + $0x8] sm:$0xff] %vm21, 0.0
  $region21: #{encoder_forward.19} parent=0 // pred_fallthru
    _
  %v24 = vld [vmem:[#allocation2] sm:$0xff]
  %v25 = vld [vmem:[#allocation2 + $0x8] sm:$0xff]
  %v26 = vld [vmem:[%s0] sm:$0xff]
  %v27 = vld [vmem:[%s0 + $0x8] sm:$0xff]
  %v28 = vld [vmem:[%s1] sm:$0xff]
  %v29 = vld [vmem:[%s1 + $0x8] sm:$0xff]
  %v30 = vld [vmem:[%s1 + $0x10] sm:$0xff]
  %v31 = vld [vmem:[%s1 + $0x18] sm:$0xff]
  %v32 = vld [vmem:[%s1 + $0x20] sm:$0xff]
  %v33 = vld [vmem:[%s1 + $0x28] sm:$0xff]
  %v34 = vld [vmem:[%s1 + $0x30] sm:$0xff]
  %v35 = vld [vmem:[%s1 + $0x38] sm:$0xff]
  %v36 = vld [vmem:[%s1 + $0x40] sm:$0xff]
  %v37 = vld [vmem:[%s1 + $0x48] sm:$0xff]
  %v38 = vld [vmem:[%s1 + $0x50] sm:$0xff]
  %v39 = vld [vmem:[%s1 + $0x58] sm:$0xff]
  %v40 = vld [vmem:[%s1 + $0x60] sm:$0xff]
  %v41 = vld [vmem:[%s1 + $0x68] sm:$0xff]
  %v42 = vld [vmem:[%s1 + $0x70] sm:$0xff]
  %v43 = vld [vmem:[%s1 + $0x78] sm:$0xff]
  %44 = vmatprep.subr.mxu0 0.0
  %45 = vmatpush1.msra.mxu0 %v28
  %46 = vmatprep.subr.mxu0 0.0
  %47 = vmatpush1.msra.mxu0 %v29
  %48 = vmatprep.subr.mxu0 0.0
  %49 = vmatpush1.msra.mxu0 %v30
  %50 = vmatprep.subr.mxu0 0.0
  %51 = vmatpush1.msra.mxu0 %v31
  %52 = vmatprep.subr.mxu0 0.0
  %53 = vmatpush1.msra.mxu0 %v32
  %54 = vmatprep.subr.mxu0 0.0
  %55 = vmatpush1.msra.mxu0 %v33
  %56 = vmatprep.subr.mxu0 0.0
  %57 = vmatpush1.msra.mxu0 %v34
  %58 = vmatprep.subr.mxu0 0.0
  %59 = vmatpush1.msra.mxu0 %v35
  %60 = vmatprep.subr.mxu0 0.0
  %61 = vmatpush1.msra.mxu0 %v36
  %62 = vmatprep.subr.mxu0 0.0
  %63 = vmatpush1.msra.mxu0 %v37
  %64 = vmatprep.subr.mxu0 0.0
  %65 = vmatpush1.msra.mxu0 %v38
  %66 = vmatprep.subr.mxu0 0.0
  %67 = vmatpush1.msra.mxu0 %v39
  %68 = vmatprep.subr.mxu0 0.0
  %69 = vmatpush1.msra.mxu0 %v40
  %70 = vmatprep.subr.mxu0 0.0
  %71 = vmatpush1.msra.mxu0 %v41
  %72 = vmatprep.subr.mxu0 0.0
  %73 = vmatpush1.msra.mxu0 %v42
  %74 = vmatprep.subr.mxu0 0.0
  %75 = vmatpush1.msra.mxu0 %v43
  %76 = vmatprep.subr.mxu0 0.0
  %77 = vmatpush1.msra.mxu0 0.0
  %78 = vmatprep.subr.mxu0 0.0
  %79 = vmatpush1.msra.mxu0 0.0
  %80 = vmatprep.subr.mxu0 0.0
  %81 = vmatpush1.msra.mxu0 0.0
  %82 = vmatprep.subr.mxu0 0.0
  %83 = vmatpush1.msra.mxu0 0.0
  %84 = vmatprep.subr.mxu0 0.0
  %85 = vmatpush1.msra.mxu0 0.0
  %86 = vmatprep.subr.mxu0 0.0
  %87 = vmatpush1.msra.mxu0 0.0
  %88 = vmatprep.subr.mxu0 0.0
  %89 = vmatpush1.msra.mxu0 0.0
  %90 = vmatprep.subr.mxu0 0.0
  %91 = vmatpush1.msra.mxu0 0.0
  %92 = vmatprep.subr.mxu0 0.0
  %93 = vmatpush1.msra.mxu0 0.0
  %94 = vmatprep.subr.mxu0 0.0
  %95 = vmatpush1.msra.mxu0 0.0
  %96 = vmatprep.subr.mxu0 0.0
  %97 = vmatpush1.msra.mxu0 0.0
  %98 = vmatprep.subr.mxu0 0.0
  %99 = vmatpush1.msra.mxu0 0.0
  %100 = vmatprep.subr.mxu0 0.0
  %101 = vmatpush1.msra.mxu0 0.0
  %102 = vmatprep.subr.mxu0 0.0
  %103 = vmatpush1.msra.mxu0 0.0
  %104 = vmatprep.subr.mxu0 0.0
  %105 = vmatpush1.msra.mxu0 0.0
  %106 = vmatprep.subr.mxu0 0.0
  %107 = vmatpush1.msra.mxu0 0.0
  %108 = vmatprep.mubr.f32.mxu0 0.0
  %109 = vmatmul.mubr.f32.gmra.mrb[0].mxu0 %v26
  %v110 = vpop.f32.mrb[0].mxu0
  %v111 = vadd.f32 0.0, %v110
  %v112 = vpop.f32.mrb[0].mxu0
  %113 = vmatprep.mubr.f32.mxu0 0.0
  %114 = vmatmul.mubr.f32.gmra.mrb[0].mxu0 %v27
  %v115 = vpop.f32.mrb[0].mxu0
  %v116 = vadd.f32 0.0, %v115
  %v117 = vpop.f32.mrb[0].mxu0
  %118 = vdwg.mxu0
  %v119 = vadd.f32 %v24, %v111
  %v120 = vadd.f32 %v25, %v116
  %vm121 = vcmask 261120
  %122 = vst.msk [vmem:[#allocation2] sm:$0xff] %vm121, %v119
  %123 = vst.msk [vmem:[#allocation2 + $0x8] sm:$0xff] %vm121, %v120
  // Predicated region
  $region22: #{encoder_forward.19} parent=0 // pred_check
    %p124 = pneg %p17
  $region23: #{encoder_forward.19} parent=0 // pred_check_branch
    %126 = sbr.rel (%p124) target = $region25
  $region24: #{encoder_forward.19} parent=0 // pred_region
    %v127 = vld [vmem:[#allocation2] sm:$0xff]
    %v128 = vld [vmem:[#allocation2 + $0x8] sm:$0xff]
    %v129 = vld [vmem:[%s2] sm:$0x1]
    %v131 = vlaneseq
    %v132 = vshrl.u32 %v131, 7
    %v133 = vsub.s32 0, %v132
    %v134 = vrot.slane %v129, %v133
    %v136 = vadd.f32 %v127, %v134
    %v137 = vadd.f32 %v128, %v134
    %v138 = vld [vmem:[%s3] sm:$0xff]
    %v139 = vld [vmem:[%s3 + $0x8] sm:$0xff]
    %v140 = vadd.f32 %v136, %v138
    %v141 = vadd.f32 %v137, %v139
    %142 = vst.msk [vmem:[%s4] sm:$0xff] %vm121, %v140
    %143 = vst.msk [vmem:[%s4 + $0x8] sm:$0xff] %vm121, %v141
  $region25: #{encoder_forward.19} parent=0 // pred_fallthru
    _
  // Predicated region
  $region26: #{encoder_forward.19} parent=0 // pred_check
    _
  $region27: #{encoder_forward.19} parent=0 // pred_check_branch
    %145 = sbr.rel (0) target = $region29
  $region28: #{encoder_forward.19} parent=0 // pred_region
    _
  $region29: #{encoder_forward.19} parent=0 // pred_fallthru
    _
  // Predicated region
  $region30: #{encoder_forward.19} parent=0 // pred_check
    _
  $region31: #{encoder_forward.19} parent=0 // pred_check_branch
    %147 = sbr.rel (0) target = $region33
  $region32: #{encoder_forward.19} parent=0 // pred_region
    _
  $region33: #{encoder_forward.19} parent=0 // pred_fallthru
    _

// kernel: encoder_forward.16
$region0: #{encoder_forward.16}
  #allocation0 [shape = 'u32[]', space=smem, size = 0x4, offset = 0x4, fixed_abs, tag = 'smem constant byte address 0x4 - core index']
  #allocation1 [shape = 'u32[144,128]{1,0:T(1,128)}', space=vmem, size = 0x12000, scoped, tag = 'internal scratch']
  #allocation2 [shape = 'f32[4,8,1]{2,1,0:T(8,128)}', space=vmem, size = 0x4000, scoped, tag = 'scratch operand']
  #allocation3 [shape = 'f32[4,8,1]{2,1,0:T(8,128)}', space=vmem, size = 0x4000, scoped, tag = 'scratch operand']
  #allocation4 [shape = 'f32[4,8,8]{2,1,0:T(8,128)}', space=vmem, size = 0x4000, scoped, tag = 'scratch operand']
  %s0 = inlined_call_operand.vmem [shape: f32[3,2,4,8,8], index: 0, kind: input, shape index: {}, may-alias: {0,1,2}]
  %s1 = inlined_call_operand.vmem [shape: f32[3,2,4,8,8], index: 1, kind: input, shape index: {}, may-alias: {0,1,2}]
  %s2 = inlined_call_operand.vmem [shape: f32[3,2,4,8,8], index: 2, kind: input, shape index: {}, may-alias: {0,1,2}]
  %s3 = inlined_call_operand.vmem [shape: f32[2,8,32], index: 3, kind: output, shape index: {}]
  %s4 = sld [smem:[#allocation0]]
  $region53: #{encoder_forward.16} parent=0
    _
  %s6 = ssub.s32 1, %s4
  %s7 = scalar_select 0, %s6, %s4
  loop: start=0, step=1, limit=4
  $region2: #{encoder_forward.16} parent=0 // loop_pre_header
    _
  $region3: #{encoder_forward.16} parent=0 // loop_header
    %s9 = sphi 0, %s13
    %p10 = scmp.ge.s32.totalorder %s9, 4
    %s16 = sphi 0, %s35
    %s17 = sphi 0, %s31
    %s18 = sphi 0, %s27
    %s19 = sphi 0, %s16
    %s20 = sphi 0, %s17
    %s21 = sphi 0, %s18
    %s22 = sphi 0, %s19
    %s23 = sphi 0, %s20
    %s24 = sphi 0, %s21
    %s40 = sphi 0, %s42
    %s43 = sphi 0, %s40
    %s44 = sphi 0, %s43
    %s60 = sphi 0, %s44
    %s68 = sphi 0, %s70
    %s71 = sphi 0, %s68
    %s72 = sphi 0, %s71
    %s88 = sphi 0, %s72
    %s96 = sphi 0, %s98
    %s99 = sphi 0, %s96
    %s100 = sphi 0, %s99
    %s116 = sphi 0, %s100
    %s124 = sphi 0, %s126
    %s127 = sphi 0, %s124
    %s128 = sphi 0, %s127
    %s144 = sphi 0, %s128
  $region4: #{encoder_forward.16} parent=0 // loop_header_branch
    %12 = sbr.rel (%p10) target = $region8
  $region5: #{encoder_forward.16} parent=0 // loop_body
    %s14 = ssub.s32 %s9, 1
    %s15 = ssub.s32 %s9, 2
    %s25 = sadd.s32 1, %s18
    %p26 = scmp.ge.s32.totalorder %s25, 1
    %s27 = scalar_select %p26, 0, %s25
    %s28 = sadd.s32 1, %s17
    %s29 = scalar_select %p26, %s28, %s17
    %p30 = scmp.ge.s32.totalorder %s29, 1
    %s31 = scalar_select %p30, 0, %s29
    %s32 = sadd.s32 1, %s16
    %s33 = scalar_select %p30, %s32, %s16
    %p34 = scmp.ge.s32.totalorder %s33, 2
    %s35 = scalar_select %p34, 0, %s33
    %s36 = ssub.s32 %s16, %s35
    %s37 = ssub.s32 %s17, %s31
    %s38 = sor.u32 %s36, %s37
    %p39 = scmp.eq.s32.totalorder %s38, 0
    %s41 = sadd.s32 %s40, 1
    %s42 = scalar_select %p39, %s40, %s41
    %p45 = pneg %p39
    %p46 = scmp.eq.s32.totalorder %s9, 1
    %p47 = por %p45, %p46
    %p48 = scmp.ne.s32.totalorder %s40, %s43
    %p49 = scmp.eq.s32.totalorder %s9, 0
    %p50 = por %p48, %p49
    %p51 = scmp.ne.s32.totalorder %s40, %s43
    %p52 = scmp.eq.s32.totalorder %s14, 1
    %p53 = por %p51, %p52
    %p54 = scmp.ne.s32.totalorder %s43, %s44
    %p55 = scmp.eq.s32.totalorder %s14, 0
    %p56 = por %p54, %p55
    %p57 = scmp.ne.s32.totalorder %s43, %s44
    %p58 = scmp.eq.s32.totalorder %s15, 1
    %p59 = por %p57, %p58
    %p61 = scmp.ne.s32.totalorder %s44, %s60
    %p62 = scmp.eq.s32.totalorder %s15, 0
    %p63 = por %p61, %p62
    %s64 = ssub.s32 %s16, %s35
    %s65 = ssub.s32 %s18, %s27
    %s66 = sor.u32 %s64, %s65
    %p67 = scmp.eq.s32.totalorder %s66, 0
    %s69 = sadd.s32 %s68, 1
    %s70 = scalar_select %p67, %s68, %s69
    %p73 = pneg %p67
    %p74 = scmp.eq.s32.totalorder %s9, 1
    %p75 = por %p73, %p74
    %p76 = scmp.ne.s32.totalorder %s68, %s71
    %p77 = scmp.eq.s32.totalorder %s9, 0
    %p78 = por %p76, %p77
    %p79 = scmp.ne.s32.totalorder %s68, %s71
    %p80 = scmp.eq.s32.totalorder %s14, 1
    %p81 = por %p79, %p80
    %p82 = scmp.ne.s32.totalorder %s71, %s72
    %p83 = scmp.eq.s32.totalorder %s14, 0
    %p84 = por %p82, %p83
    %p85 = scmp.ne.s32.totalorder %s71, %s72
    %p86 = scmp.eq.s32.totalorder %s15, 1
    %p87 = por %p85, %p86
    %p89 = scmp.ne.s32.totalorder %s72, %s88
    %p90 = scmp.eq.s32.totalorder %s15, 0
    %p91 = por %p89, %p90
    %s92 = ssub.s32 %s16, %s35
    %s93 = ssub.s32 %s18, %s27
    %s94 = sor.u32 %s92, %s93
    %p95 = scmp.eq.s32.totalorder %s94, 0
    %s97 = sadd.s32 %s96, 1
    %s98 = scalar_select %p95, %s96, %s97
    %p101 = pneg %p95
    %p102 = scmp.eq.s32.totalorder %s9, 1
    %p103 = por %p101, %p102
    %p104 = scmp.ne.s32.totalorder %s96, %s99
    %p105 = scmp.eq.s32.totalorder %s9, 0
    %p106 = por %p104, %p105
    %p107 = scmp.ne.s32.totalorder %s96, %s99
    %p108 = scmp.eq.s32.totalorder %s14, 1
    %p109 = por %p107, %p108
    %p110 = scmp.ne.s32.totalorder %s99, %s100
    %p111 = scmp.eq.s32.totalorder %s14, 0
    %p112 = por %p110, %p111
    %p113 = scmp.ne.s32.totalorder %s99, %s100
    %p114 = scmp.eq.s32.totalorder %s15, 1
    %p115 = por %p113, %p114
    %p117 = scmp.ne.s32.totalorder %s100, %s116
    %p118 = scmp.eq.s32.totalorder %s15, 0
    %p119 = por %p117, %p118
    %s120 = ssub.s32 %s16, %s35
    %s121 = ssub.s32 %s17, %s31
    %s122 = sor.u32 %s120, %s121
    %p123 = scmp.eq.s32.totalorder %s122, 0
    %s125 = sadd.s32 %s124, 1
    %s126 = scalar_select %p123, %s124, %s125
    %p129 = pneg %p123
    %p130 = scmp.eq.s32.totalorder %s9, 1
    %p131 = por %p129, %p130
    %p132 = scmp.ne.s32.totalorder %s124, %s127
    %p133 = scmp.eq.s32.totalorder %s9, 0
    %p134 = por %p132, %p133
    %p135 = scmp.ne.s32.totalorder %s124, %s127
    %p136 = scmp.eq.s32.totalorder %s14, 1
    %p137 = por %p135, %p136
    %p138 = scmp.ne.s32.totalorder %s127, %s128
    %p139 = scmp.eq.s32.totalorder %s14, 0
    %p140 = por %p138, %p139
    %p141 = scmp.ne.s32.totalorder %s127, %s128
    %p142 = scmp.eq.s32.totalorder %s15, 1
    %p143 = por %p141, %p142
    %p145 = scmp.ne.s32.totalorder %s128, %s144
    %p146 = scmp.eq.s32.totalorder %s15, 0
    %p147 = por %p145, %p146
    %p148 = scmp.le.s32.totalorder 1, %s9
    %p149 = scmp.lt.s32.totalorder %s9, 3
    %p150 = pnand %p148, %p149
    %p151 = pneg %p150
    // Predicated region
    $region9: #{encoder_forward.16} parent=5 // pred_check
      _
    $region10: #{encoder_forward.16} parent=5 // pred_check_branch
      %153 = sbr.rel (%p150) target = $region12
    $region11: #{encoder_forward.16} parent=5 // pred_region
      %s154 = ssub.s32 %s9, 1
    $region12: #{encoder_forward.16} parent=5 // pred_fallthru
      _
    %p155 = scmp.lt.s32.totalorder %s9, 2
    // Predicated region
    $region13: #{encoder_forward.16} parent=5 // pred_check
      %p156 = pneg %p155
    $region14: #{encoder_forward.16} parent=5 // pred_check_branch
      %158 = sbr.rel (%p156) target = $region16
    $region15: #{encoder_forward.16} parent=5 // pred_region
      // Predicated region
      $region17: #{encoder_forward.16} parent=15 // pred_check
        %p159 = pneg %p50
      $region18: #{encoder_forward.16} parent=15 // pred_check_branch
        %161 = sbr.rel (%p159) target = $region20
      $region19: #{encoder_forward.16} parent=15 // pred_region
        %p162 = scmp.lt.s32.totalorder %s16, 1
        %s163 = scalar_select %p162, %s16, 1
        %p164 = scmp.lt.s32.totalorder %s17, 0
        %s165 = scalar_select %p164, %s17, 0
        %s166 = smul.addr %s163, 4
        %s167 = sadd.s32 %s165, %s166
        %s168 = smul.addr %s167, 8
        %s169 = scalar_lea.vmem %s0, %s168
      $region20: #{encoder_forward.16} parent=15 // pred_fallthru
        _
      // Predicated region
      $region21: #{encoder_forward.16} parent=15 // pred_check
        %p170 = pneg %p78
      $region22: #{encoder_forward.16} parent=15 // pred_check_branch
        %172 = sbr.rel (%p170) target = $region24
      $region23: #{encoder_forward.16} parent=15 // pred_region
        %p173 = scmp.lt.s32.totalorder %s16, 1
        %s174 = scalar_select %p173, %s16, 1
        %p175 = scmp.lt.s32.totalorder %s18, 0
        %s176 = scalar_select %p175, %s18, 0
        %s177 = smul.addr %s174, 4
        %s178 = sadd.s32 %s176, %s177
        %s179 = sadd.s32 %s178, 8
        %s180 = smul.addr %s179, 8
        %s181 = scalar_lea.vmem %s1, %s180
      $region24: #{encoder_forward.16} parent=15 // pred_fallthru
        _
      // Predicated region
      $region25: #{encoder_forward.16} parent=15 // pred_check
        %p182 = pneg %p106
      $region26: #{encoder_forward.16} parent=15 // pred_check_branch
        %184 = sbr.rel (%p182) target = $region28
      $region27: #{encoder_forward.16} parent=15 // pred_region
        %p185 = scmp.lt.s32.totalorder %s16, 1
        %s186 = scalar_select %p185, %s16, 1
        %p187 = scmp.lt.s32.totalorder %s18, 0
        %s188 = scalar_select %p187, %s18, 0
        %s189 = smul.addr %s186, 4
        %s190 = sadd.s32 %s188, %s189
        %s191 = sadd.s32 %s190, 16
        %s192 = smul.addr %s191, 8
        %s193 = scalar_lea.vmem %s2, %s192
      $region28: #{encoder_forward.16} parent=15 // pred_fallthru
        _
    $region16: #{encoder_forward.16} parent=5 // pred_fallthru
      _
    %p194 = scmp.le.s32.totalorder 1, %s9
    %p195 = scmp.lt.s32.totalorder %s9, 3
    %p196 = pnand %p194, %p195
    %p197 = pneg %p196
    // Predicated region
    $region29: #{encoder_forward.16} parent=5 // pred_check
      _
    $region30: #{encoder_forward.16} parent=5 // pred_check_branch
      %199 = sbr.rel (%p196) target = $region32
    $region31: #{encoder_forward.16} parent=5 // pred_region
      %s200 = ssub.s32 %s9, 1
      %p201 = scmp.lt.s32.totalorder %s19, 1
      %s202 = scalar_select %p201, %s19, 1
      %p203 = scmp.lt.s32.totalorder %s20, 0
      %s204 = scalar_select %p203, %s20, 0
      %s205 = smul.addr %s202, 4
      %s206 = sadd.s32 %s204, %s205
      %s207 = smul.addr %s206, 8
      %s208 = scalar_lea.vmem %s0, %s207
      %p209 = pneg %p56
      %p210 = pneg %p53
      %p211 = scmp.lt.s32.totalorder %s19, 1
      %s212 = scalar_select %p211, %s19, 1
      %p213 = scmp.lt.s32.totalorder %s21, 0
      %s214 = scalar_select %p213, %s21, 0
      %s215 = smul.addr %s212, 4
      %s216 = sadd.s32 %s214, %s215
      %s217 = sadd.s32 %s216, 8
      %s218 = smul.addr %s217, 8
      %s219 = scalar_lea.vmem %s1, %s218
      %p220 = pneg %p84
      %p221 = pneg %p81
      %p222 = scmp.lt.s32.totalorder %s19, 1
      %s223 = scalar_select %p222, %s19, 1
      %p224 = scmp.lt.s32.totalorder %s21, 0
      %s225 = scalar_select %p224, %s21, 0
      %s226 = smul.addr %s223, 4
      %s227 = sadd.s32 %s225, %s226
      %s228 = sadd.s32 %s227, 16
      %s229 = smul.addr %s228, 8
      %s230 = scalar_lea.vmem %s2, %s229
      %p231 = pneg %p112
      %p232 = pneg %p109
      %p233 = pneg %p140
      %p234 = pneg %p137
      %p235 = scmp.lt.s32.totalorder %s19, 1
      %s236 = scalar_select %p235, %s19, 1
      %p237 = scmp.lt.s32.totalorder %s20, 0
      %s238 = scalar_select %p237, %s20, 0
      %s239 = sadd.s32 %s238, %s236
      %s240 = smul.addr %s239, 8
      %s241 = scalar_lea.vmem %s3, %s240
      %p242 = scmp.lt.s32.totalorder %s19, 1
      %s243 = scalar_select %p242, %s19, 1
      %p244 = scmp.lt.s32.totalorder %s20, 0
      %s245 = scalar_select %p244, %s20, 0
      %s246 = smul.addr %s243, 4
      %s247 = sadd.s32 %s245, %s246
      %s248 = smul.addr %s247, 8
      %s249 = scalar_lea.vmem %s0, %s248
      %p250 = scmp.lt.s32.totalorder %s19, 1
      %s251 = scalar_select %p250, %s19, 1
      %p252 = scmp.lt.s32.totalorder %s21, 0
      %s253 = scalar_select %p252, %s21, 0
      %s254 = smul.addr %s251, 4
      %s255 = sadd.s32 %s253, %s254
      %s256 = sadd.s32 %s255, 8
      %s257 = smul.addr %s256, 8
      %s258 = scalar_lea.vmem %s1, %s257
      %p259 = scmp.lt.s32.totalorder %s19, 1
      %s260 = scalar_select %p259, %s19, 1
      %p261 = scmp.lt.s32.totalorder %s21, 0
      %s262 = scalar_select %p261, %s21, 0
      %s263 = smul.addr %s260, 4
      %s264 = sadd.s32 %s262, %s263
      %s265 = sadd.s32 %s264, 16
      %s266 = smul.addr %s265, 8
      %s267 = scalar_lea.vmem %s2, %s266
      %p268 = scmp.lt.s32.totalorder %s19, 1
      %s269 = scalar_select %p268, %s19, 1
      %p270 = scmp.lt.s32.totalorder %s20, 0
      %s271 = scalar_select %p270, %s20, 0
      %s272 = sadd.s32 %s271, %s269
      %s273 = smul.addr %s272, 8
      %s274 = scalar_lea.vmem %s3, %s273
      %p275 = scmp.eq.s32.totalorder %s21, 0
      // Predicated region
      $region33: #{encoder_forward.16} parent=31 // pred_check
        %p276 = pneg %p275
      $region34: #{encoder_forward.16} parent=31 // pred_check_branch
        %278 = sbr.rel (%p276) target = $region36
      $region35: #{encoder_forward.16} parent=31 // pred_region
        %vm279 = vcmask 7168
        %280 = vst.msk [vmem:[#allocation2] sm:$0xff] %vm279, -inf
        %281 = vst.msk [vmem:[#allocation2 + $0x8] sm:$0xff] %vm279, -inf
        %282 = vst.msk [vmem:[#allocation2 + $0x10] sm:$0xff] %vm279, -inf
        %283 = vst.msk [vmem:[#allocation2 + $0x18] sm:$0xff] %vm279, -inf
        %284 = vst.msk [vmem:[#allocation3] sm:$0xff] %vm279, 0.0
        %285 = vst.msk [vmem:[#allocation3 + $0x8] sm:$0xff] %vm279, 0.0
        %286 = vst.msk [vmem:[#allocation3 + $0x10] sm:$0xff] %vm279, 0.0
        %287 = vst.msk [vmem:[#allocation3 + $0x18] sm:$0xff] %vm279, 0.0
        %vm288 = vcmask 64512
        %289 = vst.msk [vmem:[#allocation4] sm:$0xff] %vm288, 0.0
        %290 = vst.msk [vmem:[#allocation4 + $0x8] sm:$0xff] %vm288, 0.0
        %291 = vst.msk [vmem:[#allocation4 + $0x10] sm:$0xff] %vm288, 0.0
        %292 = vst.msk [vmem:[#allocation4 + $0x18] sm:$0xff] %vm288, 0.0
      $region36: #{encoder_forward.16} parent=31 // pred_fallthru
        _
      %v293 = vld [vmem:[%s249] sm:$0xff]
      %v294 = vld [vmem:[%s249 + $0x8] sm:$0xff]
      %v295 = vld [vmem:[%s249 + $0x10] sm:$0xff]
      %v296 = vld [vmem:[%s249 + $0x18] sm:$0xff]
      %v297 = vmul.f32 %v293, 0.35355338
      %v298 = vmul.f32 %v294, 0.35355338
      %v299 = vmul.f32 %v295, 0.35355338
      %v300 = vmul.f32 %v296, 0.35355338
      %v301 = vld [vmem:[%s258] sm:$0xff]
      %v302 = vld [vmem:[%s258 + $0x8] sm:$0xff]
      %v303 = vld [vmem:[%s258 + $0x10] sm:$0xff]
      %v304 = vld [vmem:[%s258 + $0x18] sm:$0xff]
      %v305 = vld [vmem:[%s267] sm:$0xff]
      %v306 = vld [vmem:[%s267 + $0x8] sm:$0xff]
      %v307 = vld [vmem:[%s267 + $0x10] sm:$0xff]
      %v308 = vld [vmem:[%s267 + $0x18] sm:$0xff]
      %vm309 = vcmask 64512
      %v311 = vsel %vm309, %v297, 0
      %v314 = vsel %vm309, %v301, 0
      %316 = vmatprep.subr.mxu0 0.0
      %317 = vmatpush1.xpose.msra.mxu0 %v314
      %318 = vmatprep.subr.mxu0 0.0
      %319 = vmatpush1.xpose.msra.mxu0 0.0
      %320 = vmatprep.subr.mxu0 0.0
      %321 = vmatpush1.xpose.msra.mxu0 0.0
      %322 = vmatprep.subr.mxu0 0.0
      %323 = vmatpush1.xpose.msra.mxu0 0.0
      %324 = vmatprep.subr.mxu0 0.0
      %325 = vmatpush1.xpose.msra.mxu0 0.0
      %326 = vmatprep.subr.mxu0 0.0
      %327 = vmatpush1.xpose.msra.mxu0 0.0
      %328 = vmatprep.subr.mxu0 0.0
      %329 = vmatpush1.xpose.msra.mxu0 0.0
      %330 = vmatprep.subr.mxu0 0.0
      %331 = vmatpush1.xpose.msra.mxu0 0.0
      %332 = vmatprep.subr.mxu0 0.0
      %333 = vmatpush1.xpose.msra.mxu0 0.0
      %334 = vmatprep.subr.mxu0 0.0
      %335 = vmatpush1.xpose.msra.mxu0 0.0
      %336 = vmatprep.subr.mxu0 0.0
      %337 = vmatpush1.xpose.msra.mxu0 0.0
      %338 = vmatprep.subr.mxu0 0.0
      %339 = vmatpush1.xpose.msra.mxu0 0.0
      %340 = vmatprep.subr.mxu0 0.0
      %341 = vmatpush1.xpose.msra.mxu0 0.0
      %342 = vmatprep.subr.mxu0 0.0
      %343 = vmatpush1.xpose.msra.mxu0 0.0
      %344 = vmatprep.subr.mxu0 0.0
      %345 = vmatpush1.xpose.msra.mxu0 0.0
      %346 = vmatprep.subr.mxu0 0.0
      %347 = vmatpush1.xpose.msra.mxu0 0.0
      %348 = vmatprep.subr.mxu0 0.0
      %349 = vmatpush1.xpose.msra.mxu0 0.0
      %350 = vmatprep.subr.mxu0 0.0
      %351 = vmatpush1.xpose.msra.mxu0 0.0
      %352 = vmatprep.subr.mxu0 0.0
      %353 = vmatpush1.xpose.msra.mxu0 0.0
      %354 = vmatprep.subr.mxu0 0.0
      %355 = vmatpush1.xpose.msra.mxu0 0.0
      %356 = vmatprep.subr.mxu0 0.0
      %357 = vmatpush1.xpose.msra.mxu0 0.0
      %358 = vmatprep.subr.mxu0 0.0
      %359 = vmatpush1.xpose.msra.mxu0 0.0
      %360 = vmatprep.subr.mxu0 0.0
      %361 = vmatpush1.xpose.msra.mxu0 0.0
      %362 = vmatprep.subr.mxu0 0.0
      %363 = vmatpush1.xpose.msra.mxu0 0.0
      %364 = vmatprep.subr.mxu0 0.0
      %365 = vmatpush1.xpose.msra.mxu0 0.0
      %366 = vmatprep.subr.mxu0 0.0
      %367 = vmatpush1.xpose.msra.mxu0 0.0
      %368 = vmatprep.subr.mxu0 0.0
      %369 = vmatpush1.xpose.msra.mxu0 0.0
      %370 = vmatprep.subr.mxu0 0.0
      %371 = vmatpush1.xpose.msra.mxu0 0.0
      %372 = vmatprep.subr.mxu0 0.0
      %373 = vmatpush1.xpose.msra.mxu0 0.0
      %374 = vmatprep.subr.mxu0 0.0
      %375 = vmatpush1.xpose.msra.mxu0 0.0
      %376 = vmatprep.subr.mxu0 0.0
      %377 = vmatpush1.xpose.msra.mxu0 0.0
      %378 = vmatprep.subr.mxu0 0.0
      %379 = vmatpush1.xpose.msra.mxu0 0.0
      %380 = vmatprep.mubr.f32.mxu0 0.0
      %381 = vmatmul.mubr.f32.gmra.mrb[0].mxu0 %v311
      %v382 = vpop.f32.mrb[0].mxu0
      %v383 = vadd.f32 0.0, %v382
      %v384 = vpop.f32.mrb[0].mxu0
      %385 = vdwg.mxu0
      %v387 = vsel %vm309, %v298, 0
      %v390 = vsel %vm309, %v302, 0
      %392 = vmatprep.subr.mxu0 0.0
      %393 = vmatpush1.xpose.msra.mxu0 %v390
      %394 = vmatprep.subr.mxu0 0.0
      %395 = vmatpush1.xpose.msra.mxu0 0.0
      %396 = vmatprep.subr.mxu0 0.0
      %397 = vmatpush1.xpose.msra.mxu0 0.0
      %398 = vmatprep.subr.mxu0 0.0
      %399 = vmatpush1.xpose.msra.mxu0 0.0
      %400 = vmatprep.subr.mxu0 0.0
      %401 = vmatpush1.xpose.msra.mxu0 0.0
      %402 = vmatprep.subr.mxu0 0.0
      %403 = vmatpush1.xpose.msra.mxu0 0.0
      %404 = vmatprep.subr.mxu0 0.0
      %405 = vmatpush1.xpose.msra.mxu0 0.0
      %406 = vmatprep.subr.mxu0 0.0
      %407 = vmatpush1.xpose.msra.mxu0 0.0
      %408 = vmatprep.subr.mxu0 0.0
      %409 = vmatpush1.xpose.msra.mxu0 0.0
      %410 = vmatprep.subr.mxu0 0.0
      %411 = vmatpush1.xpose.msra.mxu0 0.0
      %412 = vmatprep.subr.mxu0 0.0
      %413 = vmatpush1.xpose.msra.mxu0 0.0
      %414 = vmatprep.subr.mxu0 0.0
      %415 = vmatpush1.xpose.msra.mxu0 0.0
      %416 = vmatprep.subr.mxu0 0.0
      %417 = vmatpush1.xpose.msra.mxu0 0.0
      %418 = vmatprep.subr.mxu0 0.0
      %419 = vmatpush1.xpose.msra.mxu0 0.0
      %420 = vmatprep.subr.mxu0 0.0
      %421 = vmatpush1.xpose.msra.mxu0 0.0
      %422 = vmatprep.subr.mxu0 0.0
      %423 = vmatpush1.xpose.msra.mxu0 0.0
      %424 = vmatprep.subr.mxu0 0.0
      %425 = vmatpush1.xpose.msra.mxu0 0.0
      %426 = vmatprep.subr.mxu0 0.0
      %427 = vmatpush1.xpose.msra.mxu0 0.0
      %428 = vmatprep.subr.mxu0 0.0
      %429 = vmatpush1.xpose.msra.mxu0 0.0
      %430 = vmatprep.subr.mxu0 0.0
      %431 = vmatpush1.xpose.msra.mxu0 0.0
      %432 = vmatprep.subr.mxu0 0.0
      %433 = vmatpush1.xpose.msra.mxu0 0.0
      %434 = vmatprep.subr.mxu0 0.0
      %435 = vmatpush1.xpose.msra.mxu0 0.0
      %436 = vmatprep.subr.mxu0 0.0
      %437 = vmatpush1.xpose.msra.mxu0 0.0
      %438 = vmatprep.subr.mxu0 0.0
      %439 = vmatpush1.xpose.msra.mxu0 0.0
      %440 = vmatprep.subr.mxu0 0.0
      %441 = vmatpush1.xpose.msra.mxu0 0.0
      %442 = vmatprep.subr.mxu0 0.0
      %443 = vmatpush1.xpose.msra.mxu0 0.0
      %444 = vmatprep.subr.mxu0 0.0
      %445 = vmatpush1.xpose.msra.mxu0 0.0
      %446 = vmatprep.subr.mxu0 0.0
      %447 = vmatpush1.xpose.msra.mxu0 0.0
      %448 = vmatprep.subr.mxu0 0.0
      %449 = vmatpush1.xpose.msra.mxu0 0.0
      %450 = vmatprep.subr.mxu0 0.0
      %451 = vmatpush1.xpose.msra.mxu0 0.0
      %452 = vmatprep.subr.mxu0 0.0
      %453 = vmatpush1.xpose.msra.mxu0 0.0
      %454 = vmatprep.subr.mxu0 0.0
      %455 = vmatpush1.xpose.msra.mxu0 0.0
      %456 = vmatprep.mubr.f32.mxu0 0.0
      %457 = vmatmul.mubr.f32.gmra.mrb[0].mxu0 %v387
      %v458 = vpop.f32.mrb[0].mxu0
      %v459 = vadd.f32 0.0, %v458
      %v460 = vpop.f32.mrb[0].mxu0
      %461 = vdwg.mxu0
      %v463 = vsel %vm309, %v299, 0
      %v466 = vsel %vm309, %v303, 0
      %468 = vmatprep.subr.mxu0 0.0
      %469 = vmatpush1.xpose.msra.mxu0 %v466
      %470 = vmatprep.subr.mxu0 0.0
      %471 = vmatpush1.xpose.msra.mxu0 0.0
      %472 = vmatprep.subr.mxu0 0.0
      %473 = vmatpush1.xpose.msra.mxu0 0.0
      %474 = vmatprep.subr.mxu0 0.0
      %475 = vmatpush1.xpose.msra.mxu0 0.0
      %476 = vmatprep.subr.mxu0 0.0
      %477 = vmatpush1.xpose.msra.mxu0 0.0
      %478 = vmatprep.subr.mxu0 0.0
      %479 = vmatpush1.xpose.msra.mxu0 0.0
      %480 = vmatprep.subr.mxu0 0.0
      %481 = vmatpush1.xpose.msra.mxu0 0.0
      %482 = vmatprep.subr.mxu0 0.0
      %483 = vmatpush1.xpose.msra.mxu0 0.0
      %484 = vmatprep.subr.mxu0 0.0
      %485 = vmatpush1.xpose.msra.mxu0 0.0
      %486 = vmatprep.subr.mxu0 0.0
      %487 = vmatpush1.xpose.msra.mxu0 0.0
      %488 = vmatprep.subr.mxu0 0.0
      %489 = vmatpush1.xpose.msra.mxu0 0.0
      %490 = vmatprep.subr.mxu0 0.0
      %491 = vmatpush1.xpose.msra.mxu0 0.0
      %492 = vmatprep.subr.mxu0 0.0
      %493 = vmatpush1.xpose.msra.mxu0 0.0
      %494 = vmatprep.subr.mxu0 0.0
      %495 = vmatpush1.xpose.msra.mxu0 0.0
      %496 = vmatprep.subr.mxu0 0.0
      %497 = vmatpush1.xpose.msra.mxu0 0.0
      %498 = vmatprep.subr.mxu0 0.0
      %499 = vmatpush1.xpose.msra.mxu0 0.0
      %500 = vmatprep.subr.mxu0 0.0
      %501 = vmatpush1.xpose.msra.mxu0 0.0
      %502 = vmatprep.subr.mxu0 0.0
      %503 = vmatpush1.xpose.msra.mxu0 0.0
      %504 = vmatprep.subr.mxu0 0.0
      %505 = vmatpush1.xpose.msra.mxu0 0.0
      %506 = vmatprep.subr.mxu0 0.0
      %507 = vmatpush1.xpose.msra.mxu0 0.0
      %508 = vmatprep.subr.mxu0 0.0
      %509 = vmatpush1.xpose.msra.mxu0 0.0
      %510 = vmatprep.subr.mxu0 0.0
      %511 = vmatpush1.xpose.msra.mxu0 0.0
      %512 = vmatprep.subr.mxu0 0.0
      %513 = vmatpush1.xpose.msra.mxu0 0.0
      %514 = vmatprep.subr.mxu0 0.0
      %515 = vmatpush1.xpose.msra.mxu0 0.0
      %516 = vmatprep.subr.mxu0 0.0
      %517 = vmatpush1.xpose.msra.mxu0 0.0
      %518 = vmatprep.subr.mxu0 0.0
      %519 = vmatpush1.xpose.msra.mxu0 0.0
      %520 = vmatprep.subr.mxu0 0.0
      %521 = vmatpush1.xpose.msra.mxu0 0.0
      %522 = vmatprep.subr.mxu0 0.0
      %523 = vmatpush1.xpose.msra.mxu0 0.0
      %524 = vmatprep.subr.mxu0 0.0
      %525 = vmatpush1.xpose.msra.mxu0 0.0
      %526 = vmatprep.subr.mxu0 0.0
      %527 = vmatpush1.xpose.msra.mxu0 0.0
      %528 = vmatprep.subr.mxu0 0.0
      %529 = vmatpush1.xpose.msra.mxu0 0.0
      %530 = vmatprep.subr.mxu0 0.0
      %531 = vmatpush1.xpose.msra.mxu0 0.0
      %532 = vmatprep.mubr.f32.mxu0 0.0
      %533 = vmatmul.mubr.f32.gmra.mrb[0].mxu0 %v463
      %v534 = vpop.f32.mrb[0].mxu0
      %v535 = vadd.f32 0.0, %v534
      %v536 = vpop.f32.mrb[0].mxu0
      %537 = vdwg.mxu0
      %v539 = vsel %vm309, %v300, 0
      %v542 = vsel %vm309, %v304, 0
      %544 = vmatprep.subr.mxu0 0.0
      %545 = vmatpush1.xpose.msra.mxu0 %v542
      %546 = vmatprep.subr.mxu0 0.0
      %547 = vmatpush1.xpose.msra.mxu0 0.0
      %548 = vmatprep.subr.mxu0 0.0
      %549 = vmatpush1.xpose.msra.mxu0 0.0
      %550 = vmatprep.subr.mxu0 0.0
      %551 = vmatpush1.xpose.msra.mxu0 0.0
      %552 = vmatprep.subr.mxu0 0.0
      %553 = vmatpush1.xpose.msra.mxu0 0.0
      %554 = vmatprep.subr.mxu0 0.0
      %555 = vmatpush1.xpose.msra.mxu0 0.0
      %556 = vmatprep.subr.mxu0 0.0
      %557 = vmatpush1.xpose.msra.mxu0 0.0
      %558 = vmatprep.subr.mxu0 0.0
      %559 = vmatpush1.xpose.msra.mxu0 0.0
      %560 = vmatprep.subr.mxu0 0.0
      %561 = vmatpush1.xpose.msra.mxu0 0.0
      %562 = vmatprep.subr.mxu0 0.0
      %563 = vmatpush1.xpose.msra.mxu0 0.0
      %564 = vmatprep.subr.mxu0 0.0
      %565 = vmatpush1.xpose.msra.mxu0 0.0
      %566 = vmatprep.subr.mxu0 0.0
      %567 = vmatpush1.xpose.msra.mxu0 0.0
      %568 = vmatprep.subr.mxu0 0.0
      %569 = vmatpush1.xpose.msra.mxu0 0.0
      %570 = vmatprep.subr.mxu0 0.0
      %571 = vmatpush1.xpose.msra.mxu0 0.0
      %572 = vmatprep.subr.mxu0 0.0
      %573 = vmatpush1.xpose.msra.mxu0 0.0
      %574 = vmatprep.subr.mxu0 0.0
      %575 = vmatpush1.xpose.msra.mxu0 0.0
      %576 = vmatprep.subr.mxu0 0.0
      %577 = vmatpush1.xpose.msra.mxu0 0.0
      %578 = vmatprep.subr.mxu0 0.0
      %579 = vmatpush1.xpose.msra.mxu0 0.0
      %580 = vmatprep.subr.mxu0 0.0
      %581 = vmatpush1.xpose.msra.mxu0 0.0
      %582 = vmatprep.subr.mxu0 0.0
      %583 = vmatpush1.xpose.msra.mxu0 0.0
      %584 = vmatprep.subr.mxu0 0.0
      %585 = vmatpush1.xpose.msra.mxu0 0.0
      %586 = vmatprep.subr.mxu0 0.0
      %587 = vmatpush1.xpose.msra.mxu0 0.0
      %588 = vmatprep.subr.mxu0 0.0
      %589 = vmatpush1.xpose.msra.mxu0 0.0
      %590 = vmatprep.subr.mxu0 0.0
      %591 = vmatpush1.xpose.msra.mxu0 0.0
      %592 = vmatprep.subr.mxu0 0.0
      %593 = vmatpush1.xpose.msra.mxu0 0.0
      %594 = vmatprep.subr.mxu0 0.0
      %595 = vmatpush1.xpose.msra.mxu0 0.0
      %596 = vmatprep.subr.mxu0 0.0
      %597 = vmatpush1.xpose.msra.mxu0 0.0
      %598 = vmatprep.subr.mxu0 0.0
      %599 = vmatpush1.xpose.msra.mxu0 0.0
      %600 = vmatprep.subr.mxu0 0.0
      %601 = vmatpush1.xpose.msra.mxu0 0.0
      %602 = vmatprep.subr.mxu0 0.0
      %603 = vmatpush1.xpose.msra.mxu0 0.0
      %604 = vmatprep.subr.mxu0 0.0
      %605 = vmatpush1.xpose.msra.mxu0 0.0
      %606 = vmatprep.subr.mxu0 0.0
      %607 = vmatpush1.xpose.msra.mxu0 0.0
      %608 = vmatprep.mubr.f32.mxu0 0.0
      %609 = vmatmul.mubr.f32.gmra.mrb[0].mxu0 %v539
      %v610 = vpop.f32.mrb[0].mxu0
      %v611 = vadd.f32 0.0, %v610
      %v612 = vpop.f32.mrb[0].mxu0
      %613 = vdwg.mxu0
      %v614 = vld [vmem:[#allocation2] sm:$0xff]
      %v615 = vld [vmem:[#allocation2 + $0x8] sm:$0xff]
      %v616 = vld [vmem:[#allocation2 + $0x10] sm:$0xff]
      %v617 = vld [vmem:[#allocation2 + $0x18] sm:$0xff]
      %v618 = vsel %vm309, %v383, -inf
      %619 = vmax.xlane.f32.xlu0 %v618
      %v620 = vpop.xlane.xlu0 %619
      %v621 = vsel %vm309, %v459, -inf
      %622 = vmax.xlane.f32.xlu0 %v621
      %v623 = vpop.xlane.xlu0 %622
      %v624 = vsel %vm309, %v535, -inf
      %625 = vmax.xlane.f32.xlu0 %v624
      %v626 = vpop.xlane.xlu0 %625
      %v627 = vsel %vm309, %v611, -inf
      %628 = vmax.xlane.f32.xlu0 %v627
      %v629 = vpop.xlane.xlu0 %628
      %v630 = vmax.f32 %v614, %v620
      %v631 = vmax.f32 %v615, %v623
      %v632 = vmax.f32 %v616, %v626
      %v633 = vmax.f32 %v617, %v629
      %v634 = vsub.f32 %v614, %v630
      %v635 = vsub.f32 %v615, %v631
      %v636 = vsub.f32 %v616, %v632
      %v637 = vsub.f32 %v617, %v633
      %v638 = vmul.f32 %v634, 1.442695
      %v639 = vpow.pop %v638
      %v640 = vmul.f32 %v635, 1.442695
      %v641 = vpow.pop %v640
      %v642 = vmul.f32 %v636, 1.442695
      %v643 = vpow.pop %v642
      %v644 = vmul.f32 %v637, 1.442695
      %v645 = vpow.pop %v644
      %647 = vset.pattern.permute.xlu0 0
      %648 = vperm.xlu0 %647, %v630
      %v649 = vpop.permute.xlu0 %648
      %652 = vset.pattern.permute.xlu0 0
      %653 = vperm.xlu0 %652, %v631
      %v654 = vpop.permute.xlu0 %653
      %657 = vset.pattern.permute.xlu0 0
      %658 = vperm.xlu0 %657, %v632
      %v659 = vpop.permute.xlu0 %658
      %662 = vset.pattern.permute.xlu0 0
      %663 = vperm.xlu0 %662, %v633
      %v664 = vpop.permute.xlu0 %663
      %v666 = vsub.f32 %v383, %v649
      %v667 = vsub.f32 %v459, %v654
      %v668 = vsub.f32 %v535, %v659
      %v669 = vsub.f32 %v611, %v664
      %v670 = vmul.f32 %v666, 1.442695
      %v671 = vpow.pop %v670
      %v672 = vmul.f32 %v667, 1.442695
      %v673 = vpow.pop %v672
      %v674 = vmul.f32 %v668, 1.442695
      %v675 = vpow.pop %v674
      %v676 = vmul.f32 %v669, 1.442695
      %v677 = vpow.pop %v676
      %v678 = vld [vmem:[#allocation3] sm:$0xff]
      %v679 = vld [vmem:[#allocation3 + $0x8] sm:$0xff]
      %v680 = vld [vmem:[#allocation3 + $0x10] sm:$0xff]
      %v681 = vld [vmem:[#allocation3 + $0x18] sm:$0xff]
      %v682 = vmul.f32 %v639, %v678
      %v683 = vmul.f32 %v641, %v679
      %v684 = vmul.f32 %v643, %v680
      %v685 = vmul.f32 %v645, %v681
      %v686 = vsel %vm309, %v671, 0.0
      %687 = vadd.xlane.f32.xlu0 %v686
      %v688 = vpop.xlane.xlu0 %687
      %v689 = vsel %vm309, %v673, 0.0
      %690 = vadd.xlane.f32.xlu0 %v689
      %v691 = vpop.xlane.xlu0 %690
      %v692 = vsel %vm309, %v675, 0.0
      %693 = vadd.xlane.f32.xlu0 %v692
      %v694 = vpop.xlane.xlu0 %693
      %v695 = vsel %vm309, %v677, 0.0
      %696 = vadd.xlane.f32.xlu0 %v695
      %v697 = vpop.xlane.xlu0 %696
      %v698 = vadd.f32 %v682, %v688
      %v699 = vadd.f32 %v683, %v691
      %v700 = vadd.f32 %v684, %v694
      %v701 = vadd.f32 %v685, %v697
      %vm702 = vcmask 7168
      %703 = vst.msk [vmem:[#allocation3] sm:$0xff] %vm702, %v698
      %704 = vst.msk [vmem:[#allocation3 + $0x8] sm:$0xff] %vm702, %v699
      %705 = vst.msk [vmem:[#allocation3 + $0x10] sm:$0xff] %vm702, %v700
      %706 = vst.msk [vmem:[#allocation3 + $0x18] sm:$0xff] %vm702, %v701
      %v708 = vsel %vm309, %v671, 0
      %710 = vmatprep.subr.mxu0 0.0
      %711 = vmatpush1.msra.mxu0 %v305
      %712 = vmatprep.subr.mxu0 0.0
      %713 = vmatpush1.msra.mxu0 0.0
      %714 = vmatprep.subr.mxu0 0.0
      %715 = vmatpush1.msra.mxu0 0.0
      %716 = vmatprep.subr.mxu0 0.0
      %717 = vmatpush1.msra.mxu0 0.0
      %718 = vmatprep.subr.mxu0 0.0
      %719 = vmatpush1.msra.mxu0 0.0
      %720 = vmatprep.subr.mxu0 0.0
      %721 = vmatpush1.msra.mxu0 0.0
      %722 = vmatprep.subr.mxu0 0.0
      %723 = vmatpush1.msra.mxu0 0.0
      %724 = vmatprep.subr.mxu0 0.0
      %725 = vmatpush1.msra.mxu0 0.0
      %726 = vmatprep.subr.mxu0 0.0
      %727 = vmatpush1.msra.mxu0 0.0
      %728 = vmatprep.subr.mxu0 0.0
      %729 = vmatpush1.msra.mxu0 0.0
      %730 = vmatprep.subr.mxu0 0.0
      %731 = vmatpush1.msra.mxu0 0.0
      %732 = vmatprep.subr.mxu0 0.0
      %733 = vmatpush1.msra.mxu0 0.0
      %734 = vmatprep.subr.mxu0 0.0
      %735 = vmatpush1.msra.mxu0 0.0
      %736 = vmatprep.subr.mxu0 0.0
      %737 = vmatpush1.msra.mxu0 0.0
      %738 = vmatprep.subr.mxu0 0.0
      %739 = vmatpush1.msra.mxu0 0.0
      %740 = vmatprep.subr.mxu0 0.0
      %741 = vmatpush1.msra.mxu0 0.0
      %742 = vmatprep.subr.mxu0 0.0
      %743 = vmatpush1.msra.mxu0 0.0
      %744 = vmatprep.subr.mxu0 0.0
      %745 = vmatpush1.msra.mxu0 0.0
      %746 = vmatprep.subr.mxu0 0.0
      %747 = vmatpush1.msra.mxu0 0.0
      %748 = vmatprep.subr.mxu0 0.0
      %749 = vmatpush1.msra.mxu0 0.0
      %750 = vmatprep.subr.mxu0 0.0
      %751 = vmatpush1.msra.mxu0 0.0
      %752 = vmatprep.subr.mxu0 0.0
      %753 = vmatpush1.msra.mxu0 0.0
      %754 = vmatprep.subr.mxu0 0.0
      %755 = vmatpush1.msra.mxu0 0.0
      %756 = vmatprep.subr.mxu0 0.0
      %757 = vmatpush1.msra.mxu0 0.0
      %758 = vmatprep.subr.mxu0 0.0
      %759 = vmatpush1.msra.mxu0 0.0
      %760 = vmatprep.subr.mxu0 0.0
      %761 = vmatpush1.msra.mxu0 0.0
      %762 = vmatprep.subr.mxu0 0.0
      %763 = vmatpush1.msra.mxu0 0.0
      %764 = vmatprep.subr.mxu0 0.0
      %765 = vmatpush1.msra.mxu0 0.0
      %766 = vmatprep.subr.mxu0 0.0
      %767 = vmatpush1.msra.mxu0 0.0
      %768 = vmatprep.subr.mxu0 0.0
      %769 = vmatpush1.msra.mxu0 0.0
      %770 = vmatprep.subr.mxu0 0.0
      %771 = vmatpush1.msra.mxu0 0.0
      %772 = vmatprep.subr.mxu0 0.0
      %773 = vmatpush1.msra.mxu0 0.0
      %774 = vmatprep.mubr.f32.mxu0 0.0
      %775 = vmatmul.mubr.f32.gmra.mrb[0].mxu0 %v708
      %v776 = vpop.f32.mrb[0].mxu0
      %v777 = vadd.f32 0.0, %v776
      %v778 = vpop.f32.mrb[0].mxu0
      %779 = vdwg.mxu0
      %v781 = vsel %vm309, %v673, 0
      %783 = vmatprep.subr.mxu0 0.0
      %784 = vmatpush1.msra.mxu0 %v306
      %785 = vmatprep.subr.mxu0 0.0
      %786 = vmatpush1.msra.mxu0 0.0
      %787 = vmatprep.subr.mxu0 0.0
      %788 = vmatpush1.msra.mxu0 0.0
      %789 = vmatprep.subr.mxu0 0.0
      %790 = vmatpush1.msra.mxu0 0.0
      %791 = vmatprep.subr.mxu0 0.0
      %792 = vmatpush1.msra.mxu0 0.0
      %793 = vmatprep.subr.mxu0 0.0
      %794 = vmatpush1.msra.mxu0 0.0
      %795 = vmatprep.subr.mxu0 0.0
      %796 = vmatpush1.msra.mxu0 0.0
      %797 = vmatprep.subr.mxu0 0.0
      %798 = vmatpush1.msra.mxu0 0.0
      %799 = vmatprep.subr.mxu0 0.0
      %800 = vmatpush1.msra.mxu0 0.0
      %801 = vmatprep.subr.mxu0 0.0
      %802 = vmatpush1.msra.mxu0 0.0
      %803 = vmatprep.subr.mxu0 0.0
      %804 = vmatpush1.msra.mxu0 0.0
      %805 = vmatprep.subr.mxu0 0.0
      %806 = vmatpush1.msra.mxu0 0.0
      %807 = vmatprep.subr.mxu0 0.0
      %808 = vmatpush1.msra.mxu0 0.0
      %809 = vmatprep.subr.mxu0 0.0
      %810 = vmatpush1.msra.mxu0 0.0
      %811 = vmatprep.subr.mxu0 0.0
      %812 = vmatpush1.msra.mxu0 0.0
      %813 = vmatprep.subr.mxu0 0.0
      %814 = vmatpush1.msra.mxu0 0.0
      %815 = vmatprep.subr.mxu0 0.0
      %816 = vmatpush1.msra.mxu0 0.0
      %817 = vmatprep.subr.mxu0 0.0
      %818 = vmatpush1.msra.mxu0 0.0
      %819 = vmatprep.subr.mxu0 0.0
      %820 = vmatpush1.msra.mxu0 0.0
      %821 = vmatprep.subr.mxu0 0.0
      %822 = vmatpush1.msra.mxu0 0.0
      %823 = vmatprep.subr.mxu0 0.0
      %824 = vmatpush1.msra.mxu0 0.0
      %825 = vmatprep.subr.mxu0 0.0
      %826 = vmatpush1.msra.mxu0 0.0
      %827 = vmatprep.subr.mxu0 0.0
      %828 = vmatpush1.msra.mxu0 0.0
      %829 = vmatprep.subr.mxu0 0.0
      %830 = vmatpush1.msra.mxu0 0.0
      %831 = vmatprep.subr.mxu0 0.0
      %832 = vmatpush1.msra.mxu0 0.0
      %833 = vmatprep.subr.mxu0 0.0
      %834 = vmatpush1.msra.mxu0 0.0
      %835 = vmatprep.subr.mxu0 0.0
      %836 = vmatpush1.msra.mxu0 0.0
      %837 = vmatprep.subr.mxu0 0.0
      %838 = vmatpush1.msra.mxu0 0.0
      %839 = vmatprep.subr.mxu0 0.0
      %840 = vmatpush1.msra.mxu0 0.0
      %841 = vmatprep.subr.mxu0 0.0
      %842 = vmatpush1.msra.mxu0 0.0
      %843 = vmatprep.subr.mxu0 0.0
      %844 = vmatpush1.msra.mxu0 0.0
      %845 = vmatprep.subr.mxu0 0.0
      %846 = vmatpush1.msra.mxu0 0.0
      %847 = vmatprep.mubr.f32.mxu0 0.0
      %848 = vmatmul.mubr.f32.gmra.mrb[0].mxu0 %v781
      %v849 = vpop.f32.mrb[0].mxu0
      %v850 = vadd.f32 0.0, %v849
      %v851 = vpop.f32.mrb[0].mxu0
      %852 = vdwg.mxu0
      %v854 = vsel %vm309, %v675, 0
      %856 = vmatprep.subr.mxu0 0.0
      %857 = vmatpush1.msra.mxu0 %v307
      %858 = vmatprep.subr.mxu0 0.0
      %859 = vmatpush1.msra.mxu0 0.0
      %860 = vmatprep.subr.mxu0 0.0
      %861 = vmatpush1.msra.mxu0 0.0
      %862 = vmatprep.subr.mxu0 0.0
      %863 = vmatpush1.msra.mxu0 0.0
      %864 = vmatprep.subr.mxu0 0.0
      %865 = vmatpush1.msra.mxu0 0.0
      %866 = vmatprep.subr.mxu0 0.0
      %867 = vmatpush1.msra.mxu0 0.0
      %868 = vmatprep.subr.mxu0 0.0
      %869 = vmatpush1.msra.mxu0 0.0
      %870 = vmatprep.subr.mxu0 0.0
      %871 = vmatpush1.msra.mxu0 0.0
      %872 = vmatprep.subr.mxu0 0.0
      %873 = vmatpush1.msra.mxu0 0.0
      %874 = vmatprep.subr.mxu0 0.0
      %875 = vmatpush1.msra.mxu0 0.0
      %876 = vmatprep.subr.mxu0 0.0
      %877 = vmatpush1.msra.mxu0 0.0
      %878 = vmatprep.subr.mxu0 0.0
      %879 = vmatpush1.msra.mxu0 0.0
      %880 = vmatprep.subr.mxu0 0.0
      %881 = vmatpush1.msra.mxu0 0.0
      %882 = vmatprep.subr.mxu0 0.0
      %883 = vmatpush1.msra.mxu0 0.0
      %884 = vmatprep.subr.mxu0 0.0
      %885 = vmatpush1.msra.mxu0 0.0
      %886 = vmatprep.subr.mxu0 0.0
      %887 = vmatpush1.msra.mxu0 0.0
      %888 = vmatprep.subr.mxu0 0.0
      %889 = vmatpush1.msra.mxu0 0.0
      %890 = vmatprep.subr.mxu0 0.0
      %891 = vmatpush1.msra.mxu0 0.0
      %892 = vmatprep.subr.mxu0 0.0
      %893 = vmatpush1.msra.mxu0 0.0
      %894 = vmatprep.subr.mxu0 0.0
      %895 = vmatpush1.msra.mxu0 0.0
      %896 = vmatprep.subr.mxu0 0.0
      %897 = vmatpush1.msra.mxu0 0.0
      %898 = vmatprep.subr.mxu0 0.0
      %899 = vmatpush1.msra.mxu0 0.0
      %900 = vmatprep.subr.mxu0 0.0
      %901 = vmatpush1.msra.mxu0 0.0
      %902 = vmatprep.subr.mxu0 0.0
      %903 = vmatpush1.msra.mxu0 0.0
      %904 = vmatprep.subr.mxu0 0.0
      %905 = vmatpush1.msra.mxu0 0.0
      %906 = vmatprep.subr.mxu0 0.0
      %907 = vmatpush1.msra.mxu0 0.0
      %908 = vmatprep.subr.mxu0 0.0
      %909 = vmatpush1.msra.mxu0 0.0
      %910 = vmatprep.subr.mxu0 0.0
      %911 = vmatpush1.msra.mxu0 0.0
      %912 = vmatprep.subr.mxu0 0.0
      %913 = vmatpush1.msra.mxu0 0.0
      %914 = vmatprep.subr.mxu0 0.0
      %915 = vmatpush1.msra.mxu0 0.0
      %916 = vmatprep.subr.mxu0 0.0
      %917 = vmatpush1.msra.mxu0 0.0
      %918 = vmatprep.subr.mxu0 0.0
      %919 = vmatpush1.msra.mxu0 0.0
      %920 = vmatprep.mubr.f32.mxu0 0.0
      %921 = vmatmul.mubr.f32.gmra.mrb[0].mxu0 %v854
      %v922 = vpop.f32.mrb[0].mxu0
      %v923 = vadd.f32 0.0, %v922
      %v924 = vpop.f32.mrb[0].mxu0
      %925 = vdwg.mxu0
      %v927 = vsel %vm309, %v677, 0
      %929 = vmatprep.subr.mxu0 0.0
      %930 = vmatpush1.msra.mxu0 %v308
      %931 = vmatprep.subr.mxu0 0.0
      %932 = vmatpush1.msra.mxu0 0.0
      %933 = vmatprep.subr.mxu0 0.0
      %934 = vmatpush1.msra.mxu0 0.0
      %935 = vmatprep.subr.mxu0 0.0
      %936 = vmatpush1.msra.mxu0 0.0
      %937 = vmatprep.subr.mxu0 0.0
      %938 = vmatpush1.msra.mxu0 0.0
      %939 = vmatprep.subr.mxu0 0.0
      %940 = vmatpush1.msra.mxu0 0.0
      %941 = vmatprep.subr.mxu0 0.0
      %942 = vmatpush1.msra.mxu0 0.0
      %943 = vmatprep.subr.mxu0 0.0
      %944 = vmatpush1.msra.mxu0 0.0
      %945 = vmatprep.subr.mxu0 0.0
      %946 = vmatpush1.msra.mxu0 0.0
      %947 = vmatprep.subr.mxu0 0.0
      %948 = vmatpush1.msra.mxu0 0.0
      %949 = vmatprep.subr.mxu0 0.0
      %950 = vmatpush1.msra.mxu0 0.0
      %951 = vmatprep.subr.mxu0 0.0
      %952 = vmatpush1.msra.mxu0 0.0
      %953 = vmatprep.subr.mxu0 0.0
      %954 = vmatpush1.msra.mxu0 0.0
      %955 = vmatprep.subr.mxu0 0.0
      %956 = vmatpush1.msra.mxu0 0.0
      %957 = vmatprep.subr.mxu0 0.0
      %958 = vmatpush1.msra.mxu0 0.0
      %959 = vmatprep.subr.mxu0 0.0
      %960 = vmatpush1.msra.mxu0 0.0
      %961 = vmatprep.subr.mxu0 0.0
      %962 = vmatpush1.msra.mxu0 0.0
      %963 = vmatprep.subr.mxu0 0.0
      %964 = vmatpush1.msra.mxu0 0.0
      %965 = vmatprep.subr.mxu0 0.0
      %966 = vmatpush1.msra.mxu0 0.0
      %967 = vmatprep.subr.mxu0 0.0
      %968 = vmatpush1.msra.mxu0 0.0
      %969 = vmatprep.subr.mxu0 0.0
      %970 = vmatpush1.msra.mxu0 0.0
      %971 = vmatprep.subr.mxu0 0.0
      %972 = vmatpush1.msra.mxu0 0.0
      %973 = vmatprep.subr.mxu0 0.0
      %974 = vmatpush1.msra.mxu0 0.0
      %975 = vmatprep.subr.mxu0 0.0
      %976 = vmatpush1.msra.mxu0 0.0
      %977 = vmatprep.subr.mxu0 0.0
      %978 = vmatpush1.msra.mxu0 0.0
      %979 = vmatprep.subr.mxu0 0.0
      %980 = vmatpush1.msra.mxu0 0.0
      %981 = vmatprep.subr.mxu0 0.0
      %982 = vmatpush1.msra.mxu0 0.0
      %983 = vmatprep.subr.mxu0 0.0
      %984 = vmatpush1.msra.mxu0 0.0
      %985 = vmatprep.subr.mxu0 0.0
      %986 = vmatpush1.msra.mxu0 0.0
      %987 = vmatprep.subr.mxu0 0.0
      %988 = vmatpush1.msra.mxu0 0.0
      %989 = vmatprep.subr.mxu0 0.0
      %990 = vmatpush1.msra.mxu0 0.0
      %991 = vmatprep.subr.mxu0 0.0
      %992 = vmatpush1.msra.mxu0 0.0
      %993 = vmatprep.mubr.f32.mxu0 0.0
      %994 = vmatmul.mubr.f32.gmra.mrb[0].mxu0 %v927
      %v995 = vpop.f32.mrb[0].mxu0
      %v996 = vadd.f32 0.0, %v995
      %v997 = vpop.f32.mrb[0].mxu0
      %998 = vdwg.mxu0
      %v999 = vld [vmem:[#allocation4] sm:$0xff]
      %v1000 = vld [vmem:[#allocation4 + $0x8] sm:$0xff]
      %v1001 = vld [vmem:[#allocation4 + $0x10] sm:$0xff]
      %v1002 = vld [vmem:[#allocation4 + $0x18] sm:$0xff]
      %1004 = vset.pattern.permute.xlu0 0
      %1005 = vperm.xlu0 %1004, %v639
      %v1006 = vpop.permute.xlu0 %1005
      %1009 = vset.pattern.permute.xlu0 0
      %1010 = vperm.xlu0 %1009, %v641
      %v1011 = vpop.permute.xlu0 %1010
      %1014 = vset.pattern.permute.xlu0 0
      %1015 = vperm.xlu0 %1014, %v643
      %v1016 = vpop.permute.xlu0 %1015
      %1019 = vset.pattern.permute.xlu0 0
      %1020 = vperm.xlu0 %1019, %v645
      %v1021 = vpop.permute.xlu0 %1020
      %v1023 = vmul.f32 %v1006, %v999
      %v1024 = vmul.f32 %v1011, %v1000
      %v1025 = vmul.f32 %v1016, %v1001
      %v1026 = vmul.f32 %v1021, %v1002
      %v1027 = vadd.f32 %v1023, %v777
      %v1028 = vadd.f32 %v1024, %v850
      %v1029 = vadd.f32 %v1025, %v923
      %v1030 = vadd.f32 %v1026, %v996
      %1031 = vst.msk [vmem:[#allocation4] sm:$0xff] %vm309, %v1027
      %1032 = vst.msk [vmem:[#allocation4 + $0x8] sm:$0xff] %vm309, %v1028
      %1033 = vst.msk [vmem:[#allocation4 + $0x10] sm:$0xff] %vm309, %v1029
      %1034 = vst.msk [vmem:[#allocation4 + $0x18] sm:$0xff] %vm309, %v1030
      %1035 = vst.msk [vmem:[#allocation2] sm:$0xff] %vm702, %v630
      %1036 = vst.msk [vmem:[#allocation2 + $0x8] sm:$0xff] %vm702, %v631
      %1037 = vst.msk [vmem:[#allocation2 + $0x10] sm:$0xff] %vm702, %v632
      %1038 = vst.msk [vmem:[#allocation2 + $0x18] sm:$0xff] %vm702, %v633
      // Predicated region
      $region37: #{encoder_forward.16} parent=31 // pred_check
        %p1039 = pneg %p275
      $region38: #{encoder_forward.16} parent=31 // pred_check_branch
        %1041 = sbr.rel (%p1039) target = $region40
      $region39: #{encoder_forward.16} parent=31 // pred_region
        %v1042 = vld [vmem:[#allocation3] sm:$0xff]
        %v1043 = vld [vmem:[#allocation3 + $0x8] sm:$0xff]
        %v1044 = vld [vmem:[#allocation3 + $0x10] sm:$0xff]
        %v1045 = vld [vmem:[#allocation3 + $0x18] sm:$0xff]
        %v1046 = vrcp.pop %v1042
        %v1047 = vmul.f32 1.0, %v1046
        %v1048 = vrcp.pop %v1043
        %v1049 = vmul.f32 1.0, %v1048
        %v1050 = vrcp.pop %v1044
        %v1051 = vmul.f32 1.0, %v1050
        %v1052 = vrcp.pop %v1045
        %v1053 = vmul.f32 1.0, %v1052
        %v1054 = vld [vmem:[#allocation4] sm:$0xff]
        %v1055 = vld [vmem:[#allocation4 + $0x8] sm:$0xff]
        %v1056 = vld [vmem:[#allocation4 + $0x10] sm:$0xff]
        %v1057 = vld [vmem:[#allocation4 + $0x18] sm:$0xff]
        %1059 = vset.pattern.permute.xlu0 0
        %1060 = vperm.xlu0 %1059, %v1047
        %v1061 = vpop.permute.xlu0 %1060
        %1064 = vset.pattern.permute.xlu0 0
        %1065 = vperm.xlu0 %1064, %v1049
        %v1066 = vpop.permute.xlu0 %1065
        %1069 = vset.pattern.permute.xlu0 0
        %1070 = vperm.xlu0 %1069, %v1051
        %v1071 = vpop.permute.xlu0 %1070
        %1074 = vset.pattern.permute.xlu0 0
        %1075 = vperm.xlu0 %1074, %v1053
        %v1076 = vpop.permute.xlu0 %1075
        %v1078 = vmul.f32 %v1054, %v1061
        %v1079 = vmul.f32 %v1055, %v1066
        %v1080 = vmul.f32 %v1056, %v1071
        %v1081 = vmul.f32 %v1057, %v1076
        %1082 = vst.msk [vmem:[%s274] sm:$0xff] %vm309, %v1078
        %1084 = vrot.lane.b32.xlu0 %v1079, 8
        %v1085 = vpop.permute.xlu0 %1084
        %vm1087 = vcmask 130112
        %1088 = vst.msk [vmem:[%s274] sm:$0xff] %vm1087, %v1085
        %1090 = vrot.lane.b32.xlu0 %v1080, 16
        %v1091 = vpop.permute.xlu0 %1090
        %vm1093 = vcmask 195712
        %1094 = vst.msk [vmem:[%s274] sm:$0xff] %vm1093, %v1091
        %1096 = vrot.lane.b32.xlu0 %v1081, 24
        %v1097 = vpop.permute.xlu0 %1096
        %vm1099 = vcmask 261312
        %1100 = vst.msk [vmem:[%s274] sm:$0xff] %vm1099, %v1097
      $region40: #{encoder_forward.16} parent=31 // pred_fallthru
        _
      %p1101 = scmp.lt.s32.totalorder %s19, 1
      %s1102 = scalar_select %p1101, %s19, 1
      %p1103 = scmp.lt.s32.totalorder %s20, 0
      %s1104 = scalar_select %p1103, %s20, 0
      %s1105 = sadd.s32 %s1104, %s1102
      %s1106 = smul.addr %s1105, 8
      %s1107 = scalar_lea.vmem %s3, %s1106
      // Predicated region
      $region41: #{encoder_forward.16} parent=31 // pred_check
        %p1108 = pneg %p137
      $region42: #{encoder_forward.16} parent=31 // pred_check_branch
        %1110 = sbr.rel (%p1108) target = $region44
      $region43: #{encoder_forward.16} parent=31 // pred_region
        _
      $region44: #{encoder_forward.16} parent=31 // pred_fallthru
        _
    $region32: #{encoder_forward.16} parent=5 // pred_fallthru
      _
    %p1111 = scmp.le.s32.totalorder 2, %s9
    // Predicated region
    $region45: #{encoder_forward.16} parent=5 // pred_check
      %p1112 = pneg %p1111
    $region46: #{encoder_forward.16} parent=5 // pred_check_branch
      %1114 = sbr.rel (%p1112) target = $region48
    $region47: #{encoder_forward.16} parent=5 // pred_region
      %s1115 = ssub.s32 %s9, 2
      // Predicated region
      $region49: #{encoder_forward.16} parent=47 // pred_check
        %p1116 = pneg %p143
      $region50: #{encoder_forward.16} parent=47 // pred_check_branch
        %1118 = sbr.rel (%p1116) target = $region52
      $region51: #{encoder_forward.16} parent=47 // pred_region
        %p1119 = scmp.lt.s32.totalorder %s22, 1
        %s1120 = scalar_select %p1119, %s22, 1
        %p1121 = scmp.lt.s32.totalorder %s23, 0
        %s1122 = scalar_select %p1121, %s23, 0
        %s1123 = sadd.s32 %s1122, %s1120
        %s1124 = smul.addr %s1123, 8
        %s1125 = scalar_lea.vmem %s3, %s1124
      $region52: #{encoder_forward.16} parent=47 // pred_fallthru
        _
    $region48: #{encoder_forward.16} parent=5 // pred_fallthru
      _
  $region6: #{encoder_forward.16} parent=0 // loop_footer
    %s13 = sadd.s32 1, %s9
  $region7: #{encoder_forward.16} parent=0 // loop_footer_branch
    %8 = sbr.rel target = $region3
  $region8: #{encoder_forward.16} parent=0 // loop_exit
    _

// kernel: encoder_forward.25
$region0: #{encoder_forward.25}
  #allocation0 [shape = 'u32[]', space=smem, size = 0x4, offset = 0x4, fixed_abs, tag = 'smem constant byte address 0x4 - core index']
  #allocation1 [shape = 'u32[144,128]{1,0:T(1,128)}', space=vmem, size = 0x12000, scoped, tag = 'internal scratch']
  %s0 = inlined_call_operand.vmem [shape: f32[16,32], index: 0, kind: input, shape index: {}]
  %s1 = inlined_call_operand.vmem [shape: f32[1,32], index: 1, kind: input, shape index: {}]
  %s2 = inlined_call_operand.vmem [shape: f32[1,32], index: 2, kind: input, shape index: {}]
  %s3 = inlined_call_operand.hbm [shape: f32[16,32], index: 3, kind: output, shape index: {}]
  %s4 = sld [smem:[#allocation0]]
  $region22: #{encoder_forward.25} parent=0
    _
  %s6 = ssub.s32 1, %s4
  %s7 = scalar_select 0, %s6, %s4
  $region1: #{encoder_forward.25} parent=0
    #allocation2 [shape = 'u8[8192]{0}', space=vmem, size = 0x2000, scoped, tag = 'output window, operand 0, single buffered']
    #allocation3 [shape = 's32[1]{0}', space=sflag, size = 0x4, scoped, tag = 'scoped memory for encoder_forward.25']
    %8 = vsyncpa [#allocation3], 0
    // Predicated region
    $region2: #{encoder_forward.25} parent=1 // pred_check
      _
    $region3: #{encoder_forward.25} parent=1 // pred_check_branch
      %10 = sbr.rel (0) target = $region5
    $region4: #{encoder_forward.25} parent=1 // pred_region
      _
    $region5: #{encoder_forward.25} parent=1 // pred_fallthru
      _
    // Predicated region
    $region6: #{encoder_forward.25} parent=1 // pred_check
      _
    $region7: #{encoder_forward.25} parent=1 // pred_check_branch
      %12 = sbr.rel (0) target = $region9
    $region8: #{encoder_forward.25} parent=1 // pred_region
      _
    $region9: #{encoder_forward.25} parent=1 // pred_fallthru
      _
    // Predicated region
    $region10: #{encoder_forward.25} parent=1 // pred_check
      _
    $region11: #{encoder_forward.25} parent=1 // pred_check_branch
      %14 = sbr.rel (0) target = $region13
    $region12: #{encoder_forward.25} parent=1 // pred_region
      _
    $region13: #{encoder_forward.25} parent=1 // pred_fallthru
      _
    %v15 = vld [vmem:[%s0] sm:$0xff]
    %v16 = vld [vmem:[%s0 + $0x8] sm:$0xff]
    %vm17 = vcmask 261120
    %v18 = vsel %vm17, %v15, 0.0
    %19 = vadd.xlane.f32.xlu0 %v18
    %v20 = vpop.xlane.xlu0 %19
    %v21 = vsel %vm17, %v16, 0.0
    %22 = vadd.xlane.f32.xlu0 %v21
    %v23 = vpop.xlane.xlu0 %22
    %v24 = vrcp.pop 32.0
    %v25 = vmul.f32 %v20, %v24
    %v26 = vmul.f32 %v23, %v24
    %v27 = vsub.f32 %v15, %v25
    %v28 = vsub.f32 %v16, %v26
    %v29 = vmul.f32 %v27, %v27
    %v30 = vmul.f32 %v28, %v28
    %v31 = vsel %vm17, %v29, 0.0
    %32 = vadd.xlane.f32.xlu0 %v31
    %v33 = vpop.xlane.xlu0 %32
    %v34 = vsel %vm17, %v30, 0.0
    %35 = vadd.xlane.f32.xlu0 %v34
    %v36 = vpop.xlane.xlu0 %35
    %v37 = vmul.f32 %v33, %v24
    %v38 = vmul.f32 %v36, %v24
    %v39 = vadd.f32 %v37, 1e-05
    %v40 = vadd.f32 %v38, 1e-05
    %v41 = vrsqrt.pop %v39
    %v42 = vrsqrt.pop %v40
    %v43 = vmul.f32 %v27, %v41
    %v44 = vmul.f32 %v28, %v42
    %v45 = vld [vmem:[%s1] sm:$0x1]
    %v47 = vlaneseq
    %v48 = vshrl.u32 %v47, 7
    %v49 = vsub.s32 0, %v48
    %v50 = vrot.slane %v45, %v49
    %v52 = vmul.f32 %v43, %v50
    %v53 = vmul.f32 %v44, %v50
    %v54 = vld [vmem:[%s2] sm:$0x1]
    %v56 = vlaneseq
    %v57 = vshrl.u32 %v56, 7
    %v58 = vsub.s32 0, %v57
    %v59 = vrot.slane %v54, %v58
    %v61 = vadd.f32 %v52, %v59
    %v62 = vadd.f32 %v53, %v59
    %63 = vst.msk [vmem:[#allocation2] sm:$0xff] %vm17, %v61
    %64 = vst.msk [vmem:[#allocation2 + $0x8] sm:$0xff] %vm17, %v62
    // Predicated region
    $region14: #{encoder_forward.25} parent=1 // pred_check
      _
    $region15: #{encoder_forward.25} parent=1 // pred_check_branch
      %66 = sbr.rel (0) target = $region17
    $region16: #{encoder_forward.25} parent=1 // pred_region
      %s68 = ssub.s32 256, 256
      %69 = vsyncadd [#allocation3], %s68
      %s70 = sshll.u32 [#allocation2], 4
      %s71 = int_to_ptr.vmem [resolvable:$true] %s70
      %76 = dma.vmem_to_hbm [thread:$0]  %s71, 256, %s3, [#allocation3], 128, 128, 8
    $region17: #{encoder_forward.25} parent=1 // pred_fallthru
      _
    // Predicated region
    $region18: #{encoder_forward.25} parent=1 // pred_check
      _
    $region19: #{encoder_forward.25} parent=1 // pred_check_branch
      %78 = sbr.rel (0) target = $region21
    $region20: #{encoder_forward.25} parent=1 // pred_region
      %79 = dma.done [#allocation3], 256
    $region21: #{encoder_forward.25} parent=1 // pred_fallthru
      _
    %80 = vsyncpa [#allocation3], 1

</llo_original>
